<compile_context>
chip_gen: v5e
topology: v5e:2x2
jax: 0.10.0
libtpu: 0.0.40
codegen_flags: <defaults>
</compile_context>

<pallas_src>
import functools
import math

import jax
import jax.numpy as jnp
from jax import lax
from jax.experimental import pallas as pl
from jax.experimental.pallas import tpu as pltpu

jax.config.update("jax_default_matmul_precision", "highest")


def _gain_attn_kernel(x_ref, wq_ref, bq_ref, wk_ref, bk_ref, wv_ref, bv_ref,
                      wg_ref, bg_ref, wo_ref, bo_ref, out_ref,
                      *, num_heads, head_dim):
    """One batch element per grid step.  x_ref block: (1, S, H)."""
    x = x_ref[0]                                        # (S, H) f32
    S, H = x.shape
    f32 = jnp.float32
    hi = lax.Precision.HIGHEST

    # gain = Linear(mean over sequence)  -> (1, N)
    x_mean = jnp.mean(x, axis=0, keepdims=True)          # (1, H)
    gain = jnp.dot(x_mean, wg_ref[...], preferred_element_type=f32,
                   precision=hi) + bg_ref[...]            # (1, N)

    scale = 1.0 / math.sqrt(head_dim)
    head_iota = lax.broadcasted_iota(jnp.int32, (1, num_heads), 1)

    acc = jnp.zeros((S, H), f32)
    for n in range(num_heads):                            # static unroll over heads
        # Per-head projections; weights already laid out as (H, D) per head,
        # so the MXU is fed directly (no in-kernel weight transpose).
        q_h = jnp.dot(x, wq_ref[n], preferred_element_type=f32,
                      precision=hi) + bq_ref[n]           # (S, D)
        k_h = jnp.dot(x, wk_ref[n], preferred_element_type=f32,
                      precision=hi) + bk_ref[n]           # (S, D)
        v_h = jnp.dot(x, wv_ref[n], preferred_element_type=f32,
                      precision=hi) + bv_ref[n]           # (S, D)

        # Scalar gain for this head, extracted via a masked lane reduction
        # (keeps everything a (1, 1) tile -> clean broadcast, no lane slicing).
        g_n = jnp.sum(jnp.where(head_iota == n, gain, 0.0),
                      axis=-1, keepdims=True)             # (1, 1)
        q_h = q_h * (1.0 + g_n)

        # Attention scores: contract last dims of q_h and k_h (trans-B matmul).
        s = lax.dot_general(q_h, k_h, (((1,), (1,)), ((), ())),
                            preferred_element_type=f32, precision=hi) * scale
        s = s - jnp.max(s, axis=-1, keepdims=True)
        p = jnp.exp(s)
        p = p / jnp.sum(p, axis=-1, keepdims=True)        # softmax, (S, S)

        ctx_h = jnp.dot(p, v_h, preferred_element_type=f32, precision=hi)  # (S, D)

        # Per-head row-block of Wo.T, accumulated straight into the (S, H) output
        # (avoids an in-kernel concat of the heads).
        acc = acc + jnp.dot(ctx_h, wo_ref[n], preferred_element_type=f32,
                            precision=hi)

    out_ref[0] = (acc + bo_ref[...]).astype(out_ref.dtype)


def gain_control_attention(x, wq, bq, wk, bk, wv, bv, wg, bg, wo, bo, *, num_heads):
    """x: (B, S, H); weights in PyTorch nn.Linear layout (out_features, in_features)."""
    B, S, H = x.shape
    assert H % num_heads == 0
    D = H // num_heads

    # One-time wrapper-side layout: transpose + split weights per head so the
    # kernel never relayouts a weight inside VMEM.
    def per_head_in(w):            # (H, H) PyTorch -> (N, H, D): column-split of w.T
        return jnp.transpose(w.T.reshape(H, num_heads, D), (1, 0, 2))

    wq_h = per_head_in(wq)
    wk_h = per_head_in(wk)
    wv_h = per_head_in(wv)
    bq_h = bq.reshape(num_heads, 1, D)
    bk_h = bk.reshape(num_heads, 1, D)
    bv_h = bv.reshape(num_heads, 1, D)
    wg_t = wg.T                               # (H, N)
    bg_2 = bg.reshape(1, num_heads)
    wo_h = wo.T.reshape(num_heads, D, H)      # row-split of Wo.T per head
    bo_2 = bo.reshape(1, H)

    kernel = functools.partial(_gain_attn_kernel, num_heads=num_heads, head_dim=D)

    def full_spec(shape):
        return pl.BlockSpec(shape, lambda b, _s=shape: (0,) * len(_s))

    return pl.pallas_call(
        kernel,
        out_shape=jax.ShapeDtypeStruct((B, S, H), x.dtype),
        grid=(B,),
        in_specs=[
            pl.BlockSpec((1, S, H), lambda b: (b, 0, 0)),                  # x
            full_spec((num_heads, H, D)), full_spec((num_heads, 1, D)),    # Wq, bq
            full_spec((num_heads, H, D)), full_spec((num_heads, 1, D)),    # Wk, bk
            full_spec((num_heads, H, D)), full_spec((num_heads, 1, D)),    # Wv, bv
            full_spec((H, num_heads)),    full_spec((1, num_heads)),       # Wg, bg
            full_spec((num_heads, D, H)), full_spec((1, H)),               # Wo, bo
        ],
        out_specs=pl.BlockSpec((1, S, H), lambda b: (b, 0, 0)),
        compiler_params=pltpu.CompilerParams(
            dimension_semantics=("parallel",)),
    )(x, wq_h, bq_h, wk_h, bk_h, wv_h, bv_h, wg_t, bg_2, wo_h, bo_2)


def _reference(x, wq, bq, wk, bk, wv, bv, wg, bg, wo, bo, *, num_heads):
    B, S, H = x.shape
    D = H // num_heads

    def lin(a, w, b):
        return a @ w.T + b

    q = lin(x, wq, bq).reshape(B, S, num_heads, D).transpose(0, 2, 1, 3)
    k = lin(x, wk, bk).reshape(B, S, num_heads, D).transpose(0, 2, 1, 3)
    v = lin(x, wv, bv).reshape(B, S, num_heads, D).transpose(0, 2, 1, 3)
    gain = lin(x.mean(axis=1, keepdims=True), wg, bg).reshape(B, num_heads, 1, 1)
    q = q * (1.0 + gain)
    s = jnp.einsum("bnqd,bnkd->bnqk", q, k) / math.sqrt(D)
    p = jax.nn.softmax(s, axis=-1)
    ctx = jnp.einsum("bnqk,bnkd->bnqd", p, v).transpose(0, 2, 1, 3).reshape(B, S, H)
    return lin(ctx, wo, bo)


if __name__ == "__main__":
    key = jax.random.PRNGKey(0)
    keys = jax.random.split(key, 11)

    batch, seq, hidden, num_heads = 2, 8, 32, 4
    bound = 1.0 / math.sqrt(hidden)

    def w_init(k, shape):
        return jax.random.uniform(k, shape, minval=-bound, maxval=bound,
                                  dtype=jnp.float32)

    wq = w_init(keys[0], (hidden, hidden)); bq = w_init(keys[1], (hidden,))
    wk = w_init(keys[2], (hidden, hidden)); bk = w_init(keys[3], (hidden,))
    wv = w_init(keys[4], (hidden, hidden)); bv = w_init(keys[5], (hidden,))
    wg = w_init(keys[6], (num_heads, hidden)); bg = w_init(keys[7], (num_heads,))
    wo = w_init(keys[8], (hidden, hidden)); bo = w_init(keys[9], (hidden,))
    x = jax.random.normal(keys[10], (batch, seq, hidden), dtype=jnp.float32)

    out = gain_control_attention(x, wq, bq, wk, bk, wv, bv, wg, bg, wo, bo,
                                 num_heads=num_heads)
    out = jax.block_until_ready(out)

    ref = _reference(x, wq, bq, wk, bk, wv, bv, wg, bg, wo, bo,
                     num_heads=num_heads)
    assert out.shape == (batch, seq, hidden)
    assert jnp.allclose(out, ref, atol=1e-4, rtol=1e-4), \
        f"max abs err = {float(jnp.max(jnp.abs(out - ref)))}"

    print("KERNEL_OK")
</pallas_src>

<mosaic_0001>
module attributes {stable_mosaic.version = 11 : i64} {
  func.func @_gain_attn_kernel(%arg0: i32, %arg1: memref<1x8x32xf32, #tpu.memory_space<vmem>>, %arg2: memref<4x32x8xf32, #tpu.memory_space<vmem>>, %arg3: memref<4x1x8xf32, #tpu.memory_space<vmem>>, %arg4: memref<4x32x8xf32, #tpu.memory_space<vmem>>, %arg5: memref<4x1x8xf32, #tpu.memory_space<vmem>>, %arg6: memref<4x32x8xf32, #tpu.memory_space<vmem>>, %arg7: memref<4x1x8xf32, #tpu.memory_space<vmem>>, %arg8: memref<32x4xf32, #tpu.memory_space<vmem>>, %arg9: memref<1x4xf32, #tpu.memory_space<vmem>>, %arg10: memref<4x8x32xf32, #tpu.memory_space<vmem>>, %arg11: memref<1x32xf32, #tpu.memory_space<vmem>>, %arg12: memref<1x8x32xf32, #tpu.memory_space<vmem>>) attributes {dimension_semantics = [#tpu.dimension_semantics<parallel>], iteration_bounds = array<i64: 2>, scalar_prefetch = 0 : i64, scratch_operands = 0 : i64, tpu.core_type = #tpu.core_type<tc>, window_params = [{transform_indices = @transform_0, window_bounds = array<i64: 1, 8, 32>}, {pipeline_mode = #tpu.pipeline_mode<synchronous>, transform_indices = @transform_1, window_bounds = array<i64: 4, 32, 8>}, {pipeline_mode = #tpu.pipeline_mode<synchronous>, transform_indices = @transform_2, window_bounds = array<i64: 4, 1, 8>}, {pipeline_mode = #tpu.pipeline_mode<synchronous>, transform_indices = @transform_3, window_bounds = array<i64: 4, 32, 8>}, {pipeline_mode = #tpu.pipeline_mode<synchronous>, transform_indices = @transform_4, window_bounds = array<i64: 4, 1, 8>}, {pipeline_mode = #tpu.pipeline_mode<synchronous>, transform_indices = @transform_5, window_bounds = array<i64: 4, 32, 8>}, {pipeline_mode = #tpu.pipeline_mode<synchronous>, transform_indices = @transform_6, window_bounds = array<i64: 4, 1, 8>}, {pipeline_mode = #tpu.pipeline_mode<synchronous>, transform_indices = @transform_7, window_bounds = array<i64: 32, 4>}, {pipeline_mode = #tpu.pipeline_mode<synchronous>, transform_indices = @transform_8, window_bounds = array<i64: 1, 4>}, {pipeline_mode = #tpu.pipeline_mode<synchronous>, transform_indices = @transform_9, window_bounds = array<i64: 4, 8, 32>}, {pipeline_mode = #tpu.pipeline_mode<synchronous>, transform_indices = @transform_10, window_bounds = array<i64: 1, 32>}, {transform_indices = @transform_11, window_bounds = array<i64: 1, 8, 32>}]} {
    %c0 = arith.constant 0 : index
    %c0_0 = arith.constant 0 : index
    %c0_1 = arith.constant 0 : index
    %0 = vector.load %arg1[%c0, %c0_0, %c0_1] : memref<1x8x32xf32, #tpu.memory_space<vmem>>, vector<1x8x32xf32>
    %1 = vector.shape_cast %0 : vector<1x8x32xf32> to vector<8x32xf32>
    %cst = arith.constant dense<0.000000e+00> : vector<32xf32>
    %2 = vector.multi_reduction <add>, %1, %cst [0] : vector<8x32xf32> to vector<32xf32>
    %3 = vector.shape_cast %2 : vector<32xf32> to vector<1x32xf32>
    %cst_2 = arith.constant 8.000000e+00 : f32
    %4 = vector.broadcast %cst_2 : f32 to vector<1x32xf32>
    %5 = arith.divf %3, %4 : vector<1x32xf32>
    %c0_3 = arith.constant 0 : index
    %c0_4 = arith.constant 0 : index
    %6 = vector.load %arg8[%c0_3, %c0_4] : memref<32x4xf32, #tpu.memory_space<vmem>>, vector<32x4xf32>
    %cst_5 = arith.constant dense<0.000000e+00> : vector<1x4xf32>
    %7 = tpu.matmul %5, %6, %cst_5 {dimension_numbers = #tpu.dot_dimension_numbers<[1], [0], [0], [1], [0, 0, 1, 1], [], []>, precision = #tpu.contract_precision<fp32>} : vector<1x32xf32>, vector<32x4xf32>, vector<1x4xf32> -> vector<1x4xf32>
    %c0_6 = arith.constant 0 : index
    %c0_7 = arith.constant 0 : index
    %8 = vector.load %arg9[%c0_6, %c0_7] : memref<1x4xf32, #tpu.memory_space<vmem>>, vector<1x4xf32>
    %9 = arith.addf %7, %8 : vector<1x4xf32>
    %10 = tpu.iota {dimensions = array<i32: 1>} : vector<1x4xi32>
    %cst_8 = arith.constant 0.000000e+00 : f32
    %11 = vector.broadcast %cst_8 : f32 to vector<8x32xf32>
    %c0_9 = arith.constant 0 : index
    %c0_10 = arith.constant 0 : index
    %c0_11 = arith.constant 0 : index
    %12 = vector.load %arg2[%c0_9, %c0_10, %c0_11] : memref<4x32x8xf32, #tpu.memory_space<vmem>>, vector<1x32x8xf32>
    %13 = vector.shape_cast %12 : vector<1x32x8xf32> to vector<32x8xf32>
    %cst_12 = arith.constant dense<0.000000e+00> : vector<8x8xf32>
    %14 = tpu.matmul %1, %13, %cst_12 {dimension_numbers = #tpu.dot_dimension_numbers<[1], [0], [0], [1], [0, 0, 1, 1], [], []>, precision = #tpu.contract_precision<fp32>} : vector<8x32xf32>, vector<32x8xf32>, vector<8x8xf32> -> vector<8x8xf32>
    %c0_13 = arith.constant 0 : index
    %c0_14 = arith.constant 0 : index
    %c0_15 = arith.constant 0 : index
    %15 = vector.load %arg3[%c0_13, %c0_14, %c0_15] : memref<4x1x8xf32, #tpu.memory_space<vmem>>, vector<1x1x8xf32>
    %16 = vector.shape_cast %15 : vector<1x1x8xf32> to vector<1x8xf32>
    %17 = vector.broadcast %16 : vector<1x8xf32> to vector<8x8xf32>
    %18 = arith.addf %14, %17 : vector<8x8xf32>
    %c0_16 = arith.constant 0 : index
    %c0_17 = arith.constant 0 : index
    %c0_18 = arith.constant 0 : index
    %19 = vector.load %arg4[%c0_16, %c0_17, %c0_18] : memref<4x32x8xf32, #tpu.memory_space<vmem>>, vector<1x32x8xf32>
    %20 = vector.shape_cast %19 : vector<1x32x8xf32> to vector<32x8xf32>
    %cst_19 = arith.constant dense<0.000000e+00> : vector<8x8xf32>
    %21 = tpu.matmul %1, %20, %cst_19 {dimension_numbers = #tpu.dot_dimension_numbers<[1], [0], [0], [1], [0, 0, 1, 1], [], []>, precision = #tpu.contract_precision<fp32>} : vector<8x32xf32>, vector<32x8xf32>, vector<8x8xf32> -> vector<8x8xf32>
    %c0_20 = arith.constant 0 : index
    %c0_21 = arith.constant 0 : index
    %c0_22 = arith.constant 0 : index
    %22 = vector.load %arg5[%c0_20, %c0_21, %c0_22] : memref<4x1x8xf32, #tpu.memory_space<vmem>>, vector<1x1x8xf32>
    %23 = vector.shape_cast %22 : vector<1x1x8xf32> to vector<1x8xf32>
    %24 = vector.broadcast %23 : vector<1x8xf32> to vector<8x8xf32>
    %25 = arith.addf %21, %24 : vector<8x8xf32>
    %c0_23 = arith.constant 0 : index
    %c0_24 = arith.constant 0 : index
    %c0_25 = arith.constant 0 : index
    %26 = vector.load %arg6[%c0_23, %c0_24, %c0_25] : memref<4x32x8xf32, #tpu.memory_space<vmem>>, vector<1x32x8xf32>
    %27 = vector.shape_cast %26 : vector<1x32x8xf32> to vector<32x8xf32>
    %cst_26 = arith.constant dense<0.000000e+00> : vector<8x8xf32>
    %28 = tpu.matmul %1, %27, %cst_26 {dimension_numbers = #tpu.dot_dimension_numbers<[1], [0], [0], [1], [0, 0, 1, 1], [], []>, precision = #tpu.contract_precision<fp32>} : vector<8x32xf32>, vector<32x8xf32>, vector<8x8xf32> -> vector<8x8xf32>
    %c0_27 = arith.constant 0 : index
    %c0_28 = arith.constant 0 : index
    %c0_29 = arith.constant 0 : index
    %29 = vector.load %arg7[%c0_27, %c0_28, %c0_29] : memref<4x1x8xf32, #tpu.memory_space<vmem>>, vector<1x1x8xf32>
    %30 = vector.shape_cast %29 : vector<1x1x8xf32> to vector<1x8xf32>
    %31 = vector.broadcast %30 : vector<1x8xf32> to vector<8x8xf32>
    %32 = arith.addf %28, %31 : vector<8x8xf32>
    %c0_i32 = arith.constant 0 : i32
    %33 = vector.broadcast %c0_i32 : i32 to vector<1x4xi32>
    %34 = arith.cmpi eq, %10, %33 : vector<1x4xi32>
    %cst_30 = arith.constant 0.000000e+00 : f32
    %35 = vector.broadcast %cst_30 : f32 to vector<1x4xf32>
    %36 = arith.select %34, %9, %35 : vector<1x4xi1>, vector<1x4xf32>
    %cst_31 = arith.constant dense<0.000000e+00> : vector<1xf32>
    %37 = vector.multi_reduction <add>, %36, %cst_31 [1] : vector<1x4xf32> to vector<1xf32>
    %38 = vector.shape_cast %37 : vector<1xf32> to vector<1x1xf32>
    %cst_32 = arith.constant 1.000000e+00 : f32
    %39 = vector.broadcast %cst_32 : f32 to vector<1x1xf32>
    %40 = arith.addf %39, %38 : vector<1x1xf32>
    %41 = vector.broadcast %40 : vector<1x1xf32> to vector<8x8xf32>
    %42 = arith.mulf %18, %41 : vector<8x8xf32>
    %cst_33 = arith.constant dense<0.000000e+00> : vector<8x8xf32>
    %43 = tpu.matmul %42, %25, %cst_33 {dimension_numbers = #tpu.dot_dimension_numbers<[1], [1], [0], [0], [0, 0, 1, 0], [], []>, precision = #tpu.contract_precision<fp32>} : vector<8x8xf32>, vector<8x8xf32>, vector<8x8xf32> -> vector<8x8xf32>
    %cst_34 = arith.constant 0.353553385 : f32
    %44 = vector.broadcast %cst_34 : f32 to vector<8x8xf32>
    %45 = arith.mulf %43, %44 : vector<8x8xf32>
    %cst_35 = arith.constant dense<0xFF800000> : vector<8xf32>
    %46 = vector.multi_reduction <maximumf>, %45, %cst_35 [1] : vector<8x8xf32> to vector<8xf32>
    %47 = vector.shape_cast %46 : vector<8xf32> to vector<8x1xf32>
    %48 = vector.broadcast %47 : vector<8x1xf32> to vector<8x8xf32>
    %49 = arith.subf %45, %48 : vector<8x8xf32>
    %50 = math.exp %49 : vector<8x8xf32>
    %cst_36 = arith.constant dense<0.000000e+00> : vector<8xf32>
    %51 = vector.multi_reduction <add>, %50, %cst_36 [1] : vector<8x8xf32> to vector<8xf32>
    %52 = vector.shape_cast %51 : vector<8xf32> to vector<8x1xf32>
    %53 = vector.broadcast %52 : vector<8x1xf32> to vector<8x8xf32>
    %54 = arith.divf %50, %53 : vector<8x8xf32>
    %cst_37 = arith.constant dense<0.000000e+00> : vector<8x8xf32>
    %55 = tpu.matmul %54, %32, %cst_37 {dimension_numbers = #tpu.dot_dimension_numbers<[1], [0], [0], [1], [0, 0, 1, 1], [], []>, precision = #tpu.contract_precision<fp32>} : vector<8x8xf32>, vector<8x8xf32>, vector<8x8xf32> -> vector<8x8xf32>
    %c0_38 = arith.constant 0 : index
    %c0_39 = arith.constant 0 : index
    %c0_40 = arith.constant 0 : index
    %56 = vector.load %arg10[%c0_38, %c0_39, %c0_40] : memref<4x8x32xf32, #tpu.memory_space<vmem>>, vector<1x8x32xf32>
    %57 = vector.shape_cast %56 : vector<1x8x32xf32> to vector<8x32xf32>
    %cst_41 = arith.constant dense<0.000000e+00> : vector<8x32xf32>
    %58 = tpu.matmul %55, %57, %cst_41 {dimension_numbers = #tpu.dot_dimension_numbers<[1], [0], [0], [1], [0, 0, 1, 1], [], []>, precision = #tpu.contract_precision<fp32>} : vector<8x8xf32>, vector<8x32xf32>, vector<8x32xf32> -> vector<8x32xf32>
    %59 = arith.addf %11, %58 : vector<8x32xf32>
    %c1 = arith.constant 1 : index
    %c0_42 = arith.constant 0 : index
    %c0_43 = arith.constant 0 : index
    %60 = vector.load %arg2[%c1, %c0_42, %c0_43] : memref<4x32x8xf32, #tpu.memory_space<vmem>>, vector<1x32x8xf32>
    %61 = vector.shape_cast %60 : vector<1x32x8xf32> to vector<32x8xf32>
    %cst_44 = arith.constant dense<0.000000e+00> : vector<8x8xf32>
    %62 = tpu.matmul %1, %61, %cst_44 {dimension_numbers = #tpu.dot_dimension_numbers<[1], [0], [0], [1], [0, 0, 1, 1], [], []>, precision = #tpu.contract_precision<fp32>} : vector<8x32xf32>, vector<32x8xf32>, vector<8x8xf32> -> vector<8x8xf32>
    %c1_45 = arith.constant 1 : index
    %c0_46 = arith.constant 0 : index
    %c0_47 = arith.constant 0 : index
    %63 = vector.load %arg3[%c1_45, %c0_46, %c0_47] : memref<4x1x8xf32, #tpu.memory_space<vmem>>, vector<1x1x8xf32>
    %64 = vector.shape_cast %63 : vector<1x1x8xf32> to vector<1x8xf32>
    %65 = vector.broadcast %64 : vector<1x8xf32> to vector<8x8xf32>
    %66 = arith.addf %62, %65 : vector<8x8xf32>
    %c1_48 = arith.constant 1 : index
    %c0_49 = arith.constant 0 : index
    %c0_50 = arith.constant 0 : index
    %67 = vector.load %arg4[%c1_48, %c0_49, %c0_50] : memref<4x32x8xf32, #tpu.memory_space<vmem>>, vector<1x32x8xf32>
    %68 = vector.shape_cast %67 : vector<1x32x8xf32> to vector<32x8xf32>
    %cst_51 = arith.constant dense<0.000000e+00> : vector<8x8xf32>
    %69 = tpu.matmul %1, %68, %cst_51 {dimension_numbers = #tpu.dot_dimension_numbers<[1], [0], [0], [1], [0, 0, 1, 1], [], []>, precision = #tpu.contract_precision<fp32>} : vector<8x32xf32>, vector<32x8xf32>, vector<8x8xf32> -> vector<8x8xf32>
    %c1_52 = arith.constant 1 : index
    %c0_53 = arith.constant 0 : index
    %c0_54 = arith.constant 0 : index
    %70 = vector.load %arg5[%c1_52, %c0_53, %c0_54] : memref<4x1x8xf32, #tpu.memory_space<vmem>>, vector<1x1x8xf32>
    %71 = vector.shape_cast %70 : vector<1x1x8xf32> to vector<1x8xf32>
    %72 = vector.broadcast %71 : vector<1x8xf32> to vector<8x8xf32>
    %73 = arith.addf %69, %72 : vector<8x8xf32>
    %c1_55 = arith.constant 1 : index
    %c0_56 = arith.constant 0 : index
    %c0_57 = arith.constant 0 : index
    %74 = vector.load %arg6[%c1_55, %c0_56, %c0_57] : memref<4x32x8xf32, #tpu.memory_space<vmem>>, vector<1x32x8xf32>
    %75 = vector.shape_cast %74 : vector<1x32x8xf32> to vector<32x8xf32>
    %cst_58 = arith.constant dense<0.000000e+00> : vector<8x8xf32>
    %76 = tpu.matmul %1, %75, %cst_58 {dimension_numbers = #tpu.dot_dimension_numbers<[1], [0], [0], [1], [0, 0, 1, 1], [], []>, precision = #tpu.contract_precision<fp32>} : vector<8x32xf32>, vector<32x8xf32>, vector<8x8xf32> -> vector<8x8xf32>
    %c1_59 = arith.constant 1 : index
    %c0_60 = arith.constant 0 : index
    %c0_61 = arith.constant 0 : index
    %77 = vector.load %arg7[%c1_59, %c0_60, %c0_61] : memref<4x1x8xf32, #tpu.memory_space<vmem>>, vector<1x1x8xf32>
    %78 = vector.shape_cast %77 : vector<1x1x8xf32> to vector<1x8xf32>
    %79 = vector.broadcast %78 : vector<1x8xf32> to vector<8x8xf32>
    %80 = arith.addf %76, %79 : vector<8x8xf32>
    %c1_i32 = arith.constant 1 : i32
    %81 = vector.broadcast %c1_i32 : i32 to vector<1x4xi32>
    %82 = arith.cmpi eq, %10, %81 : vector<1x4xi32>
    %cst_62 = arith.constant 0.000000e+00 : f32
    %83 = vector.broadcast %cst_62 : f32 to vector<1x4xf32>
    %84 = arith.select %82, %9, %83 : vector<1x4xi1>, vector<1x4xf32>
    %cst_63 = arith.constant dense<0.000000e+00> : vector<1xf32>
    %85 = vector.multi_reduction <add>, %84, %cst_63 [1] : vector<1x4xf32> to vector<1xf32>
    %86 = vector.shape_cast %85 : vector<1xf32> to vector<1x1xf32>
    %cst_64 = arith.constant 1.000000e+00 : f32
    %87 = vector.broadcast %cst_64 : f32 to vector<1x1xf32>
    %88 = arith.addf %87, %86 : vector<1x1xf32>
    %89 = vector.broadcast %88 : vector<1x1xf32> to vector<8x8xf32>
    %90 = arith.mulf %66, %89 : vector<8x8xf32>
    %cst_65 = arith.constant dense<0.000000e+00> : vector<8x8xf32>
    %91 = tpu.matmul %90, %73, %cst_65 {dimension_numbers = #tpu.dot_dimension_numbers<[1], [1], [0], [0], [0, 0, 1, 0], [], []>, precision = #tpu.contract_precision<fp32>} : vector<8x8xf32>, vector<8x8xf32>, vector<8x8xf32> -> vector<8x8xf32>
    %cst_66 = arith.constant 0.353553385 : f32
    %92 = vector.broadcast %cst_66 : f32 to vector<8x8xf32>
    %93 = arith.mulf %91, %92 : vector<8x8xf32>
    %cst_67 = arith.constant dense<0xFF800000> : vector<8xf32>
    %94 = vector.multi_reduction <maximumf>, %93, %cst_67 [1] : vector<8x8xf32> to vector<8xf32>
    %95 = vector.shape_cast %94 : vector<8xf32> to vector<8x1xf32>
    %96 = vector.broadcast %95 : vector<8x1xf32> to vector<8x8xf32>
    %97 = arith.subf %93, %96 : vector<8x8xf32>
    %98 = math.exp %97 : vector<8x8xf32>
    %cst_68 = arith.constant dense<0.000000e+00> : vector<8xf32>
    %99 = vector.multi_reduction <add>, %98, %cst_68 [1] : vector<8x8xf32> to vector<8xf32>
    %100 = vector.shape_cast %99 : vector<8xf32> to vector<8x1xf32>
    %101 = vector.broadcast %100 : vector<8x1xf32> to vector<8x8xf32>
    %102 = arith.divf %98, %101 : vector<8x8xf32>
    %cst_69 = arith.constant dense<0.000000e+00> : vector<8x8xf32>
    %103 = tpu.matmul %102, %80, %cst_69 {dimension_numbers = #tpu.dot_dimension_numbers<[1], [0], [0], [1], [0, 0, 1, 1], [], []>, precision = #tpu.contract_precision<fp32>} : vector<8x8xf32>, vector<8x8xf32>, vector<8x8xf32> -> vector<8x8xf32>
    %c1_70 = arith.constant 1 : index
    %c0_71 = arith.constant 0 : index
    %c0_72 = arith.constant 0 : index
    %104 = vector.load %arg10[%c1_70, %c0_71, %c0_72] : memref<4x8x32xf32, #tpu.memory_space<vmem>>, vector<1x8x32xf32>
    %105 = vector.shape_cast %104 : vector<1x8x32xf32> to vector<8x32xf32>
    %cst_73 = arith.constant dense<0.000000e+00> : vector<8x32xf32>
    %106 = tpu.matmul %103, %105, %cst_73 {dimension_numbers = #tpu.dot_dimension_numbers<[1], [0], [0], [1], [0, 0, 1, 1], [], []>, precision = #tpu.contract_precision<fp32>} : vector<8x8xf32>, vector<8x32xf32>, vector<8x32xf32> -> vector<8x32xf32>
    %107 = arith.addf %59, %106 : vector<8x32xf32>
    %c2 = arith.constant 2 : index
    %c0_74 = arith.constant 0 : index
    %c0_75 = arith.constant 0 : index
    %108 = vector.load %arg2[%c2, %c0_74, %c0_75] : memref<4x32x8xf32, #tpu.memory_space<vmem>>, vector<1x32x8xf32>
    %109 = vector.shape_cast %108 : vector<1x32x8xf32> to vector<32x8xf32>
    %cst_76 = arith.constant dense<0.000000e+00> : vector<8x8xf32>
    %110 = tpu.matmul %1, %109, %cst_76 {dimension_numbers = #tpu.dot_dimension_numbers<[1], [0], [0], [1], [0, 0, 1, 1], [], []>, precision = #tpu.contract_precision<fp32>} : vector<8x32xf32>, vector<32x8xf32>, vector<8x8xf32> -> vector<8x8xf32>
    %c2_77 = arith.constant 2 : index
    %c0_78 = arith.constant 0 : index
    %c0_79 = arith.constant 0 : index
    %111 = vector.load %arg3[%c2_77, %c0_78, %c0_79] : memref<4x1x8xf32, #tpu.memory_space<vmem>>, vector<1x1x8xf32>
    %112 = vector.shape_cast %111 : vector<1x1x8xf32> to vector<1x8xf32>
    %113 = vector.broadcast %112 : vector<1x8xf32> to vector<8x8xf32>
    %114 = arith.addf %110, %113 : vector<8x8xf32>
    %c2_80 = arith.constant 2 : index
    %c0_81 = arith.constant 0 : index
    %c0_82 = arith.constant 0 : index
    %115 = vector.load %arg4[%c2_80, %c0_81, %c0_82] : memref<4x32x8xf32, #tpu.memory_space<vmem>>, vector<1x32x8xf32>
    %116 = vector.shape_cast %115 : vector<1x32x8xf32> to vector<32x8xf32>
    %cst_83 = arith.constant dense<0.000000e+00> : vector<8x8xf32>
    %117 = tpu.matmul %1, %116, %cst_83 {dimension_numbers = #tpu.dot_dimension_numbers<[1], [0], [0], [1], [0, 0, 1, 1], [], []>, precision = #tpu.contract_precision<fp32>} : vector<8x32xf32>, vector<32x8xf32>, vector<8x8xf32> -> vector<8x8xf32>
    %c2_84 = arith.constant 2 : index
    %c0_85 = arith.constant 0 : index
    %c0_86 = arith.constant 0 : index
    %118 = vector.load %arg5[%c2_84, %c0_85, %c0_86] : memref<4x1x8xf32, #tpu.memory_space<vmem>>, vector<1x1x8xf32>
    %119 = vector.shape_cast %118 : vector<1x1x8xf32> to vector<1x8xf32>
    %120 = vector.broadcast %119 : vector<1x8xf32> to vector<8x8xf32>
    %121 = arith.addf %117, %120 : vector<8x8xf32>
    %c2_87 = arith.constant 2 : index
    %c0_88 = arith.constant 0 : index
    %c0_89 = arith.constant 0 : index
    %122 = vector.load %arg6[%c2_87, %c0_88, %c0_89] : memref<4x32x8xf32, #tpu.memory_space<vmem>>, vector<1x32x8xf32>
    %123 = vector.shape_cast %122 : vector<1x32x8xf32> to vector<32x8xf32>
    %cst_90 = arith.constant dense<0.000000e+00> : vector<8x8xf32>
    %124 = tpu.matmul %1, %123, %cst_90 {dimension_numbers = #tpu.dot_dimension_numbers<[1], [0], [0], [1], [0, 0, 1, 1], [], []>, precision = #tpu.contract_precision<fp32>} : vector<8x32xf32>, vector<32x8xf32>, vector<8x8xf32> -> vector<8x8xf32>
    %c2_91 = arith.constant 2 : index
    %c0_92 = arith.constant 0 : index
    %c0_93 = arith.constant 0 : index
    %125 = vector.load %arg7[%c2_91, %c0_92, %c0_93] : memref<4x1x8xf32, #tpu.memory_space<vmem>>, vector<1x1x8xf32>
    %126 = vector.shape_cast %125 : vector<1x1x8xf32> to vector<1x8xf32>
    %127 = vector.broadcast %126 : vector<1x8xf32> to vector<8x8xf32>
    %128 = arith.addf %124, %127 : vector<8x8xf32>
    %c2_i32 = arith.constant 2 : i32
    %129 = vector.broadcast %c2_i32 : i32 to vector<1x4xi32>
    %130 = arith.cmpi eq, %10, %129 : vector<1x4xi32>
    %cst_94 = arith.constant 0.000000e+00 : f32
    %131 = vector.broadcast %cst_94 : f32 to vector<1x4xf32>
    %132 = arith.select %130, %9, %131 : vector<1x4xi1>, vector<1x4xf32>
    %cst_95 = arith.constant dense<0.000000e+00> : vector<1xf32>
    %133 = vector.multi_reduction <add>, %132, %cst_95 [1] : vector<1x4xf32> to vector<1xf32>
    %134 = vector.shape_cast %133 : vector<1xf32> to vector<1x1xf32>
    %cst_96 = arith.constant 1.000000e+00 : f32
    %135 = vector.broadcast %cst_96 : f32 to vector<1x1xf32>
    %136 = arith.addf %135, %134 : vector<1x1xf32>
    %137 = vector.broadcast %136 : vector<1x1xf32> to vector<8x8xf32>
    %138 = arith.mulf %114, %137 : vector<8x8xf32>
    %cst_97 = arith.constant dense<0.000000e+00> : vector<8x8xf32>
    %139 = tpu.matmul %138, %121, %cst_97 {dimension_numbers = #tpu.dot_dimension_numbers<[1], [1], [0], [0], [0, 0, 1, 0], [], []>, precision = #tpu.contract_precision<fp32>} : vector<8x8xf32>, vector<8x8xf32>, vector<8x8xf32> -> vector<8x8xf32>
    %cst_98 = arith.constant 0.353553385 : f32
    %140 = vector.broadcast %cst_98 : f32 to vector<8x8xf32>
    %141 = arith.mulf %139, %140 : vector<8x8xf32>
    %cst_99 = arith.constant dense<0xFF800000> : vector<8xf32>
    %142 = vector.multi_reduction <maximumf>, %141, %cst_99 [1] : vector<8x8xf32> to vector<8xf32>
    %143 = vector.shape_cast %142 : vector<8xf32> to vector<8x1xf32>
    %144 = vector.broadcast %143 : vector<8x1xf32> to vector<8x8xf32>
    %145 = arith.subf %141, %144 : vector<8x8xf32>
    %146 = math.exp %145 : vector<8x8xf32>
    %cst_100 = arith.constant dense<0.000000e+00> : vector<8xf32>
    %147 = vector.multi_reduction <add>, %146, %cst_100 [1] : vector<8x8xf32> to vector<8xf32>
    %148 = vector.shape_cast %147 : vector<8xf32> to vector<8x1xf32>
    %149 = vector.broadcast %148 : vector<8x1xf32> to vector<8x8xf32>
    %150 = arith.divf %146, %149 : vector<8x8xf32>
    %cst_101 = arith.constant dense<0.000000e+00> : vector<8x8xf32>
    %151 = tpu.matmul %150, %128, %cst_101 {dimension_numbers = #tpu.dot_dimension_numbers<[1], [0], [0], [1], [0, 0, 1, 1], [], []>, precision = #tpu.contract_precision<fp32>} : vector<8x8xf32>, vector<8x8xf32>, vector<8x8xf32> -> vector<8x8xf32>
    %c2_102 = arith.constant 2 : index
    %c0_103 = arith.constant 0 : index
    %c0_104 = arith.constant 0 : index
    %152 = vector.load %arg10[%c2_102, %c0_103, %c0_104] : memref<4x8x32xf32, #tpu.memory_space<vmem>>, vector<1x8x32xf32>
    %153 = vector.shape_cast %152 : vector<1x8x32xf32> to vector<8x32xf32>
    %cst_105 = arith.constant dense<0.000000e+00> : vector<8x32xf32>
    %154 = tpu.matmul %151, %153, %cst_105 {dimension_numbers = #tpu.dot_dimension_numbers<[1], [0], [0], [1], [0, 0, 1, 1], [], []>, precision = #tpu.contract_precision<fp32>} : vector<8x8xf32>, vector<8x32xf32>, vector<8x32xf32> -> vector<8x32xf32>
    %155 = arith.addf %107, %154 : vector<8x32xf32>
    %c3 = arith.constant 3 : index
    %c0_106 = arith.constant 0 : index
    %c0_107 = arith.constant 0 : index
    %156 = vector.load %arg2[%c3, %c0_106, %c0_107] : memref<4x32x8xf32, #tpu.memory_space<vmem>>, vector<1x32x8xf32>
    %157 = vector.shape_cast %156 : vector<1x32x8xf32> to vector<32x8xf32>
    %cst_108 = arith.constant dense<0.000000e+00> : vector<8x8xf32>
    %158 = tpu.matmul %1, %157, %cst_108 {dimension_numbers = #tpu.dot_dimension_numbers<[1], [0], [0], [1], [0, 0, 1, 1], [], []>, precision = #tpu.contract_precision<fp32>} : vector<8x32xf32>, vector<32x8xf32>, vector<8x8xf32> -> vector<8x8xf32>
    %c3_109 = arith.constant 3 : index
    %c0_110 = arith.constant 0 : index
    %c0_111 = arith.constant 0 : index
    %159 = vector.load %arg3[%c3_109, %c0_110, %c0_111] : memref<4x1x8xf32, #tpu.memory_space<vmem>>, vector<1x1x8xf32>
    %160 = vector.shape_cast %159 : vector<1x1x8xf32> to vector<1x8xf32>
    %161 = vector.broadcast %160 : vector<1x8xf32> to vector<8x8xf32>
    %162 = arith.addf %158, %161 : vector<8x8xf32>
    %c3_112 = arith.constant 3 : index
    %c0_113 = arith.constant 0 : index
    %c0_114 = arith.constant 0 : index
    %163 = vector.load %arg4[%c3_112, %c0_113, %c0_114] : memref<4x32x8xf32, #tpu.memory_space<vmem>>, vector<1x32x8xf32>
    %164 = vector.shape_cast %163 : vector<1x32x8xf32> to vector<32x8xf32>
    %cst_115 = arith.constant dense<0.000000e+00> : vector<8x8xf32>
    %165 = tpu.matmul %1, %164, %cst_115 {dimension_numbers = #tpu.dot_dimension_numbers<[1], [0], [0], [1], [0, 0, 1, 1], [], []>, precision = #tpu.contract_precision<fp32>} : vector<8x32xf32>, vector<32x8xf32>, vector<8x8xf32> -> vector<8x8xf32>
    %c3_116 = arith.constant 3 : index
    %c0_117 = arith.constant 0 : index
    %c0_118 = arith.constant 0 : index
    %166 = vector.load %arg5[%c3_116, %c0_117, %c0_118] : memref<4x1x8xf32, #tpu.memory_space<vmem>>, vector<1x1x8xf32>
    %167 = vector.shape_cast %166 : vector<1x1x8xf32> to vector<1x8xf32>
    %168 = vector.broadcast %167 : vector<1x8xf32> to vector<8x8xf32>
    %169 = arith.addf %165, %168 : vector<8x8xf32>
    %c3_119 = arith.constant 3 : index
    %c0_120 = arith.constant 0 : index
    %c0_121 = arith.constant 0 : index
    %170 = vector.load %arg6[%c3_119, %c0_120, %c0_121] : memref<4x32x8xf32, #tpu.memory_space<vmem>>, vector<1x32x8xf32>
    %171 = vector.shape_cast %170 : vector<1x32x8xf32> to vector<32x8xf32>
    %cst_122 = arith.constant dense<0.000000e+00> : vector<8x8xf32>
    %172 = tpu.matmul %1, %171, %cst_122 {dimension_numbers = #tpu.dot_dimension_numbers<[1], [0], [0], [1], [0, 0, 1, 1], [], []>, precision = #tpu.contract_precision<fp32>} : vector<8x32xf32>, vector<32x8xf32>, vector<8x8xf32> -> vector<8x8xf32>
    %c3_123 = arith.constant 3 : index
    %c0_124 = arith.constant 0 : index
    %c0_125 = arith.constant 0 : index
    %173 = vector.load %arg7[%c3_123, %c0_124, %c0_125] : memref<4x1x8xf32, #tpu.memory_space<vmem>>, vector<1x1x8xf32>
    %174 = vector.shape_cast %173 : vector<1x1x8xf32> to vector<1x8xf32>
    %175 = vector.broadcast %174 : vector<1x8xf32> to vector<8x8xf32>
    %176 = arith.addf %172, %175 : vector<8x8xf32>
    %c3_i32 = arith.constant 3 : i32
    %177 = vector.broadcast %c3_i32 : i32 to vector<1x4xi32>
    %178 = arith.cmpi eq, %10, %177 : vector<1x4xi32>
    %cst_126 = arith.constant 0.000000e+00 : f32
    %179 = vector.broadcast %cst_126 : f32 to vector<1x4xf32>
    %180 = arith.select %178, %9, %179 : vector<1x4xi1>, vector<1x4xf32>
    %cst_127 = arith.constant dense<0.000000e+00> : vector<1xf32>
    %181 = vector.multi_reduction <add>, %180, %cst_127 [1] : vector<1x4xf32> to vector<1xf32>
    %182 = vector.shape_cast %181 : vector<1xf32> to vector<1x1xf32>
    %cst_128 = arith.constant 1.000000e+00 : f32
    %183 = vector.broadcast %cst_128 : f32 to vector<1x1xf32>
    %184 = arith.addf %183, %182 : vector<1x1xf32>
    %185 = vector.broadcast %184 : vector<1x1xf32> to vector<8x8xf32>
    %186 = arith.mulf %162, %185 : vector<8x8xf32>
    %cst_129 = arith.constant dense<0.000000e+00> : vector<8x8xf32>
    %187 = tpu.matmul %186, %169, %cst_129 {dimension_numbers = #tpu.dot_dimension_numbers<[1], [1], [0], [0], [0, 0, 1, 0], [], []>, precision = #tpu.contract_precision<fp32>} : vector<8x8xf32>, vector<8x8xf32>, vector<8x8xf32> -> vector<8x8xf32>
    %cst_130 = arith.constant 0.353553385 : f32
    %188 = vector.broadcast %cst_130 : f32 to vector<8x8xf32>
    %189 = arith.mulf %187, %188 : vector<8x8xf32>
    %cst_131 = arith.constant dense<0xFF800000> : vector<8xf32>
    %190 = vector.multi_reduction <maximumf>, %189, %cst_131 [1] : vector<8x8xf32> to vector<8xf32>
    %191 = vector.shape_cast %190 : vector<8xf32> to vector<8x1xf32>
    %192 = vector.broadcast %191 : vector<8x1xf32> to vector<8x8xf32>
    %193 = arith.subf %189, %192 : vector<8x8xf32>
    %194 = math.exp %193 : vector<8x8xf32>
    %cst_132 = arith.constant dense<0.000000e+00> : vector<8xf32>
    %195 = vector.multi_reduction <add>, %194, %cst_132 [1] : vector<8x8xf32> to vector<8xf32>
    %196 = vector.shape_cast %195 : vector<8xf32> to vector<8x1xf32>
    %197 = vector.broadcast %196 : vector<8x1xf32> to vector<8x8xf32>
    %198 = arith.divf %194, %197 : vector<8x8xf32>
    %cst_133 = arith.constant dense<0.000000e+00> : vector<8x8xf32>
    %199 = tpu.matmul %198, %176, %cst_133 {dimension_numbers = #tpu.dot_dimension_numbers<[1], [0], [0], [1], [0, 0, 1, 1], [], []>, precision = #tpu.contract_precision<fp32>} : vector<8x8xf32>, vector<8x8xf32>, vector<8x8xf32> -> vector<8x8xf32>
    %c3_134 = arith.constant 3 : index
    %c0_135 = arith.constant 0 : index
    %c0_136 = arith.constant 0 : index
    %200 = vector.load %arg10[%c3_134, %c0_135, %c0_136] : memref<4x8x32xf32, #tpu.memory_space<vmem>>, vector<1x8x32xf32>
    %201 = vector.shape_cast %200 : vector<1x8x32xf32> to vector<8x32xf32>
    %cst_137 = arith.constant dense<0.000000e+00> : vector<8x32xf32>
    %202 = tpu.matmul %199, %201, %cst_137 {dimension_numbers = #tpu.dot_dimension_numbers<[1], [0], [0], [1], [0, 0, 1, 1], [], []>, precision = #tpu.contract_precision<fp32>} : vector<8x8xf32>, vector<8x32xf32>, vector<8x32xf32> -> vector<8x32xf32>
    %203 = arith.addf %155, %202 : vector<8x32xf32>
    %c0_138 = arith.constant 0 : index
    %c0_139 = arith.constant 0 : index
    %204 = vector.load %arg11[%c0_138, %c0_139] : memref<1x32xf32, #tpu.memory_space<vmem>>, vector<1x32xf32>
    %205 = vector.broadcast %204 : vector<1x32xf32> to vector<8x32xf32>
    %206 = arith.addf %203, %205 : vector<8x32xf32>
    %c0_140 = arith.constant 0 : index
    %c0_141 = arith.constant 0 : index
    %c0_142 = arith.constant 0 : index
    %207 = vector.load %arg12[%c0_140, %c0_141, %c0_142] : memref<1x8x32xf32, #tpu.memory_space<vmem>>, vector<1x8x32xf32>
    %208 = vector.shape_cast %207 : vector<1x8x32xf32> to vector<8x32xf32>
    %209 = vector.shape_cast %206 : vector<8x32xf32> to vector<1x8x32xf32>
    tpu.vector_store %arg12[%c0_140, %c0_141, %c0_142], %209 {strides = array<i32>} : memref<1x8x32xf32, #tpu.memory_space<vmem>>, vector<1x8x32xf32>,
    return
  }
  func.func @transform_0(%arg0: i32) -> (i32, i32, i32) {
    %c0_i32 = arith.constant 0 : i32
    %c0_i32_0 = arith.constant 0 : i32
    %c0_i32_1 = arith.constant 0 : i32
    return %arg0, %c0_i32, %c0_i32_0 : i32, i32, i32
  }
  func.func @transform_1(%arg0: i32) -> (i32, i32, i32) {
    %c0_i32 = arith.constant 0 : i32
    %c0_i32_0 = arith.constant 0 : i32
    %c0_i32_1 = arith.constant 0 : i32
    %c0_i32_2 = arith.constant 0 : i32
    return %c0_i32, %c0_i32_0, %c0_i32_1 : i32, i32, i32
  }
  func.func @transform_2(%arg0: i32) -> (i32, i32, i32) {
    %c0_i32 = arith.constant 0 : i32
    %c0_i32_0 = arith.constant 0 : i32
    %c0_i32_1 = arith.constant 0 : i32
    %c0_i32_2 = arith.constant 0 : i32
    return %c0_i32, %c0_i32_0, %c0_i32_1 : i32, i32, i32
  }
  func.func @transform_3(%arg0: i32) -> (i32, i32, i32) {
    %c0_i32 = arith.constant 0 : i32
    %c0_i32_0 = arith.constant 0 : i32
    %c0_i32_1 = arith.constant 0 : i32
    %c0_i32_2 = arith.constant 0 : i32
    return %c0_i32, %c0_i32_0, %c0_i32_1 : i32, i32, i32
  }
  func.func @transform_4(%arg0: i32) -> (i32, i32, i32) {
    %c0_i32 = arith.constant 0 : i32
    %c0_i32_0 = arith.constant 0 : i32
    %c0_i32_1 = arith.constant 0 : i32
    %c0_i32_2 = arith.constant 0 : i32
    return %c0_i32, %c0_i32_0, %c0_i32_1 : i32, i32, i32
  }
  func.func @transform_5(%arg0: i32) -> (i32, i32, i32) {
    %c0_i32 = arith.constant 0 : i32
    %c0_i32_0 = arith.constant 0 : i32
    %c0_i32_1 = arith.constant 0 : i32
    %c0_i32_2 = arith.constant 0 : i32
    return %c0_i32, %c0_i32_0, %c0_i32_1 : i32, i32, i32
  }
  func.func @transform_6(%arg0: i32) -> (i32, i32, i32) {
    %c0_i32 = arith.constant 0 : i32
    %c0_i32_0 = arith.constant 0 : i32
    %c0_i32_1 = arith.constant 0 : i32
    %c0_i32_2 = arith.constant 0 : i32
    return %c0_i32, %c0_i32_0, %c0_i32_1 : i32, i32, i32
  }
  func.func @transform_7(%arg0: i32) -> (i32, i32) {
    %c0_i32 = arith.constant 0 : i32
    %c0_i32_0 = arith.constant 0 : i32
    %c0_i32_1 = arith.constant 0 : i32
    return %c0_i32, %c0_i32_0 : i32, i32
  }
  func.func @transform_8(%arg0: i32) -> (i32, i32) {
    %c0_i32 = arith.constant 0 : i32
    %c0_i32_0 = arith.constant 0 : i32
    %c0_i32_1 = arith.constant 0 : i32
    return %c0_i32, %c0_i32_0 : i32, i32
  }
  func.func @transform_9(%arg0: i32) -> (i32, i32, i32) {
    %c0_i32 = arith.constant 0 : i32
    %c0_i32_0 = arith.constant 0 : i32
    %c0_i32_1 = arith.constant 0 : i32
    %c0_i32_2 = arith.constant 0 : i32
    return %c0_i32, %c0_i32_0, %c0_i32_1 : i32, i32, i32
  }
  func.func @transform_10(%arg0: i32) -> (i32, i32) {
    %c0_i32 = arith.constant 0 : i32
    %c0_i32_0 = arith.constant 0 : i32
    %c0_i32_1 = arith.constant 0 : i32
    return %c0_i32, %c0_i32_0 : i32, i32
  }
  func.func @transform_11(%arg0: i32) -> (i32, i32, i32) {
    %c0_i32 = arith.constant 0 : i32
    %c0_i32_0 = arith.constant 0 : i32
    %c0_i32_1 = arith.constant 0 : i32
    return %arg0, %c0_i32, %c0_i32_0 : i32, i32, i32
  }
}

</mosaic_0001>

<llo_original>
// kernel: tpu_custom_call.1
$region0: #{tpu_custom_call.1}
  #allocation0 [shape = 'u32[]', space=smem, size = 0x4, offset = 0x4, fixed_abs, tag = 'smem constant byte address 0x4 - core index']
  #allocation1 [shape = 'u32[72,128]{1,0:T(1,128)}', space=vmem, size = 0x9000, scoped, tag = 'internal scratch']
  %s0 = inlined_call_operand.vmem [shape: f32[2,8,32], index: 0, kind: input, shape index: {}]
  %s1 = inlined_call_operand.vmem [shape: f32[4,32,8], index: 1, kind: input, shape index: {}]
  %s2 = inlined_call_operand.vmem [shape: f32[4,1,8], index: 2, kind: input, shape index: {}]
  %s3 = inlined_call_operand.vmem [shape: f32[4,32,8], index: 3, kind: input, shape index: {}]
  %s4 = inlined_call_operand.vmem [shape: f32[4,1,8], index: 4, kind: input, shape index: {}]
  %s5 = inlined_call_operand.vmem [shape: f32[4,32,8], index: 5, kind: input, shape index: {}]
  %s6 = inlined_call_operand.vmem [shape: f32[4,1,8], index: 6, kind: input, shape index: {}]
  %s7 = inlined_call_operand.vmem [shape: f32[32,4], index: 7, kind: input, shape index: {}]
  %s8 = inlined_call_operand.vmem [shape: f32[1,4], index: 8, kind: input, shape index: {}]
  %s9 = inlined_call_operand.vmem [shape: f32[4,8,32], index: 9, kind: input, shape index: {}]
  %s10 = inlined_call_operand.vmem [shape: f32[1,32], index: 10, kind: input, shape index: {}]
  %s11 = inlined_call_operand.hbm [shape: f32[2,8,32], index: 11, kind: output, shape index: {}]
  %s12 = sld [smem:[#allocation0]]
  $region77: #{tpu_custom_call.1} parent=0
    _
  %s14 = ssub.s32 1, %s12
  %s15 = scalar_select 0, %s14, %s12
  $region1: #{tpu_custom_call.1} parent=0
    #allocation2 [shape = 'u8[8192]{0}', space=vmem, size = 0x2000, scoped, tag = 'output window, operand 0']
    #allocation3 [shape = 's32[2]{0}', space=sflag, size = 0x8, scoped, tag = 'scoped memory for tpu_custom_call.1']
    %16 = vsyncpa [#allocation3], 0
    %s17 = scalar_lea.sflag [#allocation3], 1
    %18 = vsyncpa %s17, 0
    loop: start=0, step=1, limit=4
    $region2: #{tpu_custom_call.1} parent=1 // loop_pre_header
      _
    $region3: #{tpu_custom_call.1} parent=1 // loop_header
      %s20 = sphi 0, %s24
      %p21 = scmp.ge.s32.totalorder %s20, 4
      %s30 = sphi 0, %s32
      %s33 = sphi 0, %s30
      %s34 = sphi 0, %s33
      %s50 = sphi 0, %s34
      %s54 = sphi 0, %s54
      %s56 = sphi 0, %s54
      %s57 = sphi 0, %s56
      %s71 = sphi 0, %s57
      %s75 = sphi 0, %s75
      %s77 = sphi 0, %s75
      %s78 = sphi 0, %s77
      %s92 = sphi 0, %s78
      %s96 = sphi 0, %s96
      %s98 = sphi 0, %s96
      %s99 = sphi 0, %s98
      %s113 = sphi 0, %s99
      %s117 = sphi 0, %s117
      %s119 = sphi 0, %s117
      %s120 = sphi 0, %s119
      %s134 = sphi 0, %s120
      %s138 = sphi 0, %s138
      %s140 = sphi 0, %s138
      %s141 = sphi 0, %s140
      %s155 = sphi 0, %s141
      %s159 = sphi 0, %s159
      %s161 = sphi 0, %s159
      %s162 = sphi 0, %s161
      %s176 = sphi 0, %s162
      %s180 = sphi 0, %s180
      %s182 = sphi 0, %s180
      %s183 = sphi 0, %s182
      %s197 = sphi 0, %s183
      %s201 = sphi 0, %s201
      %s203 = sphi 0, %s201
      %s204 = sphi 0, %s203
      %s218 = sphi 0, %s204
      %s222 = sphi 0, %s222
      %s224 = sphi 0, %s222
      %s225 = sphi 0, %s224
      %s239 = sphi 0, %s225
      %s243 = sphi 0, %s243
      %s245 = sphi 0, %s243
      %s246 = sphi 0, %s245
      %s260 = sphi 0, %s246
      %s266 = sphi 0, %s268
      %s269 = sphi 0, %s266
      %s270 = sphi 0, %s269
      %s286 = sphi 0, %s270
    $region4: #{tpu_custom_call.1} parent=1 // loop_header_branch
      %23 = sbr.rel (%p21) target = $region8
    $region5: #{tpu_custom_call.1} parent=1 // loop_body
      %s25 = ssub.s32 %s20, 1
      %s26 = ssub.s32 %s20, 2
      %s27 = sadd.s32 %s20, 1
      %s28 = ssub.s32 %s20, %s27
      %p29 = scmp.eq.s32.totalorder %s28, 0
      %s31 = sadd.s32 %s30, 1
      %s32 = scalar_select %p29, %s30, %s31
      %p35 = pneg %p29
      %p36 = scmp.eq.s32.totalorder %s20, 1
      %p37 = por %p35, %p36
      %p38 = scmp.ne.s32.totalorder %s30, %s33
      %p39 = scmp.eq.s32.totalorder %s20, 0
      %p40 = por %p38, %p39
      %p41 = scmp.ne.s32.totalorder %s30, %s33
      %p42 = scmp.eq.s32.totalorder %s25, 1
      %p43 = por %p41, %p42
      %p44 = scmp.ne.s32.totalorder %s33, %s34
      %p45 = scmp.eq.s32.totalorder %s25, 0
      %p46 = por %p44, %p45
      %p47 = scmp.ne.s32.totalorder %s33, %s34
      %p48 = scmp.eq.s32.totalorder %s26, 1
      %p49 = por %p47, %p48
      %p51 = scmp.ne.s32.totalorder %s34, %s50
      %p52 = scmp.eq.s32.totalorder %s26, 0
      %p53 = por %p51, %p52
      %s55 = sadd.s32 %s54, 1
      %p58 = scmp.eq.s32.totalorder %s20, 1
      %p59 = scmp.ne.s32.totalorder %s54, %s56
      %p60 = scmp.eq.s32.totalorder %s20, 0
      %p61 = por %p59, %p60
      %p62 = scmp.ne.s32.totalorder %s54, %s56
      %p63 = scmp.eq.s32.totalorder %s25, 1
      %p64 = por %p62, %p63
      %p65 = scmp.ne.s32.totalorder %s56, %s57
      %p66 = scmp.eq.s32.totalorder %s25, 0
      %p67 = por %p65, %p66
      %p68 = scmp.ne.s32.totalorder %s56, %s57
      %p69 = scmp.eq.s32.totalorder %s26, 1
      %p70 = por %p68, %p69
      %p72 = scmp.ne.s32.totalorder %s57, %s71
      %p73 = scmp.eq.s32.totalorder %s26, 0
      %p74 = por %p72, %p73
      %s76 = sadd.s32 %s75, 1
      %p79 = scmp.eq.s32.totalorder %s20, 1
      %p80 = scmp.ne.s32.totalorder %s75, %s77
      %p81 = scmp.eq.s32.totalorder %s20, 0
      %p82 = por %p80, %p81
      %p83 = scmp.ne.s32.totalorder %s75, %s77
      %p84 = scmp.eq.s32.totalorder %s25, 1
      %p85 = por %p83, %p84
      %p86 = scmp.ne.s32.totalorder %s77, %s78
      %p87 = scmp.eq.s32.totalorder %s25, 0
      %p88 = por %p86, %p87
      %p89 = scmp.ne.s32.totalorder %s77, %s78
      %p90 = scmp.eq.s32.totalorder %s26, 1
      %p91 = por %p89, %p90
      %p93 = scmp.ne.s32.totalorder %s78, %s92
      %p94 = scmp.eq.s32.totalorder %s26, 0
      %p95 = por %p93, %p94
      %s97 = sadd.s32 %s96, 1
      %p100 = scmp.eq.s32.totalorder %s20, 1
      %p101 = scmp.ne.s32.totalorder %s96, %s98
      %p102 = scmp.eq.s32.totalorder %s20, 0
      %p103 = por %p101, %p102
      %p104 = scmp.ne.s32.totalorder %s96, %s98
      %p105 = scmp.eq.s32.totalorder %s25, 1
      %p106 = por %p104, %p105
      %p107 = scmp.ne.s32.totalorder %s98, %s99
      %p108 = scmp.eq.s32.totalorder %s25, 0
      %p109 = por %p107, %p108
      %p110 = scmp.ne.s32.totalorder %s98, %s99
      %p111 = scmp.eq.s32.totalorder %s26, 1
      %p112 = por %p110, %p111
      %p114 = scmp.ne.s32.totalorder %s99, %s113
      %p115 = scmp.eq.s32.totalorder %s26, 0
      %p116 = por %p114, %p115
      %s118 = sadd.s32 %s117, 1
      %p121 = scmp.eq.s32.totalorder %s20, 1
      %p122 = scmp.ne.s32.totalorder %s117, %s119
      %p123 = scmp.eq.s32.totalorder %s20, 0
      %p124 = por %p122, %p123
      %p125 = scmp.ne.s32.totalorder %s117, %s119
      %p126 = scmp.eq.s32.totalorder %s25, 1
      %p127 = por %p125, %p126
      %p128 = scmp.ne.s32.totalorder %s119, %s120
      %p129 = scmp.eq.s32.totalorder %s25, 0
      %p130 = por %p128, %p129
      %p131 = scmp.ne.s32.totalorder %s119, %s120
      %p132 = scmp.eq.s32.totalorder %s26, 1
      %p133 = por %p131, %p132
      %p135 = scmp.ne.s32.totalorder %s120, %s134
      %p136 = scmp.eq.s32.totalorder %s26, 0
      %p137 = por %p135, %p136
      %s139 = sadd.s32 %s138, 1
      %p142 = scmp.eq.s32.totalorder %s20, 1
      %p143 = scmp.ne.s32.totalorder %s138, %s140
      %p144 = scmp.eq.s32.totalorder %s20, 0
      %p145 = por %p143, %p144
      %p146 = scmp.ne.s32.totalorder %s138, %s140
      %p147 = scmp.eq.s32.totalorder %s25, 1
      %p148 = por %p146, %p147
      %p149 = scmp.ne.s32.totalorder %s140, %s141
      %p150 = scmp.eq.s32.totalorder %s25, 0
      %p151 = por %p149, %p150
      %p152 = scmp.ne.s32.totalorder %s140, %s141
      %p153 = scmp.eq.s32.totalorder %s26, 1
      %p154 = por %p152, %p153
      %p156 = scmp.ne.s32.totalorder %s141, %s155
      %p157 = scmp.eq.s32.totalorder %s26, 0
      %p158 = por %p156, %p157
      %s160 = sadd.s32 %s159, 1
      %p163 = scmp.eq.s32.totalorder %s20, 1
      %p164 = scmp.ne.s32.totalorder %s159, %s161
      %p165 = scmp.eq.s32.totalorder %s20, 0
      %p166 = por %p164, %p165
      %p167 = scmp.ne.s32.totalorder %s159, %s161
      %p168 = scmp.eq.s32.totalorder %s25, 1
      %p169 = por %p167, %p168
      %p170 = scmp.ne.s32.totalorder %s161, %s162
      %p171 = scmp.eq.s32.totalorder %s25, 0
      %p172 = por %p170, %p171
      %p173 = scmp.ne.s32.totalorder %s161, %s162
      %p174 = scmp.eq.s32.totalorder %s26, 1
      %p175 = por %p173, %p174
      %p177 = scmp.ne.s32.totalorder %s162, %s176
      %p178 = scmp.eq.s32.totalorder %s26, 0
      %p179 = por %p177, %p178
      %s181 = sadd.s32 %s180, 1
      %p184 = scmp.eq.s32.totalorder %s20, 1
      %p185 = scmp.ne.s32.totalorder %s180, %s182
      %p186 = scmp.eq.s32.totalorder %s20, 0
      %p187 = por %p185, %p186
      %p188 = scmp.ne.s32.totalorder %s180, %s182
      %p189 = scmp.eq.s32.totalorder %s25, 1
      %p190 = por %p188, %p189
      %p191 = scmp.ne.s32.totalorder %s182, %s183
      %p192 = scmp.eq.s32.totalorder %s25, 0
      %p193 = por %p191, %p192
      %p194 = scmp.ne.s32.totalorder %s182, %s183
      %p195 = scmp.eq.s32.totalorder %s26, 1
      %p196 = por %p194, %p195
      %p198 = scmp.ne.s32.totalorder %s183, %s197
      %p199 = scmp.eq.s32.totalorder %s26, 0
      %p200 = por %p198, %p199
      %s202 = sadd.s32 %s201, 1
      %p205 = scmp.eq.s32.totalorder %s20, 1
      %p206 = scmp.ne.s32.totalorder %s201, %s203
      %p207 = scmp.eq.s32.totalorder %s20, 0
      %p208 = por %p206, %p207
      %p209 = scmp.ne.s32.totalorder %s201, %s203
      %p210 = scmp.eq.s32.totalorder %s25, 1
      %p211 = por %p209, %p210
      %p212 = scmp.ne.s32.totalorder %s203, %s204
      %p213 = scmp.eq.s32.totalorder %s25, 0
      %p214 = por %p212, %p213
      %p215 = scmp.ne.s32.totalorder %s203, %s204
      %p216 = scmp.eq.s32.totalorder %s26, 1
      %p217 = por %p215, %p216
      %p219 = scmp.ne.s32.totalorder %s204, %s218
      %p220 = scmp.eq.s32.totalorder %s26, 0
      %p221 = por %p219, %p220
      %s223 = sadd.s32 %s222, 1
      %p226 = scmp.eq.s32.totalorder %s20, 1
      %p227 = scmp.ne.s32.totalorder %s222, %s224
      %p228 = scmp.eq.s32.totalorder %s20, 0
      %p229 = por %p227, %p228
      %p230 = scmp.ne.s32.totalorder %s222, %s224
      %p231 = scmp.eq.s32.totalorder %s25, 1
      %p232 = por %p230, %p231
      %p233 = scmp.ne.s32.totalorder %s224, %s225
      %p234 = scmp.eq.s32.totalorder %s25, 0
      %p235 = por %p233, %p234
      %p236 = scmp.ne.s32.totalorder %s224, %s225
      %p237 = scmp.eq.s32.totalorder %s26, 1
      %p238 = por %p236, %p237
      %p240 = scmp.ne.s32.totalorder %s225, %s239
      %p241 = scmp.eq.s32.totalorder %s26, 0
      %p242 = por %p240, %p241
      %s244 = sadd.s32 %s243, 1
      %p247 = scmp.eq.s32.totalorder %s20, 1
      %p248 = scmp.ne.s32.totalorder %s243, %s245
      %p249 = scmp.eq.s32.totalorder %s20, 0
      %p250 = por %p248, %p249
      %p251 = scmp.ne.s32.totalorder %s243, %s245
      %p252 = scmp.eq.s32.totalorder %s25, 1
      %p253 = por %p251, %p252
      %p254 = scmp.ne.s32.totalorder %s245, %s246
      %p255 = scmp.eq.s32.totalorder %s25, 0
      %p256 = por %p254, %p255
      %p257 = scmp.ne.s32.totalorder %s245, %s246
      %p258 = scmp.eq.s32.totalorder %s26, 1
      %p259 = por %p257, %p258
      %p261 = scmp.ne.s32.totalorder %s246, %s260
      %p262 = scmp.eq.s32.totalorder %s26, 0
      %p263 = por %p261, %p262
      %s264 = ssub.s32 %s20, %s27
      %p265 = scmp.eq.s32.totalorder %s264, 0
      %s267 = sadd.s32 %s266, 1
      %s268 = scalar_select %p265, %s266, %s267
      %p271 = pneg %p265
      %p272 = scmp.eq.s32.totalorder %s20, 1
      %p273 = por %p271, %p272
      %p274 = scmp.ne.s32.totalorder %s266, %s269
      %p275 = scmp.eq.s32.totalorder %s20, 0
      %p276 = por %p274, %p275
      %p277 = scmp.ne.s32.totalorder %s266, %s269
      %p278 = scmp.eq.s32.totalorder %s25, 1
      %p279 = por %p277, %p278
      %p280 = scmp.ne.s32.totalorder %s269, %s270
      %p281 = scmp.eq.s32.totalorder %s25, 0
      %p282 = por %p280, %p281
      %p283 = scmp.ne.s32.totalorder %s269, %s270
      %p284 = scmp.eq.s32.totalorder %s26, 1
      %p285 = por %p283, %p284
      %p287 = scmp.ne.s32.totalorder %s270, %s286
      %p288 = scmp.eq.s32.totalorder %s26, 0
      %p289 = por %p287, %p288
      %p290 = scmp.le.s32.totalorder 1, %s20
      %p291 = scmp.lt.s32.totalorder %s20, 3
      %p292 = pnand %p290, %p291
      %p293 = pneg %p292
      // Predicated region
      $region9: #{tpu_custom_call.1} parent=5 // pred_check
        _
      $region10: #{tpu_custom_call.1} parent=5 // pred_check_branch
        %295 = sbr.rel (%p292) target = $region12
      $region11: #{tpu_custom_call.1} parent=5 // pred_region
        %s296 = ssub.s32 %s20, 1
        // Predicated region
        $region13: #{tpu_custom_call.1} parent=11 // pred_check
          %p297 = pneg %p67
        $region14: #{tpu_custom_call.1} parent=11 // pred_check_branch
          %299 = sbr.rel (%p297) target = $region16
        $region15: #{tpu_custom_call.1} parent=11 // pred_region
          _
        $region16: #{tpu_custom_call.1} parent=11 // pred_fallthru
          _
        // Predicated region
        $region17: #{tpu_custom_call.1} parent=11 // pred_check
          %p300 = pneg %p88
        $region18: #{tpu_custom_call.1} parent=11 // pred_check_branch
          %302 = sbr.rel (%p300) target = $region20
        $region19: #{tpu_custom_call.1} parent=11 // pred_region
          _
        $region20: #{tpu_custom_call.1} parent=11 // pred_fallthru
          _
        // Predicated region
        $region21: #{tpu_custom_call.1} parent=11 // pred_check
          %p303 = pneg %p109
        $region22: #{tpu_custom_call.1} parent=11 // pred_check_branch
          %305 = sbr.rel (%p303) target = $region24
        $region23: #{tpu_custom_call.1} parent=11 // pred_region
          _
        $region24: #{tpu_custom_call.1} parent=11 // pred_fallthru
          _
        // Predicated region
        $region25: #{tpu_custom_call.1} parent=11 // pred_check
          %p306 = pneg %p130
        $region26: #{tpu_custom_call.1} parent=11 // pred_check_branch
          %308 = sbr.rel (%p306) target = $region28
        $region27: #{tpu_custom_call.1} parent=11 // pred_region
          _
        $region28: #{tpu_custom_call.1} parent=11 // pred_fallthru
          _
        // Predicated region
        $region29: #{tpu_custom_call.1} parent=11 // pred_check
          %p309 = pneg %p151
        $region30: #{tpu_custom_call.1} parent=11 // pred_check_branch
          %311 = sbr.rel (%p309) target = $region32
        $region31: #{tpu_custom_call.1} parent=11 // pred_region
          _
        $region32: #{tpu_custom_call.1} parent=11 // pred_fallthru
          _
        // Predicated region
        $region33: #{tpu_custom_call.1} parent=11 // pred_check
          %p312 = pneg %p172
        $region34: #{tpu_custom_call.1} parent=11 // pred_check_branch
          %314 = sbr.rel (%p312) target = $region36
        $region35: #{tpu_custom_call.1} parent=11 // pred_region
          _
        $region36: #{tpu_custom_call.1} parent=11 // pred_fallthru
          _
        // Predicated region
        $region37: #{tpu_custom_call.1} parent=11 // pred_check
          %p315 = pneg %p193
        $region38: #{tpu_custom_call.1} parent=11 // pred_check_branch
          %317 = sbr.rel (%p315) target = $region40
        $region39: #{tpu_custom_call.1} parent=11 // pred_region
          _
        $region40: #{tpu_custom_call.1} parent=11 // pred_fallthru
          _
        // Predicated region
        $region41: #{tpu_custom_call.1} parent=11 // pred_check
          %p318 = pneg %p214
        $region42: #{tpu_custom_call.1} parent=11 // pred_check_branch
          %320 = sbr.rel (%p318) target = $region44
        $region43: #{tpu_custom_call.1} parent=11 // pred_region
          _
        $region44: #{tpu_custom_call.1} parent=11 // pred_fallthru
          _
        // Predicated region
        $region45: #{tpu_custom_call.1} parent=11 // pred_check
          %p321 = pneg %p235
        $region46: #{tpu_custom_call.1} parent=11 // pred_check_branch
          %323 = sbr.rel (%p321) target = $region48
        $region47: #{tpu_custom_call.1} parent=11 // pred_region
          _
        $region48: #{tpu_custom_call.1} parent=11 // pred_fallthru
          _
        // Predicated region
        $region49: #{tpu_custom_call.1} parent=11 // pred_check
          %p324 = pneg %p256
        $region50: #{tpu_custom_call.1} parent=11 // pred_check_branch
          %326 = sbr.rel (%p324) target = $region52
        $region51: #{tpu_custom_call.1} parent=11 // pred_region
          _
        $region52: #{tpu_custom_call.1} parent=11 // pred_fallthru
          _
      $region12: #{tpu_custom_call.1} parent=5 // pred_fallthru
        _
      %p327 = scmp.lt.s32.totalorder %s20, 2
      // Predicated region
      $region53: #{tpu_custom_call.1} parent=5 // pred_check
        %p328 = pneg %p327
      $region54: #{tpu_custom_call.1} parent=5 // pred_check_branch
        %330 = sbr.rel (%p328) target = $region56
      $region55: #{tpu_custom_call.1} parent=5 // pred_region
        // Predicated region
        $region57: #{tpu_custom_call.1} parent=55 // pred_check
          %p331 = pneg %p40
        $region58: #{tpu_custom_call.1} parent=55 // pred_check_branch
          %333 = sbr.rel (%p331) target = $region60
        $region59: #{tpu_custom_call.1} parent=55 // pred_region
          %p334 = scmp.lt.s32.totalorder %s20, 1
          %s335 = scalar_select %p334, %s20, 1
          %s336 = smul.addr %s335, 8
          %s337 = scalar_lea.vmem %s0, %s336
        $region60: #{tpu_custom_call.1} parent=55 // pred_fallthru
          _
      $region56: #{tpu_custom_call.1} parent=5 // pred_fallthru
        _
      %p338 = scmp.le.s32.totalorder 1, %s20
      %p339 = scmp.lt.s32.totalorder %s20, 3
      %p340 = pnand %p338, %p339
      %p341 = pneg %p340
      // Predicated region
      $region61: #{tpu_custom_call.1} parent=5 // pred_check
        _
      $region62: #{tpu_custom_call.1} parent=5 // pred_check_branch
        %343 = sbr.rel (%p340) target = $region64
      $region63: #{tpu_custom_call.1} parent=5 // pred_region
        %s344 = ssub.s32 %s20, 1
        %p345 = scmp.lt.s32.totalorder %s25, 1
        %s346 = scalar_select %p345, %s25, 1
        %s347 = smul.addr %s346, 8
        %s348 = scalar_lea.vmem %s0, %s347
        %p349 = pneg %p46
        %p350 = pneg %p43
        %p351 = pneg %p67
        %p352 = pneg %p64
        %p353 = pneg %p88
        %p354 = pneg %p85
        %p355 = pneg %p109
        %p356 = pneg %p106
        %p357 = pneg %p130
        %p358 = pneg %p127
        %p359 = pneg %p151
        %p360 = pneg %p148
        %p361 = pneg %p172
        %p362 = pneg %p169
        %p363 = pneg %p193
        %p364 = pneg %p190
        %p365 = pneg %p214
        %p366 = pneg %p211
        %p367 = pneg %p235
        %p368 = pneg %p232
        %p369 = pneg %p256
        %p370 = pneg %p253
        %p371 = pneg %p282
        %p372 = pneg %p279
        %s373 = sand.u32 %s269, 1
        %s374 = scalar_lea.sflag [#allocation3], %s373
        %s375 = sand.u32 %s269, 1
        %s376 = smul.addr %s375, 8
        %s377 = scalar_lea.vmem [#allocation2], %s376
        %p378 = scmp.lt.s32.totalorder %s25, 1
        %s379 = scalar_select %p378, %s25, 1
        %s380 = smul.addr %s379, 8
        %s381 = scalar_lea.vmem %s0, %s380
        %v382 = vld [vmem:[%s381] sm:$0xff]
        %vm383 = vcmask 261120
        %v384 = vsel %vm383, %v382, 0.0
        %v385 = vrot.slane %v384, 4
        %v386 = vadd.f32 %v384, %v385
        %v387 = vrot.slane %v386, 2
        %v388 = vadd.f32 %v386, %v387
        %v389 = vrot.slane %v388, 1
        %v390 = vadd.f32 %v388, %v389
        %v391 = vrcp.pop 8.0
        %v392 = vmul.f32 8.0, %v391
        %v393 = vsub.f32 1.0, %v392
        %v394 = vmul.f32 %v391, %v393
        %v395 = vadd.f32 %v391, %v394
        %vm396 = vweird.f32 %v391
        %v397 = vsel %vm396, %v391, %v395
        %v398 = vmul.f32 %v390, %v397
        %v399 = vld [vmem:[%s7] sm:$0xff]
        %v400 = vld [vmem:[%s7 + $0x8] sm:$0xff]
        %v401 = vld [vmem:[%s7 + $0x10] sm:$0xff]
        %v402 = vld [vmem:[%s7 + $0x18] sm:$0xff]
        %v403 = vld [vmem:[%s8] sm:$0x1]
        %v405 = vsel %vm383, %v398, 0
        %407 = vmatpush.msra.mxu0 0.0
        %408 = vmatpush.msra.mxu0 0.0
        %409 = vmatpush.msra.mxu0 0.0
        %410 = vmatpush.msra.mxu0 0.0
        %411 = vmatpush.msra.mxu0 0.0
        %412 = vmatpush.msra.mxu0 0.0
        %413 = vmatpush.msra.mxu0 0.0
        %414 = vmatpush.msra.mxu0 0.0
        %415 = vmatpush.msra.mxu0 0.0
        %416 = vmatpush.msra.mxu0 0.0
        %417 = vmatpush.msra.mxu0 0.0
        %418 = vmatpush.msra.mxu0 0.0
        %v419 = vand.u32 %v402, 4294901760
        %420 = vmatpush.msra.mxu0 %v419
        %v421 = vand.u32 %v401, 4294901760
        %422 = vmatpush.msra.mxu0 %v421
        %v423 = vand.u32 %v400, 4294901760
        %424 = vmatpush.msra.mxu0 %v423
        %v425 = vand.u32 %v399, 4294901760
        %426 = vmatpush.msra.mxu0 %v425
        %v427 = vand.u32 %v405, 4294901760
        %v428 = vsub.f32 %v405, %v427
        %v429 = vand.u32 %v428, 4294901760
        %v430 = vsub.f32 %v428, %v429
        %v431 = vand.u32 %v430, 4294901760
        %432 = vmatmul.f32.gmra.mxu0 %v431
        %v433 = vpop.f32.mrf.mxu0
        %v434 = vadd.f32 %v403, %v433
        %435 = vdwg.mxu0
        %436 = vmatpush.msra.mxu0 0.0
        %437 = vmatpush.msra.mxu0 0.0
        %438 = vmatpush.msra.mxu0 0.0
        %439 = vmatpush.msra.mxu0 0.0
        %440 = vmatpush.msra.mxu0 0.0
        %441 = vmatpush.msra.mxu0 0.0
        %442 = vmatpush.msra.mxu0 0.0
        %443 = vmatpush.msra.mxu0 0.0
        %444 = vmatpush.msra.mxu0 0.0
        %445 = vmatpush.msra.mxu0 0.0
        %446 = vmatpush.msra.mxu0 0.0
        %447 = vmatpush.msra.mxu0 0.0
        %v448 = vand.u32 %v402, 4294901760
        %v449 = vsub.f32 %v402, %v448
        %v450 = vand.u32 %v449, 4294901760
        %v451 = vsub.f32 %v449, %v450
        %v452 = vand.u32 %v451, 4294901760
        %453 = vmatpush.msra.mxu0 %v452
        %v454 = vand.u32 %v401, 4294901760
        %v455 = vsub.f32 %v401, %v454
        %v456 = vand.u32 %v455, 4294901760
        %v457 = vsub.f32 %v455, %v456
        %v458 = vand.u32 %v457, 4294901760
        %459 = vmatpush.msra.mxu0 %v458
        %v460 = vand.u32 %v400, 4294901760
        %v461 = vsub.f32 %v400, %v460
        %v462 = vand.u32 %v461, 4294901760
        %v463 = vsub.f32 %v461, %v462
        %v464 = vand.u32 %v463, 4294901760
        %465 = vmatpush.msra.mxu0 %v464
        %v466 = vand.u32 %v399, 4294901760
        %v467 = vsub.f32 %v399, %v466
        %v468 = vand.u32 %v467, 4294901760
        %v469 = vsub.f32 %v467, %v468
        %v470 = vand.u32 %v469, 4294901760
        %471 = vmatpush.msra.mxu0 %v470
        %v472 = vand.u32 %v405, 4294901760
        %473 = vmatmul.f32.gmra.mxu0 %v472
        %v474 = vpop.f32.mrf.mxu0
        %v475 = vadd.f32 %v434, %v474
        %476 = vdwg.mxu0
        %477 = vmatpush.msra.mxu0 0.0
        %478 = vmatpush.msra.mxu0 0.0
        %479 = vmatpush.msra.mxu0 0.0
        %480 = vmatpush.msra.mxu0 0.0
        %481 = vmatpush.msra.mxu0 0.0
        %482 = vmatpush.msra.mxu0 0.0
        %483 = vmatpush.msra.mxu0 0.0
        %484 = vmatpush.msra.mxu0 0.0
        %485 = vmatpush.msra.mxu0 0.0
        %486 = vmatpush.msra.mxu0 0.0
        %487 = vmatpush.msra.mxu0 0.0
        %488 = vmatpush.msra.mxu0 0.0
        %v489 = vand.u32 %v402, 4294901760
        %v490 = vsub.f32 %v402, %v489
        %491 = vmatpush.msra.mxu0 %v490
        %v492 = vand.u32 %v401, 4294901760
        %v493 = vsub.f32 %v401, %v492
        %494 = vmatpush.msra.mxu0 %v493
        %v495 = vand.u32 %v400, 4294901760
        %v496 = vsub.f32 %v400, %v495
        %497 = vmatpush.msra.mxu0 %v496
        %v498 = vand.u32 %v399, 4294901760
        %v499 = vsub.f32 %v399, %v498
        %500 = vmatpush.msra.mxu0 %v499
        %v501 = vand.u32 %v405, 4294901760
        %v502 = vsub.f32 %v405, %v501
        %503 = vmatmul.f32.gmra.mxu0 %v502
        %v504 = vpop.f32.mrf.mxu0
        %v505 = vadd.f32 %v475, %v504
        %506 = vdwg.mxu0
        %507 = vmatpush.msra.mxu0 0.0
        %508 = vmatpush.msra.mxu0 0.0
        %509 = vmatpush.msra.mxu0 0.0
        %510 = vmatpush.msra.mxu0 0.0
        %511 = vmatpush.msra.mxu0 0.0
        %512 = vmatpush.msra.mxu0 0.0
        %513 = vmatpush.msra.mxu0 0.0
        %514 = vmatpush.msra.mxu0 0.0
        %515 = vmatpush.msra.mxu0 0.0
        %516 = vmatpush.msra.mxu0 0.0
        %517 = vmatpush.msra.mxu0 0.0
        %518 = vmatpush.msra.mxu0 0.0
        %v519 = vand.u32 %v402, 4294901760
        %520 = vmatpush.msra.mxu0 %v519
        %v521 = vand.u32 %v401, 4294901760
        %522 = vmatpush.msra.mxu0 %v521
        %v523 = vand.u32 %v400, 4294901760
        %524 = vmatpush.msra.mxu0 %v523
        %v525 = vand.u32 %v399, 4294901760
        %526 = vmatpush.msra.mxu0 %v525
        %v527 = vand.u32 %v405, 4294901760
        %v528 = vsub.f32 %v405, %v527
        %v529 = vand.u32 %v528, 4294901760
        %530 = vmatmul.f32.gmra.mxu0 %v529
        %v531 = vpop.f32.mrf.mxu0
        %v532 = vadd.f32 %v505, %v531
        %533 = vdwg.mxu0
        %534 = vmatpush.msra.mxu0 0.0
        %535 = vmatpush.msra.mxu0 0.0
        %536 = vmatpush.msra.mxu0 0.0
        %537 = vmatpush.msra.mxu0 0.0
        %538 = vmatpush.msra.mxu0 0.0
        %539 = vmatpush.msra.mxu0 0.0
        %540 = vmatpush.msra.mxu0 0.0
        %541 = vmatpush.msra.mxu0 0.0
        %542 = vmatpush.msra.mxu0 0.0
        %543 = vmatpush.msra.mxu0 0.0
        %544 = vmatpush.msra.mxu0 0.0
        %545 = vmatpush.msra.mxu0 0.0
        %v546 = vand.u32 %v402, 4294901760
        %v547 = vsub.f32 %v402, %v546
        %v548 = vand.u32 %v547, 4294901760
        %549 = vmatpush.msra.mxu0 %v548
        %v550 = vand.u32 %v401, 4294901760
        %v551 = vsub.f32 %v401, %v550
        %v552 = vand.u32 %v551, 4294901760
        %553 = vmatpush.msra.mxu0 %v552
        %v554 = vand.u32 %v400, 4294901760
        %v555 = vsub.f32 %v400, %v554
        %v556 = vand.u32 %v555, 4294901760
        %557 = vmatpush.msra.mxu0 %v556
        %v558 = vand.u32 %v399, 4294901760
        %v559 = vsub.f32 %v399, %v558
        %v560 = vand.u32 %v559, 4294901760
        %561 = vmatpush.msra.mxu0 %v560
        %v562 = vand.u32 %v405, 4294901760
        %563 = vmatmul.f32.gmra.mxu0 %v562
        %v564 = vpop.f32.mrf.mxu0
        %v565 = vadd.f32 %v532, %v564
        %566 = vdwg.mxu0
        %567 = vmatpush.msra.mxu0 0.0
        %568 = vmatpush.msra.mxu0 0.0
        %569 = vmatpush.msra.mxu0 0.0
        %570 = vmatpush.msra.mxu0 0.0
        %571 = vmatpush.msra.mxu0 0.0
        %572 = vmatpush.msra.mxu0 0.0
        %573 = vmatpush.msra.mxu0 0.0
        %574 = vmatpush.msra.mxu0 0.0
        %575 = vmatpush.msra.mxu0 0.0
        %576 = vmatpush.msra.mxu0 0.0
        %577 = vmatpush.msra.mxu0 0.0
        %578 = vmatpush.msra.mxu0 0.0
        %v579 = vand.u32 %v402, 4294901760
        %580 = vmatpush.msra.mxu0 %v579
        %v581 = vand.u32 %v401, 4294901760
        %582 = vmatpush.msra.mxu0 %v581
        %v583 = vand.u32 %v400, 4294901760
        %584 = vmatpush.msra.mxu0 %v583
        %v585 = vand.u32 %v399, 4294901760
        %586 = vmatpush.msra.mxu0 %v585
        %v587 = vand.u32 %v405, 4294901760
        %588 = vmatmul.f32.gmra.mxu0 %v587
        %v589 = vpop.f32.mrf.mxu0
        %v590 = vadd.f32 %v565, %v589
        %591 = vdwg.mxu0
        %v592 = vlaneseq
        %v593 = vand.u32 %v592, 127
        %v594 = vld [vmem:[%s1] sm:$0xff]
        %v595 = vld [vmem:[%s1 + $0x8] sm:$0xff]
        %v596 = vld [vmem:[%s1 + $0x10] sm:$0xff]
        %v597 = vld [vmem:[%s1 + $0x18] sm:$0xff]
        %v598 = vld [vmem:[%s2] sm:$0x1]
        %v600 = vperm.slane %v598, 0
        %v603 = vsel %vm383, %v382, 0
        %605 = vmatpush.msra.mxu0 0.0
        %606 = vmatpush.msra.mxu0 0.0
        %607 = vmatpush.msra.mxu0 0.0
        %608 = vmatpush.msra.mxu0 0.0
        %609 = vmatpush.msra.mxu0 0.0
        %610 = vmatpush.msra.mxu0 0.0
        %611 = vmatpush.msra.mxu0 0.0
        %612 = vmatpush.msra.mxu0 0.0
        %613 = vmatpush.msra.mxu0 0.0
        %614 = vmatpush.msra.mxu0 0.0
        %615 = vmatpush.msra.mxu0 0.0
        %616 = vmatpush.msra.mxu0 0.0
        %v617 = vand.u32 %v597, 4294901760
        %618 = vmatpush.msra.mxu0 %v617
        %v619 = vand.u32 %v596, 4294901760
        %620 = vmatpush.msra.mxu0 %v619
        %v621 = vand.u32 %v595, 4294901760
        %622 = vmatpush.msra.mxu0 %v621
        %v623 = vand.u32 %v594, 4294901760
        %624 = vmatpush.msra.mxu0 %v623
        %v625 = vand.u32 %v603, 4294901760
        %v626 = vsub.f32 %v603, %v625
        %v627 = vand.u32 %v626, 4294901760
        %v628 = vsub.f32 %v626, %v627
        %v629 = vand.u32 %v628, 4294901760
        %630 = vmatmul.f32.gmra.mxu0 %v629
        %v631 = vpop.f32.mrf.mxu0
        %v632 = vadd.f32 %v600, %v631
        %633 = vdwg.mxu0
        %634 = vmatpush.msra.mxu0 0.0
        %635 = vmatpush.msra.mxu0 0.0
        %636 = vmatpush.msra.mxu0 0.0
        %637 = vmatpush.msra.mxu0 0.0
        %638 = vmatpush.msra.mxu0 0.0
        %639 = vmatpush.msra.mxu0 0.0
        %640 = vmatpush.msra.mxu0 0.0
        %641 = vmatpush.msra.mxu0 0.0
        %642 = vmatpush.msra.mxu0 0.0
        %643 = vmatpush.msra.mxu0 0.0
        %644 = vmatpush.msra.mxu0 0.0
        %645 = vmatpush.msra.mxu0 0.0
        %v646 = vand.u32 %v597, 4294901760
        %v647 = vsub.f32 %v597, %v646
        %v648 = vand.u32 %v647, 4294901760
        %v649 = vsub.f32 %v647, %v648
        %v650 = vand.u32 %v649, 4294901760
        %651 = vmatpush.msra.mxu0 %v650
        %v652 = vand.u32 %v596, 4294901760
        %v653 = vsub.f32 %v596, %v652
        %v654 = vand.u32 %v653, 4294901760
        %v655 = vsub.f32 %v653, %v654
        %v656 = vand.u32 %v655, 4294901760
        %657 = vmatpush.msra.mxu0 %v656
        %v658 = vand.u32 %v595, 4294901760
        %v659 = vsub.f32 %v595, %v658
        %v660 = vand.u32 %v659, 4294901760
        %v661 = vsub.f32 %v659, %v660
        %v662 = vand.u32 %v661, 4294901760
        %663 = vmatpush.msra.mxu0 %v662
        %v664 = vand.u32 %v594, 4294901760
        %v665 = vsub.f32 %v594, %v664
        %v666 = vand.u32 %v665, 4294901760
        %v667 = vsub.f32 %v665, %v666
        %v668 = vand.u32 %v667, 4294901760
        %669 = vmatpush.msra.mxu0 %v668
        %v670 = vand.u32 %v603, 4294901760
        %671 = vmatmul.f32.gmra.mxu0 %v670
        %v672 = vpop.f32.mrf.mxu0
        %v673 = vadd.f32 %v632, %v672
        %674 = vdwg.mxu0
        %675 = vmatpush.msra.mxu0 0.0
        %676 = vmatpush.msra.mxu0 0.0
        %677 = vmatpush.msra.mxu0 0.0
        %678 = vmatpush.msra.mxu0 0.0
        %679 = vmatpush.msra.mxu0 0.0
        %680 = vmatpush.msra.mxu0 0.0
        %681 = vmatpush.msra.mxu0 0.0
        %682 = vmatpush.msra.mxu0 0.0
        %683 = vmatpush.msra.mxu0 0.0
        %684 = vmatpush.msra.mxu0 0.0
        %685 = vmatpush.msra.mxu0 0.0
        %686 = vmatpush.msra.mxu0 0.0
        %v687 = vand.u32 %v597, 4294901760
        %v688 = vsub.f32 %v597, %v687
        %689 = vmatpush.msra.mxu0 %v688
        %v690 = vand.u32 %v596, 4294901760
        %v691 = vsub.f32 %v596, %v690
        %692 = vmatpush.msra.mxu0 %v691
        %v693 = vand.u32 %v595, 4294901760
        %v694 = vsub.f32 %v595, %v693
        %695 = vmatpush.msra.mxu0 %v694
        %v696 = vand.u32 %v594, 4294901760
        %v697 = vsub.f32 %v594, %v696
        %698 = vmatpush.msra.mxu0 %v697
        %v699 = vand.u32 %v603, 4294901760
        %v700 = vsub.f32 %v603, %v699
        %701 = vmatmul.f32.gmra.mxu0 %v700
        %v702 = vpop.f32.mrf.mxu0
        %v703 = vadd.f32 %v673, %v702
        %704 = vdwg.mxu0
        %705 = vmatpush.msra.mxu0 0.0
        %706 = vmatpush.msra.mxu0 0.0
        %707 = vmatpush.msra.mxu0 0.0
        %708 = vmatpush.msra.mxu0 0.0
        %709 = vmatpush.msra.mxu0 0.0
        %710 = vmatpush.msra.mxu0 0.0
        %711 = vmatpush.msra.mxu0 0.0
        %712 = vmatpush.msra.mxu0 0.0
        %713 = vmatpush.msra.mxu0 0.0
        %714 = vmatpush.msra.mxu0 0.0
        %715 = vmatpush.msra.mxu0 0.0
        %716 = vmatpush.msra.mxu0 0.0
        %v717 = vand.u32 %v597, 4294901760
        %718 = vmatpush.msra.mxu0 %v717
        %v719 = vand.u32 %v596, 4294901760
        %720 = vmatpush.msra.mxu0 %v719
        %v721 = vand.u32 %v595, 4294901760
        %722 = vmatpush.msra.mxu0 %v721
        %v723 = vand.u32 %v594, 4294901760
        %724 = vmatpush.msra.mxu0 %v723
        %v725 = vand.u32 %v603, 4294901760
        %v726 = vsub.f32 %v603, %v725
        %v727 = vand.u32 %v726, 4294901760
        %728 = vmatmul.f32.gmra.mxu0 %v727
        %v729 = vpop.f32.mrf.mxu0
        %v730 = vadd.f32 %v703, %v729
        %731 = vdwg.mxu0
        %732 = vmatpush.msra.mxu0 0.0
        %733 = vmatpush.msra.mxu0 0.0
        %734 = vmatpush.msra.mxu0 0.0
        %735 = vmatpush.msra.mxu0 0.0
        %736 = vmatpush.msra.mxu0 0.0
        %737 = vmatpush.msra.mxu0 0.0
        %738 = vmatpush.msra.mxu0 0.0
        %739 = vmatpush.msra.mxu0 0.0
        %740 = vmatpush.msra.mxu0 0.0
        %741 = vmatpush.msra.mxu0 0.0
        %742 = vmatpush.msra.mxu0 0.0
        %743 = vmatpush.msra.mxu0 0.0
        %v744 = vand.u32 %v597, 4294901760
        %v745 = vsub.f32 %v597, %v744
        %v746 = vand.u32 %v745, 4294901760
        %747 = vmatpush.msra.mxu0 %v746
        %v748 = vand.u32 %v596, 4294901760
        %v749 = vsub.f32 %v596, %v748
        %v750 = vand.u32 %v749, 4294901760
        %751 = vmatpush.msra.mxu0 %v750
        %v752 = vand.u32 %v595, 4294901760
        %v753 = vsub.f32 %v595, %v752
        %v754 = vand.u32 %v753, 4294901760
        %755 = vmatpush.msra.mxu0 %v754
        %v756 = vand.u32 %v594, 4294901760
        %v757 = vsub.f32 %v594, %v756
        %v758 = vand.u32 %v757, 4294901760
        %759 = vmatpush.msra.mxu0 %v758
        %v760 = vand.u32 %v603, 4294901760
        %761 = vmatmul.f32.gmra.mxu0 %v760
        %v762 = vpop.f32.mrf.mxu0
        %v763 = vadd.f32 %v730, %v762
        %764 = vdwg.mxu0
        %765 = vmatpush.msra.mxu0 0.0
        %766 = vmatpush.msra.mxu0 0.0
        %767 = vmatpush.msra.mxu0 0.0
        %768 = vmatpush.msra.mxu0 0.0
        %769 = vmatpush.msra.mxu0 0.0
        %770 = vmatpush.msra.mxu0 0.0
        %771 = vmatpush.msra.mxu0 0.0
        %772 = vmatpush.msra.mxu0 0.0
        %773 = vmatpush.msra.mxu0 0.0
        %774 = vmatpush.msra.mxu0 0.0
        %775 = vmatpush.msra.mxu0 0.0
        %776 = vmatpush.msra.mxu0 0.0
        %v777 = vand.u32 %v597, 4294901760
        %778 = vmatpush.msra.mxu0 %v777
        %v779 = vand.u32 %v596, 4294901760
        %780 = vmatpush.msra.mxu0 %v779
        %v781 = vand.u32 %v595, 4294901760
        %782 = vmatpush.msra.mxu0 %v781
        %v783 = vand.u32 %v594, 4294901760
        %784 = vmatpush.msra.mxu0 %v783
        %v785 = vand.u32 %v603, 4294901760
        %786 = vmatmul.f32.gmra.mxu0 %v785
        %v787 = vpop.f32.mrf.mxu0
        %v788 = vadd.f32 %v763, %v787
        %789 = vdwg.mxu0
        %v790 = vld [vmem:[%s3] sm:$0xff]
        %v791 = vld [vmem:[%s3 + $0x8] sm:$0xff]
        %v792 = vld [vmem:[%s3 + $0x10] sm:$0xff]
        %v793 = vld [vmem:[%s3 + $0x18] sm:$0xff]
        %v794 = vld [vmem:[%s4] sm:$0x1]
        %v796 = vperm.slane %v794, 0
        %798 = vmatpush.msra.mxu0 0.0
        %799 = vmatpush.msra.mxu0 0.0
        %800 = vmatpush.msra.mxu0 0.0
        %801 = vmatpush.msra.mxu0 0.0
        %802 = vmatpush.msra.mxu0 0.0
        %803 = vmatpush.msra.mxu0 0.0
        %804 = vmatpush.msra.mxu0 0.0
        %805 = vmatpush.msra.mxu0 0.0
        %806 = vmatpush.msra.mxu0 0.0
        %807 = vmatpush.msra.mxu0 0.0
        %808 = vmatpush.msra.mxu0 0.0
        %809 = vmatpush.msra.mxu0 0.0
        %v810 = vand.u32 %v793, 4294901760
        %811 = vmatpush.msra.mxu0 %v810
        %v812 = vand.u32 %v792, 4294901760
        %813 = vmatpush.msra.mxu0 %v812
        %v814 = vand.u32 %v791, 4294901760
        %815 = vmatpush.msra.mxu0 %v814
        %v816 = vand.u32 %v790, 4294901760
        %817 = vmatpush.msra.mxu0 %v816
        %v818 = vand.u32 %v603, 4294901760
        %v819 = vsub.f32 %v603, %v818
        %v820 = vand.u32 %v819, 4294901760
        %v821 = vsub.f32 %v819, %v820
        %v822 = vand.u32 %v821, 4294901760
        %823 = vmatmul.f32.gmra.mxu0 %v822
        %v824 = vpop.f32.mrf.mxu0
        %v825 = vadd.f32 %v796, %v824
        %826 = vdwg.mxu0
        %827 = vmatpush.msra.mxu0 0.0
        %828 = vmatpush.msra.mxu0 0.0
        %829 = vmatpush.msra.mxu0 0.0
        %830 = vmatpush.msra.mxu0 0.0
        %831 = vmatpush.msra.mxu0 0.0
        %832 = vmatpush.msra.mxu0 0.0
        %833 = vmatpush.msra.mxu0 0.0
        %834 = vmatpush.msra.mxu0 0.0
        %835 = vmatpush.msra.mxu0 0.0
        %836 = vmatpush.msra.mxu0 0.0
        %837 = vmatpush.msra.mxu0 0.0
        %838 = vmatpush.msra.mxu0 0.0
        %v839 = vand.u32 %v793, 4294901760
        %v840 = vsub.f32 %v793, %v839
        %v841 = vand.u32 %v840, 4294901760
        %v842 = vsub.f32 %v840, %v841
        %v843 = vand.u32 %v842, 4294901760
        %844 = vmatpush.msra.mxu0 %v843
        %v845 = vand.u32 %v792, 4294901760
        %v846 = vsub.f32 %v792, %v845
        %v847 = vand.u32 %v846, 4294901760
        %v848 = vsub.f32 %v846, %v847
        %v849 = vand.u32 %v848, 4294901760
        %850 = vmatpush.msra.mxu0 %v849
        %v851 = vand.u32 %v791, 4294901760
        %v852 = vsub.f32 %v791, %v851
        %v853 = vand.u32 %v852, 4294901760
        %v854 = vsub.f32 %v852, %v853
        %v855 = vand.u32 %v854, 4294901760
        %856 = vmatpush.msra.mxu0 %v855
        %v857 = vand.u32 %v790, 4294901760
        %v858 = vsub.f32 %v790, %v857
        %v859 = vand.u32 %v858, 4294901760
        %v860 = vsub.f32 %v858, %v859
        %v861 = vand.u32 %v860, 4294901760
        %862 = vmatpush.msra.mxu0 %v861
        %v863 = vand.u32 %v603, 4294901760
        %864 = vmatmul.f32.gmra.mxu0 %v863
        %v865 = vpop.f32.mrf.mxu0
        %v866 = vadd.f32 %v825, %v865
        %867 = vdwg.mxu0
        %868 = vmatpush.msra.mxu0 0.0
        %869 = vmatpush.msra.mxu0 0.0
        %870 = vmatpush.msra.mxu0 0.0
        %871 = vmatpush.msra.mxu0 0.0
        %872 = vmatpush.msra.mxu0 0.0
        %873 = vmatpush.msra.mxu0 0.0
        %874 = vmatpush.msra.mxu0 0.0
        %875 = vmatpush.msra.mxu0 0.0
        %876 = vmatpush.msra.mxu0 0.0
        %877 = vmatpush.msra.mxu0 0.0
        %878 = vmatpush.msra.mxu0 0.0
        %879 = vmatpush.msra.mxu0 0.0
        %v880 = vand.u32 %v793, 4294901760
        %v881 = vsub.f32 %v793, %v880
        %882 = vmatpush.msra.mxu0 %v881
        %v883 = vand.u32 %v792, 4294901760
        %v884 = vsub.f32 %v792, %v883
        %885 = vmatpush.msra.mxu0 %v884
        %v886 = vand.u32 %v791, 4294901760
        %v887 = vsub.f32 %v791, %v886
        %888 = vmatpush.msra.mxu0 %v887
        %v889 = vand.u32 %v790, 4294901760
        %v890 = vsub.f32 %v790, %v889
        %891 = vmatpush.msra.mxu0 %v890
        %v892 = vand.u32 %v603, 4294901760
        %v893 = vsub.f32 %v603, %v892
        %894 = vmatmul.f32.gmra.mxu0 %v893
        %v895 = vpop.f32.mrf.mxu0
        %v896 = vadd.f32 %v866, %v895
        %897 = vdwg.mxu0
        %898 = vmatpush.msra.mxu0 0.0
        %899 = vmatpush.msra.mxu0 0.0
        %900 = vmatpush.msra.mxu0 0.0
        %901 = vmatpush.msra.mxu0 0.0
        %902 = vmatpush.msra.mxu0 0.0
        %903 = vmatpush.msra.mxu0 0.0
        %904 = vmatpush.msra.mxu0 0.0
        %905 = vmatpush.msra.mxu0 0.0
        %906 = vmatpush.msra.mxu0 0.0
        %907 = vmatpush.msra.mxu0 0.0
        %908 = vmatpush.msra.mxu0 0.0
        %909 = vmatpush.msra.mxu0 0.0
        %v910 = vand.u32 %v793, 4294901760
        %911 = vmatpush.msra.mxu0 %v910
        %v912 = vand.u32 %v792, 4294901760
        %913 = vmatpush.msra.mxu0 %v912
        %v914 = vand.u32 %v791, 4294901760
        %915 = vmatpush.msra.mxu0 %v914
        %v916 = vand.u32 %v790, 4294901760
        %917 = vmatpush.msra.mxu0 %v916
        %v918 = vand.u32 %v603, 4294901760
        %v919 = vsub.f32 %v603, %v918
        %v920 = vand.u32 %v919, 4294901760
        %921 = vmatmul.f32.gmra.mxu0 %v920
        %v922 = vpop.f32.mrf.mxu0
        %v923 = vadd.f32 %v896, %v922
        %924 = vdwg.mxu0
        %925 = vmatpush.msra.mxu0 0.0
        %926 = vmatpush.msra.mxu0 0.0
        %927 = vmatpush.msra.mxu0 0.0
        %928 = vmatpush.msra.mxu0 0.0
        %929 = vmatpush.msra.mxu0 0.0
        %930 = vmatpush.msra.mxu0 0.0
        %931 = vmatpush.msra.mxu0 0.0
        %932 = vmatpush.msra.mxu0 0.0
        %933 = vmatpush.msra.mxu0 0.0
        %934 = vmatpush.msra.mxu0 0.0
        %935 = vmatpush.msra.mxu0 0.0
        %936 = vmatpush.msra.mxu0 0.0
        %v937 = vand.u32 %v793, 4294901760
        %v938 = vsub.f32 %v793, %v937
        %v939 = vand.u32 %v938, 4294901760
        %940 = vmatpush.msra.mxu0 %v939
        %v941 = vand.u32 %v792, 4294901760
        %v942 = vsub.f32 %v792, %v941
        %v943 = vand.u32 %v942, 4294901760
        %944 = vmatpush.msra.mxu0 %v943
        %v945 = vand.u32 %v791, 4294901760
        %v946 = vsub.f32 %v791, %v945
        %v947 = vand.u32 %v946, 4294901760
        %948 = vmatpush.msra.mxu0 %v947
        %v949 = vand.u32 %v790, 4294901760
        %v950 = vsub.f32 %v790, %v949
        %v951 = vand.u32 %v950, 4294901760
        %952 = vmatpush.msra.mxu0 %v951
        %v953 = vand.u32 %v603, 4294901760
        %954 = vmatmul.f32.gmra.mxu0 %v953
        %v955 = vpop.f32.mrf.mxu0
        %v956 = vadd.f32 %v923, %v955
        %957 = vdwg.mxu0
        %958 = vmatpush.msra.mxu0 0.0
        %959 = vmatpush.msra.mxu0 0.0
        %960 = vmatpush.msra.mxu0 0.0
        %961 = vmatpush.msra.mxu0 0.0
        %962 = vmatpush.msra.mxu0 0.0
        %963 = vmatpush.msra.mxu0 0.0
        %964 = vmatpush.msra.mxu0 0.0
        %965 = vmatpush.msra.mxu0 0.0
        %966 = vmatpush.msra.mxu0 0.0
        %967 = vmatpush.msra.mxu0 0.0
        %968 = vmatpush.msra.mxu0 0.0
        %969 = vmatpush.msra.mxu0 0.0
        %v970 = vand.u32 %v793, 4294901760
        %971 = vmatpush.msra.mxu0 %v970
        %v972 = vand.u32 %v792, 4294901760
        %973 = vmatpush.msra.mxu0 %v972
        %v974 = vand.u32 %v791, 4294901760
        %975 = vmatpush.msra.mxu0 %v974
        %v976 = vand.u32 %v790, 4294901760
        %977 = vmatpush.msra.mxu0 %v976
        %v978 = vand.u32 %v603, 4294901760
        %979 = vmatmul.f32.gmra.mxu0 %v978
        %v980 = vpop.f32.mrf.mxu0
        %v981 = vadd.f32 %v956, %v980
        %982 = vdwg.mxu0
        %v983 = vld [vmem:[%s5] sm:$0xff]
        %v984 = vld [vmem:[%s5 + $0x8] sm:$0xff]
        %v985 = vld [vmem:[%s5 + $0x10] sm:$0xff]
        %v986 = vld [vmem:[%s5 + $0x18] sm:$0xff]
        %v987 = vld [vmem:[%s6] sm:$0x1]
        %v989 = vperm.slane %v987, 0
        %991 = vmatpush.msra.mxu0 0.0
        %992 = vmatpush.msra.mxu0 0.0
        %993 = vmatpush.msra.mxu0 0.0
        %994 = vmatpush.msra.mxu0 0.0
        %995 = vmatpush.msra.mxu0 0.0
        %996 = vmatpush.msra.mxu0 0.0
        %997 = vmatpush.msra.mxu0 0.0
        %998 = vmatpush.msra.mxu0 0.0
        %999 = vmatpush.msra.mxu0 0.0
        %1000 = vmatpush.msra.mxu0 0.0
        %1001 = vmatpush.msra.mxu0 0.0
        %1002 = vmatpush.msra.mxu0 0.0
        %v1003 = vand.u32 %v986, 4294901760
        %1004 = vmatpush.msra.mxu0 %v1003
        %v1005 = vand.u32 %v985, 4294901760
        %1006 = vmatpush.msra.mxu0 %v1005
        %v1007 = vand.u32 %v984, 4294901760
        %1008 = vmatpush.msra.mxu0 %v1007
        %v1009 = vand.u32 %v983, 4294901760
        %1010 = vmatpush.msra.mxu0 %v1009
        %v1011 = vand.u32 %v603, 4294901760
        %v1012 = vsub.f32 %v603, %v1011
        %v1013 = vand.u32 %v1012, 4294901760
        %v1014 = vsub.f32 %v1012, %v1013
        %v1015 = vand.u32 %v1014, 4294901760
        %1016 = vmatmul.f32.gmra.mxu0 %v1015
        %v1017 = vpop.f32.mrf.mxu0
        %v1018 = vadd.f32 %v989, %v1017
        %1019 = vdwg.mxu0
        %1020 = vmatpush.msra.mxu0 0.0
        %1021 = vmatpush.msra.mxu0 0.0
        %1022 = vmatpush.msra.mxu0 0.0
        %1023 = vmatpush.msra.mxu0 0.0
        %1024 = vmatpush.msra.mxu0 0.0
        %1025 = vmatpush.msra.mxu0 0.0
        %1026 = vmatpush.msra.mxu0 0.0
        %1027 = vmatpush.msra.mxu0 0.0
        %1028 = vmatpush.msra.mxu0 0.0
        %1029 = vmatpush.msra.mxu0 0.0
        %1030 = vmatpush.msra.mxu0 0.0
        %1031 = vmatpush.msra.mxu0 0.0
        %v1032 = vand.u32 %v986, 4294901760
        %v1033 = vsub.f32 %v986, %v1032
        %v1034 = vand.u32 %v1033, 4294901760
        %v1035 = vsub.f32 %v1033, %v1034
        %v1036 = vand.u32 %v1035, 4294901760
        %1037 = vmatpush.msra.mxu0 %v1036
        %v1038 = vand.u32 %v985, 4294901760
        %v1039 = vsub.f32 %v985, %v1038
        %v1040 = vand.u32 %v1039, 4294901760
        %v1041 = vsub.f32 %v1039, %v1040
        %v1042 = vand.u32 %v1041, 4294901760
        %1043 = vmatpush.msra.mxu0 %v1042
        %v1044 = vand.u32 %v984, 4294901760
        %v1045 = vsub.f32 %v984, %v1044
        %v1046 = vand.u32 %v1045, 4294901760
        %v1047 = vsub.f32 %v1045, %v1046
        %v1048 = vand.u32 %v1047, 4294901760
        %1049 = vmatpush.msra.mxu0 %v1048
        %v1050 = vand.u32 %v983, 4294901760
        %v1051 = vsub.f32 %v983, %v1050
        %v1052 = vand.u32 %v1051, 4294901760
        %v1053 = vsub.f32 %v1051, %v1052
        %v1054 = vand.u32 %v1053, 4294901760
        %1055 = vmatpush.msra.mxu0 %v1054
        %v1056 = vand.u32 %v603, 4294901760
        %1057 = vmatmul.f32.gmra.mxu0 %v1056
        %v1058 = vpop.f32.mrf.mxu0
        %v1059 = vadd.f32 %v1018, %v1058
        %1060 = vdwg.mxu0
        %1061 = vmatpush.msra.mxu0 0.0
        %1062 = vmatpush.msra.mxu0 0.0
        %1063 = vmatpush.msra.mxu0 0.0
        %1064 = vmatpush.msra.mxu0 0.0
        %1065 = vmatpush.msra.mxu0 0.0
        %1066 = vmatpush.msra.mxu0 0.0
        %1067 = vmatpush.msra.mxu0 0.0
        %1068 = vmatpush.msra.mxu0 0.0
        %1069 = vmatpush.msra.mxu0 0.0
        %1070 = vmatpush.msra.mxu0 0.0
        %1071 = vmatpush.msra.mxu0 0.0
        %1072 = vmatpush.msra.mxu0 0.0
        %v1073 = vand.u32 %v986, 4294901760
        %v1074 = vsub.f32 %v986, %v1073
        %1075 = vmatpush.msra.mxu0 %v1074
        %v1076 = vand.u32 %v985, 4294901760
        %v1077 = vsub.f32 %v985, %v1076
        %1078 = vmatpush.msra.mxu0 %v1077
        %v1079 = vand.u32 %v984, 4294901760
        %v1080 = vsub.f32 %v984, %v1079
        %1081 = vmatpush.msra.mxu0 %v1080
        %v1082 = vand.u32 %v983, 4294901760
        %v1083 = vsub.f32 %v983, %v1082
        %1084 = vmatpush.msra.mxu0 %v1083
        %v1085 = vand.u32 %v603, 4294901760
        %v1086 = vsub.f32 %v603, %v1085
        %1087 = vmatmul.f32.gmra.mxu0 %v1086
        %v1088 = vpop.f32.mrf.mxu0
        %v1089 = vadd.f32 %v1059, %v1088
        %1090 = vdwg.mxu0
        %1091 = vmatpush.msra.mxu0 0.0
        %1092 = vmatpush.msra.mxu0 0.0
        %1093 = vmatpush.msra.mxu0 0.0
        %1094 = vmatpush.msra.mxu0 0.0
        %1095 = vmatpush.msra.mxu0 0.0
        %1096 = vmatpush.msra.mxu0 0.0
        %1097 = vmatpush.msra.mxu0 0.0
        %1098 = vmatpush.msra.mxu0 0.0
        %1099 = vmatpush.msra.mxu0 0.0
        %1100 = vmatpush.msra.mxu0 0.0
        %1101 = vmatpush.msra.mxu0 0.0
        %1102 = vmatpush.msra.mxu0 0.0
        %v1103 = vand.u32 %v986, 4294901760
        %1104 = vmatpush.msra.mxu0 %v1103
        %v1105 = vand.u32 %v985, 4294901760
        %1106 = vmatpush.msra.mxu0 %v1105
        %v1107 = vand.u32 %v984, 4294901760
        %1108 = vmatpush.msra.mxu0 %v1107
        %v1109 = vand.u32 %v983, 4294901760
        %1110 = vmatpush.msra.mxu0 %v1109
        %v1111 = vand.u32 %v603, 4294901760
        %v1112 = vsub.f32 %v603, %v1111
        %v1113 = vand.u32 %v1112, 4294901760
        %1114 = vmatmul.f32.gmra.mxu0 %v1113
        %v1115 = vpop.f32.mrf.mxu0
        %v1116 = vadd.f32 %v1089, %v1115
        %1117 = vdwg.mxu0
        %1118 = vmatpush.msra.mxu0 0.0
        %1119 = vmatpush.msra.mxu0 0.0
        %1120 = vmatpush.msra.mxu0 0.0
        %1121 = vmatpush.msra.mxu0 0.0
        %1122 = vmatpush.msra.mxu0 0.0
        %1123 = vmatpush.msra.mxu0 0.0
        %1124 = vmatpush.msra.mxu0 0.0
        %1125 = vmatpush.msra.mxu0 0.0
        %1126 = vmatpush.msra.mxu0 0.0
        %1127 = vmatpush.msra.mxu0 0.0
        %1128 = vmatpush.msra.mxu0 0.0
        %1129 = vmatpush.msra.mxu0 0.0
        %v1130 = vand.u32 %v986, 4294901760
        %v1131 = vsub.f32 %v986, %v1130
        %v1132 = vand.u32 %v1131, 4294901760
        %1133 = vmatpush.msra.mxu0 %v1132
        %v1134 = vand.u32 %v985, 4294901760
        %v1135 = vsub.f32 %v985, %v1134
        %v1136 = vand.u32 %v1135, 4294901760
        %1137 = vmatpush.msra.mxu0 %v1136
        %v1138 = vand.u32 %v984, 4294901760
        %v1139 = vsub.f32 %v984, %v1138
        %v1140 = vand.u32 %v1139, 4294901760
        %1141 = vmatpush.msra.mxu0 %v1140
        %v1142 = vand.u32 %v983, 4294901760
        %v1143 = vsub.f32 %v983, %v1142
        %v1144 = vand.u32 %v1143, 4294901760
        %1145 = vmatpush.msra.mxu0 %v1144
        %v1146 = vand.u32 %v603, 4294901760
        %1147 = vmatmul.f32.gmra.mxu0 %v1146
        %v1148 = vpop.f32.mrf.mxu0
        %v1149 = vadd.f32 %v1116, %v1148
        %1150 = vdwg.mxu0
        %1151 = vmatpush.msra.mxu0 0.0
        %1152 = vmatpush.msra.mxu0 0.0
        %1153 = vmatpush.msra.mxu0 0.0
        %1154 = vmatpush.msra.mxu0 0.0
        %1155 = vmatpush.msra.mxu0 0.0
        %1156 = vmatpush.msra.mxu0 0.0
        %1157 = vmatpush.msra.mxu0 0.0
        %1158 = vmatpush.msra.mxu0 0.0
        %1159 = vmatpush.msra.mxu0 0.0
        %1160 = vmatpush.msra.mxu0 0.0
        %1161 = vmatpush.msra.mxu0 0.0
        %1162 = vmatpush.msra.mxu0 0.0
        %v1163 = vand.u32 %v986, 4294901760
        %1164 = vmatpush.msra.mxu0 %v1163
        %v1165 = vand.u32 %v985, 4294901760
        %1166 = vmatpush.msra.mxu0 %v1165
        %v1167 = vand.u32 %v984, 4294901760
        %1168 = vmatpush.msra.mxu0 %v1167
        %v1169 = vand.u32 %v983, 4294901760
        %1170 = vmatpush.msra.mxu0 %v1169
        %v1171 = vand.u32 %v603, 4294901760
        %1172 = vmatmul.f32.gmra.mxu0 %v1171
        %v1173 = vpop.f32.mrf.mxu0
        %v1174 = vadd.f32 %v1149, %v1173
        %1175 = vdwg.mxu0
        %vm1176 = vcmp.eq.s32.totalorder %v593, 0
        %v1177 = vsel %vm1176, %v590, 0.0
        %vm1178 = vcmask 24576
        %v1179 = vsel %vm1178, %v1177, 0.0
        %1180 = vadd.xlane.f32.xlu0 %v1179
        %v1181 = vpop.xlane.xlu0 %1180
        %v1182 = vadd.f32 %v1181, 1.0
        %v1183 = vperm.slane %v1182, 0
        %v1184 = vmul.f32 %v788, %v1183
        %vm1185 = vcmask 64512
        %v1187 = vsel %vm1185, %v1184, 0
        %v1190 = vsel %vm1185, %v981, 0
        %1192 = vmatpush.xpose.msra.mxu0 0.0
        %1193 = vmatpush.xpose.msra.mxu0 0.0
        %1194 = vmatpush.xpose.msra.mxu0 0.0
        %1195 = vmatpush.xpose.msra.mxu0 0.0
        %1196 = vmatpush.xpose.msra.mxu0 0.0
        %1197 = vmatpush.xpose.msra.mxu0 0.0
        %1198 = vmatpush.xpose.msra.mxu0 0.0
        %1199 = vmatpush.xpose.msra.mxu0 0.0
        %1200 = vmatpush.xpose.msra.mxu0 0.0
        %1201 = vmatpush.xpose.msra.mxu0 0.0
        %1202 = vmatpush.xpose.msra.mxu0 0.0
        %1203 = vmatpush.xpose.msra.mxu0 0.0
        %1204 = vmatpush.xpose.msra.mxu0 0.0
        %1205 = vmatpush.xpose.msra.mxu0 0.0
        %1206 = vmatpush.xpose.msra.mxu0 0.0
        %v1207 = vand.u32 %v1190, 4294901760
        %1208 = vmatpush.xpose.msra.mxu0 %v1207
        %v1209 = vand.u32 %v1187, 4294901760
        %v1210 = vsub.f32 %v1187, %v1209
        %v1211 = vand.u32 %v1210, 4294901760
        %v1212 = vsub.f32 %v1210, %v1211
        %v1213 = vand.u32 %v1212, 4294901760
        %1214 = vmatmul.f32.gmra.mxu0 %v1213
        %v1215 = vpop.f32.mrf.mxu0
        %v1216 = vadd.f32 0.0, %v1215
        %1217 = vdwg.mxu0
        %1218 = vmatpush.xpose.msra.mxu0 0.0
        %1219 = vmatpush.xpose.msra.mxu0 0.0
        %1220 = vmatpush.xpose.msra.mxu0 0.0
        %1221 = vmatpush.xpose.msra.mxu0 0.0
        %1222 = vmatpush.xpose.msra.mxu0 0.0
        %1223 = vmatpush.xpose.msra.mxu0 0.0
        %1224 = vmatpush.xpose.msra.mxu0 0.0
        %1225 = vmatpush.xpose.msra.mxu0 0.0
        %1226 = vmatpush.xpose.msra.mxu0 0.0
        %1227 = vmatpush.xpose.msra.mxu0 0.0
        %1228 = vmatpush.xpose.msra.mxu0 0.0
        %1229 = vmatpush.xpose.msra.mxu0 0.0
        %1230 = vmatpush.xpose.msra.mxu0 0.0
        %1231 = vmatpush.xpose.msra.mxu0 0.0
        %1232 = vmatpush.xpose.msra.mxu0 0.0
        %v1233 = vand.u32 %v1190, 4294901760
        %v1234 = vsub.f32 %v1190, %v1233
        %v1235 = vand.u32 %v1234, 4294901760
        %v1236 = vsub.f32 %v1234, %v1235
        %v1237 = vand.u32 %v1236, 4294901760
        %1238 = vmatpush.xpose.msra.mxu0 %v1237
        %v1239 = vand.u32 %v1187, 4294901760
        %1240 = vmatmul.f32.gmra.mxu0 %v1239
        %v1241 = vpop.f32.mrf.mxu0
        %v1242 = vadd.f32 %v1216, %v1241
        %1243 = vdwg.mxu0
        %1244 = vmatpush.xpose.msra.mxu0 0.0
        %1245 = vmatpush.xpose.msra.mxu0 0.0
        %1246 = vmatpush.xpose.msra.mxu0 0.0
        %1247 = vmatpush.xpose.msra.mxu0 0.0
        %1248 = vmatpush.xpose.msra.mxu0 0.0
        %1249 = vmatpush.xpose.msra.mxu0 0.0
        %1250 = vmatpush.xpose.msra.mxu0 0.0
        %1251 = vmatpush.xpose.msra.mxu0 0.0
        %1252 = vmatpush.xpose.msra.mxu0 0.0
        %1253 = vmatpush.xpose.msra.mxu0 0.0
        %1254 = vmatpush.xpose.msra.mxu0 0.0
        %1255 = vmatpush.xpose.msra.mxu0 0.0
        %1256 = vmatpush.xpose.msra.mxu0 0.0
        %1257 = vmatpush.xpose.msra.mxu0 0.0
        %1258 = vmatpush.xpose.msra.mxu0 0.0
        %v1259 = vand.u32 %v1190, 4294901760
        %v1260 = vsub.f32 %v1190, %v1259
        %1261 = vmatpush.xpose.msra.mxu0 %v1260
        %v1262 = vand.u32 %v1187, 4294901760
        %v1263 = vsub.f32 %v1187, %v1262
        %1264 = vmatmul.f32.gmra.mxu0 %v1263
        %v1265 = vpop.f32.mrf.mxu0
        %v1266 = vadd.f32 %v1242, %v1265
        %1267 = vdwg.mxu0
        %1268 = vmatpush.xpose.msra.mxu0 0.0
        %1269 = vmatpush.xpose.msra.mxu0 0.0
        %1270 = vmatpush.xpose.msra.mxu0 0.0
        %1271 = vmatpush.xpose.msra.mxu0 0.0
        %1272 = vmatpush.xpose.msra.mxu0 0.0
        %1273 = vmatpush.xpose.msra.mxu0 0.0
        %1274 = vmatpush.xpose.msra.mxu0 0.0
        %1275 = vmatpush.xpose.msra.mxu0 0.0
        %1276 = vmatpush.xpose.msra.mxu0 0.0
        %1277 = vmatpush.xpose.msra.mxu0 0.0
        %1278 = vmatpush.xpose.msra.mxu0 0.0
        %1279 = vmatpush.xpose.msra.mxu0 0.0
        %1280 = vmatpush.xpose.msra.mxu0 0.0
        %1281 = vmatpush.xpose.msra.mxu0 0.0
        %1282 = vmatpush.xpose.msra.mxu0 0.0
        %v1283 = vand.u32 %v1190, 4294901760
        %1284 = vmatpush.xpose.msra.mxu0 %v1283
        %v1285 = vand.u32 %v1187, 4294901760
        %v1286 = vsub.f32 %v1187, %v1285
        %v1287 = vand.u32 %v1286, 4294901760
        %1288 = vmatmul.f32.gmra.mxu0 %v1287
        %v1289 = vpop.f32.mrf.mxu0
        %v1290 = vadd.f32 %v1266, %v1289
        %1291 = vdwg.mxu0
        %1292 = vmatpush.xpose.msra.mxu0 0.0
        %1293 = vmatpush.xpose.msra.mxu0 0.0
        %1294 = vmatpush.xpose.msra.mxu0 0.0
        %1295 = vmatpush.xpose.msra.mxu0 0.0
        %1296 = vmatpush.xpose.msra.mxu0 0.0
        %1297 = vmatpush.xpose.msra.mxu0 0.0
        %1298 = vmatpush.xpose.msra.mxu0 0.0
        %1299 = vmatpush.xpose.msra.mxu0 0.0
        %1300 = vmatpush.xpose.msra.mxu0 0.0
        %1301 = vmatpush.xpose.msra.mxu0 0.0
        %1302 = vmatpush.xpose.msra.mxu0 0.0
        %1303 = vmatpush.xpose.msra.mxu0 0.0
        %1304 = vmatpush.xpose.msra.mxu0 0.0
        %1305 = vmatpush.xpose.msra.mxu0 0.0
        %1306 = vmatpush.xpose.msra.mxu0 0.0
        %v1307 = vand.u32 %v1190, 4294901760
        %v1308 = vsub.f32 %v1190, %v1307
        %v1309 = vand.u32 %v1308, 4294901760
        %1310 = vmatpush.xpose.msra.mxu0 %v1309
        %v1311 = vand.u32 %v1187, 4294901760
        %1312 = vmatmul.f32.gmra.mxu0 %v1311
        %v1313 = vpop.f32.mrf.mxu0
        %v1314 = vadd.f32 %v1290, %v1313
        %1315 = vdwg.mxu0
        %1316 = vmatpush.xpose.msra.mxu0 0.0
        %1317 = vmatpush.xpose.msra.mxu0 0.0
        %1318 = vmatpush.xpose.msra.mxu0 0.0
        %1319 = vmatpush.xpose.msra.mxu0 0.0
        %1320 = vmatpush.xpose.msra.mxu0 0.0
        %1321 = vmatpush.xpose.msra.mxu0 0.0
        %1322 = vmatpush.xpose.msra.mxu0 0.0
        %1323 = vmatpush.xpose.msra.mxu0 0.0
        %1324 = vmatpush.xpose.msra.mxu0 0.0
        %1325 = vmatpush.xpose.msra.mxu0 0.0
        %1326 = vmatpush.xpose.msra.mxu0 0.0
        %1327 = vmatpush.xpose.msra.mxu0 0.0
        %1328 = vmatpush.xpose.msra.mxu0 0.0
        %1329 = vmatpush.xpose.msra.mxu0 0.0
        %1330 = vmatpush.xpose.msra.mxu0 0.0
        %v1331 = vand.u32 %v1190, 4294901760
        %1332 = vmatpush.xpose.msra.mxu0 %v1331
        %v1333 = vand.u32 %v1187, 4294901760
        %1334 = vmatmul.f32.gmra.mxu0 %v1333
        %v1335 = vpop.f32.mrf.mxu0
        %v1336 = vadd.f32 %v1314, %v1335
        %1337 = vdwg.mxu0
        %v1338 = vmul.f32 %v1336, 0.35355338
        %v1339 = vsel %vm1185, %v1338, -inf
        %1340 = vmax.xlane.f32.xlu0 %v1339
        %v1341 = vpop.xlane.xlu0 %1340
        %v1342 = vsub.f32 %v1338, %v1341
        %v1343 = vmul.f32 %v1342, 1.442695
        %v1344 = vpow.pop %v1343
        %v1345 = vsel %vm1185, %v1344, 0.0
        %1346 = vadd.xlane.f32.xlu0 %v1345
        %v1347 = vpop.xlane.xlu0 %1346
        %v1348 = vrcp.pop %v1347
        %v1349 = vmul.f32 %v1347, %v1348
        %v1350 = vsub.f32 1.0, %v1349
        %v1351 = vmul.f32 %v1348, %v1350
        %v1352 = vadd.f32 %v1348, %v1351
        %vm1353 = vweird.f32 %v1347
        %vm1354 = vweird.f32 %v1348
        %vm1355 = vmor %vm1353, %vm1354
        %v1356 = vsel %vm1355, %v1348, %v1352
        %v1357 = vand.u32 2147483647, %v1347
        %vm1358 = vcmp.eq.f32.partialorder %v1357, 8.507059e+37
        %v1359 = vand.u32 %v1347, 2147483648
        %v1360 = vor.u32 1.1754944e-38, %v1359
        %v1361 = vsel %vm1358, %v1360, %v1356
        %v1362 = vmul.f32 %v1344, %v1361
        %v1364 = vsel %vm1185, %v1362, 0
        %1366 = vmatpush.msra.mxu0 0.0
        %1367 = vmatpush.msra.mxu0 0.0
        %1368 = vmatpush.msra.mxu0 0.0
        %1369 = vmatpush.msra.mxu0 0.0
        %1370 = vmatpush.msra.mxu0 0.0
        %1371 = vmatpush.msra.mxu0 0.0
        %1372 = vmatpush.msra.mxu0 0.0
        %1373 = vmatpush.msra.mxu0 0.0
        %1374 = vmatpush.msra.mxu0 0.0
        %1375 = vmatpush.msra.mxu0 0.0
        %1376 = vmatpush.msra.mxu0 0.0
        %1377 = vmatpush.msra.mxu0 0.0
        %1378 = vmatpush.msra.mxu0 0.0
        %1379 = vmatpush.msra.mxu0 0.0
        %1380 = vmatpush.msra.mxu0 0.0
        %v1381 = vand.u32 %v1174, 4294901760
        %1382 = vmatpush.msra.mxu0 %v1381
        %v1383 = vand.u32 %v1364, 4294901760
        %v1384 = vsub.f32 %v1364, %v1383
        %v1385 = vand.u32 %v1384, 4294901760
        %v1386 = vsub.f32 %v1384, %v1385
        %v1387 = vand.u32 %v1386, 4294901760
        %1388 = vmatmul.f32.gmra.mxu0 %v1387
        %v1389 = vpop.f32.mrf.mxu0
        %v1390 = vadd.f32 0.0, %v1389
        %1391 = vdwg.mxu0
        %1392 = vmatpush.msra.mxu0 0.0
        %1393 = vmatpush.msra.mxu0 0.0
        %1394 = vmatpush.msra.mxu0 0.0
        %1395 = vmatpush.msra.mxu0 0.0
        %1396 = vmatpush.msra.mxu0 0.0
        %1397 = vmatpush.msra.mxu0 0.0
        %1398 = vmatpush.msra.mxu0 0.0
        %1399 = vmatpush.msra.mxu0 0.0
        %1400 = vmatpush.msra.mxu0 0.0
        %1401 = vmatpush.msra.mxu0 0.0
        %1402 = vmatpush.msra.mxu0 0.0
        %1403 = vmatpush.msra.mxu0 0.0
        %1404 = vmatpush.msra.mxu0 0.0
        %1405 = vmatpush.msra.mxu0 0.0
        %1406 = vmatpush.msra.mxu0 0.0
        %v1407 = vand.u32 %v1174, 4294901760
        %v1408 = vsub.f32 %v1174, %v1407
        %v1409 = vand.u32 %v1408, 4294901760
        %v1410 = vsub.f32 %v1408, %v1409
        %v1411 = vand.u32 %v1410, 4294901760
        %1412 = vmatpush.msra.mxu0 %v1411
        %v1413 = vand.u32 %v1364, 4294901760
        %1414 = vmatmul.f32.gmra.mxu0 %v1413
        %v1415 = vpop.f32.mrf.mxu0
        %v1416 = vadd.f32 %v1390, %v1415
        %1417 = vdwg.mxu0
        %1418 = vmatpush.msra.mxu0 0.0
        %1419 = vmatpush.msra.mxu0 0.0
        %1420 = vmatpush.msra.mxu0 0.0
        %1421 = vmatpush.msra.mxu0 0.0
        %1422 = vmatpush.msra.mxu0 0.0
        %1423 = vmatpush.msra.mxu0 0.0
        %1424 = vmatpush.msra.mxu0 0.0
        %1425 = vmatpush.msra.mxu0 0.0
        %1426 = vmatpush.msra.mxu0 0.0
        %1427 = vmatpush.msra.mxu0 0.0
        %1428 = vmatpush.msra.mxu0 0.0
        %1429 = vmatpush.msra.mxu0 0.0
        %1430 = vmatpush.msra.mxu0 0.0
        %1431 = vmatpush.msra.mxu0 0.0
        %1432 = vmatpush.msra.mxu0 0.0
        %v1433 = vand.u32 %v1174, 4294901760
        %v1434 = vsub.f32 %v1174, %v1433
        %1435 = vmatpush.msra.mxu0 %v1434
        %v1436 = vand.u32 %v1364, 4294901760
        %v1437 = vsub.f32 %v1364, %v1436
        %1438 = vmatmul.f32.gmra.mxu0 %v1437
        %v1439 = vpop.f32.mrf.mxu0
        %v1440 = vadd.f32 %v1416, %v1439
        %1441 = vdwg.mxu0
        %1442 = vmatpush.msra.mxu0 0.0
        %1443 = vmatpush.msra.mxu0 0.0
        %1444 = vmatpush.msra.mxu0 0.0
        %1445 = vmatpush.msra.mxu0 0.0
        %1446 = vmatpush.msra.mxu0 0.0
        %1447 = vmatpush.msra.mxu0 0.0
        %1448 = vmatpush.msra.mxu0 0.0
        %1449 = vmatpush.msra.mxu0 0.0
        %1450 = vmatpush.msra.mxu0 0.0
        %1451 = vmatpush.msra.mxu0 0.0
        %1452 = vmatpush.msra.mxu0 0.0
        %1453 = vmatpush.msra.mxu0 0.0
        %1454 = vmatpush.msra.mxu0 0.0
        %1455 = vmatpush.msra.mxu0 0.0
        %1456 = vmatpush.msra.mxu0 0.0
        %v1457 = vand.u32 %v1174, 4294901760
        %1458 = vmatpush.msra.mxu0 %v1457
        %v1459 = vand.u32 %v1364, 4294901760
        %v1460 = vsub.f32 %v1364, %v1459
        %v1461 = vand.u32 %v1460, 4294901760
        %1462 = vmatmul.f32.gmra.mxu0 %v1461
        %v1463 = vpop.f32.mrf.mxu0
        %v1464 = vadd.f32 %v1440, %v1463
        %1465 = vdwg.mxu0
        %1466 = vmatpush.msra.mxu0 0.0
        %1467 = vmatpush.msra.mxu0 0.0
        %1468 = vmatpush.msra.mxu0 0.0
        %1469 = vmatpush.msra.mxu0 0.0
        %1470 = vmatpush.msra.mxu0 0.0
        %1471 = vmatpush.msra.mxu0 0.0
        %1472 = vmatpush.msra.mxu0 0.0
        %1473 = vmatpush.msra.mxu0 0.0
        %1474 = vmatpush.msra.mxu0 0.0
        %1475 = vmatpush.msra.mxu0 0.0
        %1476 = vmatpush.msra.mxu0 0.0
        %1477 = vmatpush.msra.mxu0 0.0
        %1478 = vmatpush.msra.mxu0 0.0
        %1479 = vmatpush.msra.mxu0 0.0
        %1480 = vmatpush.msra.mxu0 0.0
        %v1481 = vand.u32 %v1174, 4294901760
        %v1482 = vsub.f32 %v1174, %v1481
        %v1483 = vand.u32 %v1482, 4294901760
        %1484 = vmatpush.msra.mxu0 %v1483
        %v1485 = vand.u32 %v1364, 4294901760
        %1486 = vmatmul.f32.gmra.mxu0 %v1485
        %v1487 = vpop.f32.mrf.mxu0
        %v1488 = vadd.f32 %v1464, %v1487
        %1489 = vdwg.mxu0
        %1490 = vmatpush.msra.mxu0 0.0
        %1491 = vmatpush.msra.mxu0 0.0
        %1492 = vmatpush.msra.mxu0 0.0
        %1493 = vmatpush.msra.mxu0 0.0
        %1494 = vmatpush.msra.mxu0 0.0
        %1495 = vmatpush.msra.mxu0 0.0
        %1496 = vmatpush.msra.mxu0 0.0
        %1497 = vmatpush.msra.mxu0 0.0
        %1498 = vmatpush.msra.mxu0 0.0
        %1499 = vmatpush.msra.mxu0 0.0
        %1500 = vmatpush.msra.mxu0 0.0
        %1501 = vmatpush.msra.mxu0 0.0
        %1502 = vmatpush.msra.mxu0 0.0
        %1503 = vmatpush.msra.mxu0 0.0
        %1504 = vmatpush.msra.mxu0 0.0
        %v1505 = vand.u32 %v1174, 4294901760
        %1506 = vmatpush.msra.mxu0 %v1505
        %v1507 = vand.u32 %v1364, 4294901760
        %1508 = vmatmul.f32.gmra.mxu0 %v1507
        %v1509 = vpop.f32.mrf.mxu0
        %v1510 = vadd.f32 %v1488, %v1509
        %1511 = vdwg.mxu0
        %v1512 = vld [vmem:[%s9] sm:$0xff]
        %s1513 = scalar_lea.vmem %s1, 32
        %v1514 = vld [vmem:[%s1513] sm:$0xff]
        %v1515 = vld [vmem:[%s1513 + $0x8] sm:$0xff]
        %v1516 = vld [vmem:[%s1513 + $0x10] sm:$0xff]
        %v1517 = vld [vmem:[%s1513 + $0x18] sm:$0xff]
        %s1518 = scalar_lea.vmem %s2, 1
        %v1519 = vld [vmem:[%s1518] sm:$0x1]
        %v1521 = vperm.slane %v1519, 0
        %1523 = vmatpush.msra.mxu0 0.0
        %1524 = vmatpush.msra.mxu0 0.0
        %1525 = vmatpush.msra.mxu0 0.0
        %1526 = vmatpush.msra.mxu0 0.0
        %1527 = vmatpush.msra.mxu0 0.0
        %1528 = vmatpush.msra.mxu0 0.0
        %1529 = vmatpush.msra.mxu0 0.0
        %1530 = vmatpush.msra.mxu0 0.0
        %1531 = vmatpush.msra.mxu0 0.0
        %1532 = vmatpush.msra.mxu0 0.0
        %1533 = vmatpush.msra.mxu0 0.0
        %1534 = vmatpush.msra.mxu0 0.0
        %v1535 = vand.u32 %v1517, 4294901760
        %1536 = vmatpush.msra.mxu0 %v1535
        %v1537 = vand.u32 %v1516, 4294901760
        %1538 = vmatpush.msra.mxu0 %v1537
        %v1539 = vand.u32 %v1515, 4294901760
        %1540 = vmatpush.msra.mxu0 %v1539
        %v1541 = vand.u32 %v1514, 4294901760
        %1542 = vmatpush.msra.mxu0 %v1541
        %v1543 = vand.u32 %v603, 4294901760
        %v1544 = vsub.f32 %v603, %v1543
        %v1545 = vand.u32 %v1544, 4294901760
        %v1546 = vsub.f32 %v1544, %v1545
        %v1547 = vand.u32 %v1546, 4294901760
        %1548 = vmatmul.f32.gmra.mxu0 %v1547
        %v1549 = vpop.f32.mrf.mxu0
        %v1550 = vadd.f32 %v1521, %v1549
        %1551 = vdwg.mxu0
        %1552 = vmatpush.msra.mxu0 0.0
        %1553 = vmatpush.msra.mxu0 0.0
        %1554 = vmatpush.msra.mxu0 0.0
        %1555 = vmatpush.msra.mxu0 0.0
        %1556 = vmatpush.msra.mxu0 0.0
        %1557 = vmatpush.msra.mxu0 0.0
        %1558 = vmatpush.msra.mxu0 0.0
        %1559 = vmatpush.msra.mxu0 0.0
        %1560 = vmatpush.msra.mxu0 0.0
        %1561 = vmatpush.msra.mxu0 0.0
        %1562 = vmatpush.msra.mxu0 0.0
        %1563 = vmatpush.msra.mxu0 0.0
        %v1564 = vand.u32 %v1517, 4294901760
        %v1565 = vsub.f32 %v1517, %v1564
        %v1566 = vand.u32 %v1565, 4294901760
        %v1567 = vsub.f32 %v1565, %v1566
        %v1568 = vand.u32 %v1567, 4294901760
        %1569 = vmatpush.msra.mxu0 %v1568
        %v1570 = vand.u32 %v1516, 4294901760
        %v1571 = vsub.f32 %v1516, %v1570
        %v1572 = vand.u32 %v1571, 4294901760
        %v1573 = vsub.f32 %v1571, %v1572
        %v1574 = vand.u32 %v1573, 4294901760
        %1575 = vmatpush.msra.mxu0 %v1574
        %v1576 = vand.u32 %v1515, 4294901760
        %v1577 = vsub.f32 %v1515, %v1576
        %v1578 = vand.u32 %v1577, 4294901760
        %v1579 = vsub.f32 %v1577, %v1578
        %v1580 = vand.u32 %v1579, 4294901760
        %1581 = vmatpush.msra.mxu0 %v1580
        %v1582 = vand.u32 %v1514, 4294901760
        %v1583 = vsub.f32 %v1514, %v1582
        %v1584 = vand.u32 %v1583, 4294901760
        %v1585 = vsub.f32 %v1583, %v1584
        %v1586 = vand.u32 %v1585, 4294901760
        %1587 = vmatpush.msra.mxu0 %v1586
        %v1588 = vand.u32 %v603, 4294901760
        %1589 = vmatmul.f32.gmra.mxu0 %v1588
        %v1590 = vpop.f32.mrf.mxu0
        %v1591 = vadd.f32 %v1550, %v1590
        %1592 = vdwg.mxu0
        %1593 = vmatpush.msra.mxu0 0.0
        %1594 = vmatpush.msra.mxu0 0.0
        %1595 = vmatpush.msra.mxu0 0.0
        %1596 = vmatpush.msra.mxu0 0.0
        %1597 = vmatpush.msra.mxu0 0.0
        %1598 = vmatpush.msra.mxu0 0.0
        %1599 = vmatpush.msra.mxu0 0.0
        %1600 = vmatpush.msra.mxu0 0.0
        %1601 = vmatpush.msra.mxu0 0.0
        %1602 = vmatpush.msra.mxu0 0.0
        %1603 = vmatpush.msra.mxu0 0.0
        %1604 = vmatpush.msra.mxu0 0.0
        %v1605 = vand.u32 %v1517, 4294901760
        %v1606 = vsub.f32 %v1517, %v1605
        %1607 = vmatpush.msra.mxu0 %v1606
        %v1608 = vand.u32 %v1516, 4294901760
        %v1609 = vsub.f32 %v1516, %v1608
        %1610 = vmatpush.msra.mxu0 %v1609
        %v1611 = vand.u32 %v1515, 4294901760
        %v1612 = vsub.f32 %v1515, %v1611
        %1613 = vmatpush.msra.mxu0 %v1612
        %v1614 = vand.u32 %v1514, 4294901760
        %v1615 = vsub.f32 %v1514, %v1614
        %1616 = vmatpush.msra.mxu0 %v1615
        %v1617 = vand.u32 %v603, 4294901760
        %v1618 = vsub.f32 %v603, %v1617
        %1619 = vmatmul.f32.gmra.mxu0 %v1618
        %v1620 = vpop.f32.mrf.mxu0
        %v1621 = vadd.f32 %v1591, %v1620
        %1622 = vdwg.mxu0
        %1623 = vmatpush.msra.mxu0 0.0
        %1624 = vmatpush.msra.mxu0 0.0
        %1625 = vmatpush.msra.mxu0 0.0
        %1626 = vmatpush.msra.mxu0 0.0
        %1627 = vmatpush.msra.mxu0 0.0
        %1628 = vmatpush.msra.mxu0 0.0
        %1629 = vmatpush.msra.mxu0 0.0
        %1630 = vmatpush.msra.mxu0 0.0
        %1631 = vmatpush.msra.mxu0 0.0
        %1632 = vmatpush.msra.mxu0 0.0
        %1633 = vmatpush.msra.mxu0 0.0
        %1634 = vmatpush.msra.mxu0 0.0
        %v1635 = vand.u32 %v1517, 4294901760
        %1636 = vmatpush.msra.mxu0 %v1635
        %v1637 = vand.u32 %v1516, 4294901760
        %1638 = vmatpush.msra.mxu0 %v1637
        %v1639 = vand.u32 %v1515, 4294901760
        %1640 = vmatpush.msra.mxu0 %v1639
        %v1641 = vand.u32 %v1514, 4294901760
        %1642 = vmatpush.msra.mxu0 %v1641
        %v1643 = vand.u32 %v603, 4294901760
        %v1644 = vsub.f32 %v603, %v1643
        %v1645 = vand.u32 %v1644, 4294901760
        %1646 = vmatmul.f32.gmra.mxu0 %v1645
        %v1647 = vpop.f32.mrf.mxu0
        %v1648 = vadd.f32 %v1621, %v1647
        %1649 = vdwg.mxu0
        %1650 = vmatpush.msra.mxu0 0.0
        %1651 = vmatpush.msra.mxu0 0.0
        %1652 = vmatpush.msra.mxu0 0.0
        %1653 = vmatpush.msra.mxu0 0.0
        %1654 = vmatpush.msra.mxu0 0.0
        %1655 = vmatpush.msra.mxu0 0.0
        %1656 = vmatpush.msra.mxu0 0.0
        %1657 = vmatpush.msra.mxu0 0.0
        %1658 = vmatpush.msra.mxu0 0.0
        %1659 = vmatpush.msra.mxu0 0.0
        %1660 = vmatpush.msra.mxu0 0.0
        %1661 = vmatpush.msra.mxu0 0.0
        %v1662 = vand.u32 %v1517, 4294901760
        %v1663 = vsub.f32 %v1517, %v1662
        %v1664 = vand.u32 %v1663, 4294901760
        %1665 = vmatpush.msra.mxu0 %v1664
        %v1666 = vand.u32 %v1516, 4294901760
        %v1667 = vsub.f32 %v1516, %v1666
        %v1668 = vand.u32 %v1667, 4294901760
        %1669 = vmatpush.msra.mxu0 %v1668
        %v1670 = vand.u32 %v1515, 4294901760
        %v1671 = vsub.f32 %v1515, %v1670
        %v1672 = vand.u32 %v1671, 4294901760
        %1673 = vmatpush.msra.mxu0 %v1672
        %v1674 = vand.u32 %v1514, 4294901760
        %v1675 = vsub.f32 %v1514, %v1674
        %v1676 = vand.u32 %v1675, 4294901760
        %1677 = vmatpush.msra.mxu0 %v1676
        %v1678 = vand.u32 %v603, 4294901760
        %1679 = vmatmul.f32.gmra.mxu0 %v1678
        %v1680 = vpop.f32.mrf.mxu0
        %v1681 = vadd.f32 %v1648, %v1680
        %1682 = vdwg.mxu0
        %1683 = vmatpush.msra.mxu0 0.0
        %1684 = vmatpush.msra.mxu0 0.0
        %1685 = vmatpush.msra.mxu0 0.0
        %1686 = vmatpush.msra.mxu0 0.0
        %1687 = vmatpush.msra.mxu0 0.0
        %1688 = vmatpush.msra.mxu0 0.0
        %1689 = vmatpush.msra.mxu0 0.0
        %1690 = vmatpush.msra.mxu0 0.0
        %1691 = vmatpush.msra.mxu0 0.0
        %1692 = vmatpush.msra.mxu0 0.0
        %1693 = vmatpush.msra.mxu0 0.0
        %1694 = vmatpush.msra.mxu0 0.0
        %v1695 = vand.u32 %v1517, 4294901760
        %1696 = vmatpush.msra.mxu0 %v1695
        %v1697 = vand.u32 %v1516, 4294901760
        %1698 = vmatpush.msra.mxu0 %v1697
        %v1699 = vand.u32 %v1515, 4294901760
        %1700 = vmatpush.msra.mxu0 %v1699
        %v1701 = vand.u32 %v1514, 4294901760
        %1702 = vmatpush.msra.mxu0 %v1701
        %v1703 = vand.u32 %v603, 4294901760
        %1704 = vmatmul.f32.gmra.mxu0 %v1703
        %v1705 = vpop.f32.mrf.mxu0
        %v1706 = vadd.f32 %v1681, %v1705
        %1707 = vdwg.mxu0
        %s1708 = scalar_lea.vmem %s3, 32
        %v1709 = vld [vmem:[%s1708] sm:$0xff]
        %v1710 = vld [vmem:[%s1708 + $0x8] sm:$0xff]
        %v1711 = vld [vmem:[%s1708 + $0x10] sm:$0xff]
        %v1712 = vld [vmem:[%s1708 + $0x18] sm:$0xff]
        %s1713 = scalar_lea.vmem %s4, 1
        %v1714 = vld [vmem:[%s1713] sm:$0x1]
        %v1716 = vperm.slane %v1714, 0
        %1718 = vmatpush.msra.mxu0 0.0
        %1719 = vmatpush.msra.mxu0 0.0
        %1720 = vmatpush.msra.mxu0 0.0
        %1721 = vmatpush.msra.mxu0 0.0
        %1722 = vmatpush.msra.mxu0 0.0
        %1723 = vmatpush.msra.mxu0 0.0
        %1724 = vmatpush.msra.mxu0 0.0
        %1725 = vmatpush.msra.mxu0 0.0
        %1726 = vmatpush.msra.mxu0 0.0
        %1727 = vmatpush.msra.mxu0 0.0
        %1728 = vmatpush.msra.mxu0 0.0
        %1729 = vmatpush.msra.mxu0 0.0
        %v1730 = vand.u32 %v1712, 4294901760
        %1731 = vmatpush.msra.mxu0 %v1730
        %v1732 = vand.u32 %v1711, 4294901760
        %1733 = vmatpush.msra.mxu0 %v1732
        %v1734 = vand.u32 %v1710, 4294901760
        %1735 = vmatpush.msra.mxu0 %v1734
        %v1736 = vand.u32 %v1709, 4294901760
        %1737 = vmatpush.msra.mxu0 %v1736
        %v1738 = vand.u32 %v603, 4294901760
        %v1739 = vsub.f32 %v603, %v1738
        %v1740 = vand.u32 %v1739, 4294901760
        %v1741 = vsub.f32 %v1739, %v1740
        %v1742 = vand.u32 %v1741, 4294901760
        %1743 = vmatmul.f32.gmra.mxu0 %v1742
        %v1744 = vpop.f32.mrf.mxu0
        %v1745 = vadd.f32 %v1716, %v1744
        %1746 = vdwg.mxu0
        %1747 = vmatpush.msra.mxu0 0.0
        %1748 = vmatpush.msra.mxu0 0.0
        %1749 = vmatpush.msra.mxu0 0.0
        %1750 = vmatpush.msra.mxu0 0.0
        %1751 = vmatpush.msra.mxu0 0.0
        %1752 = vmatpush.msra.mxu0 0.0
        %1753 = vmatpush.msra.mxu0 0.0
        %1754 = vmatpush.msra.mxu0 0.0
        %1755 = vmatpush.msra.mxu0 0.0
        %1756 = vmatpush.msra.mxu0 0.0
        %1757 = vmatpush.msra.mxu0 0.0
        %1758 = vmatpush.msra.mxu0 0.0
        %v1759 = vand.u32 %v1712, 4294901760
        %v1760 = vsub.f32 %v1712, %v1759
        %v1761 = vand.u32 %v1760, 4294901760
        %v1762 = vsub.f32 %v1760, %v1761
        %v1763 = vand.u32 %v1762, 4294901760
        %1764 = vmatpush.msra.mxu0 %v1763
        %v1765 = vand.u32 %v1711, 4294901760
        %v1766 = vsub.f32 %v1711, %v1765
        %v1767 = vand.u32 %v1766, 4294901760
        %v1768 = vsub.f32 %v1766, %v1767
        %v1769 = vand.u32 %v1768, 4294901760
        %1770 = vmatpush.msra.mxu0 %v1769
        %v1771 = vand.u32 %v1710, 4294901760
        %v1772 = vsub.f32 %v1710, %v1771
        %v1773 = vand.u32 %v1772, 4294901760
        %v1774 = vsub.f32 %v1772, %v1773
        %v1775 = vand.u32 %v1774, 4294901760
        %1776 = vmatpush.msra.mxu0 %v1775
        %v1777 = vand.u32 %v1709, 4294901760
        %v1778 = vsub.f32 %v1709, %v1777
        %v1779 = vand.u32 %v1778, 4294901760
        %v1780 = vsub.f32 %v1778, %v1779
        %v1781 = vand.u32 %v1780, 4294901760
        %1782 = vmatpush.msra.mxu0 %v1781
        %v1783 = vand.u32 %v603, 4294901760
        %1784 = vmatmul.f32.gmra.mxu0 %v1783
        %v1785 = vpop.f32.mrf.mxu0
        %v1786 = vadd.f32 %v1745, %v1785
        %1787 = vdwg.mxu0
        %1788 = vmatpush.msra.mxu0 0.0
        %1789 = vmatpush.msra.mxu0 0.0
        %1790 = vmatpush.msra.mxu0 0.0
        %1791 = vmatpush.msra.mxu0 0.0
        %1792 = vmatpush.msra.mxu0 0.0
        %1793 = vmatpush.msra.mxu0 0.0
        %1794 = vmatpush.msra.mxu0 0.0
        %1795 = vmatpush.msra.mxu0 0.0
        %1796 = vmatpush.msra.mxu0 0.0
        %1797 = vmatpush.msra.mxu0 0.0
        %1798 = vmatpush.msra.mxu0 0.0
        %1799 = vmatpush.msra.mxu0 0.0
        %v1800 = vand.u32 %v1712, 4294901760
        %v1801 = vsub.f32 %v1712, %v1800
        %1802 = vmatpush.msra.mxu0 %v1801
        %v1803 = vand.u32 %v1711, 4294901760
        %v1804 = vsub.f32 %v1711, %v1803
        %1805 = vmatpush.msra.mxu0 %v1804
        %v1806 = vand.u32 %v1710, 4294901760
        %v1807 = vsub.f32 %v1710, %v1806
        %1808 = vmatpush.msra.mxu0 %v1807
        %v1809 = vand.u32 %v1709, 4294901760
        %v1810 = vsub.f32 %v1709, %v1809
        %1811 = vmatpush.msra.mxu0 %v1810
        %v1812 = vand.u32 %v603, 4294901760
        %v1813 = vsub.f32 %v603, %v1812
        %1814 = vmatmul.f32.gmra.mxu0 %v1813
        %v1815 = vpop.f32.mrf.mxu0
        %v1816 = vadd.f32 %v1786, %v1815
        %1817 = vdwg.mxu0
        %1818 = vmatpush.msra.mxu0 0.0
        %1819 = vmatpush.msra.mxu0 0.0
        %1820 = vmatpush.msra.mxu0 0.0
        %1821 = vmatpush.msra.mxu0 0.0
        %1822 = vmatpush.msra.mxu0 0.0
        %1823 = vmatpush.msra.mxu0 0.0
        %1824 = vmatpush.msra.mxu0 0.0
        %1825 = vmatpush.msra.mxu0 0.0
        %1826 = vmatpush.msra.mxu0 0.0
        %1827 = vmatpush.msra.mxu0 0.0
        %1828 = vmatpush.msra.mxu0 0.0
        %1829 = vmatpush.msra.mxu0 0.0
        %v1830 = vand.u32 %v1712, 4294901760
        %1831 = vmatpush.msra.mxu0 %v1830
        %v1832 = vand.u32 %v1711, 4294901760
        %1833 = vmatpush.msra.mxu0 %v1832
        %v1834 = vand.u32 %v1710, 4294901760
        %1835 = vmatpush.msra.mxu0 %v1834
        %v1836 = vand.u32 %v1709, 4294901760
        %1837 = vmatpush.msra.mxu0 %v1836
        %v1838 = vand.u32 %v603, 4294901760
        %v1839 = vsub.f32 %v603, %v1838
        %v1840 = vand.u32 %v1839, 4294901760
        %1841 = vmatmul.f32.gmra.mxu0 %v1840
        %v1842 = vpop.f32.mrf.mxu0
        %v1843 = vadd.f32 %v1816, %v1842
        %1844 = vdwg.mxu0
        %1845 = vmatpush.msra.mxu0 0.0
        %1846 = vmatpush.msra.mxu0 0.0
        %1847 = vmatpush.msra.mxu0 0.0
        %1848 = vmatpush.msra.mxu0 0.0
        %1849 = vmatpush.msra.mxu0 0.0
        %1850 = vmatpush.msra.mxu0 0.0
        %1851 = vmatpush.msra.mxu0 0.0
        %1852 = vmatpush.msra.mxu0 0.0
        %1853 = vmatpush.msra.mxu0 0.0
        %1854 = vmatpush.msra.mxu0 0.0
        %1855 = vmatpush.msra.mxu0 0.0
        %1856 = vmatpush.msra.mxu0 0.0
        %v1857 = vand.u32 %v1712, 4294901760
        %v1858 = vsub.f32 %v1712, %v1857
        %v1859 = vand.u32 %v1858, 4294901760
        %1860 = vmatpush.msra.mxu0 %v1859
        %v1861 = vand.u32 %v1711, 4294901760
        %v1862 = vsub.f32 %v1711, %v1861
        %v1863 = vand.u32 %v1862, 4294901760
        %1864 = vmatpush.msra.mxu0 %v1863
        %v1865 = vand.u32 %v1710, 4294901760
        %v1866 = vsub.f32 %v1710, %v1865
        %v1867 = vand.u32 %v1866, 4294901760
        %1868 = vmatpush.msra.mxu0 %v1867
        %v1869 = vand.u32 %v1709, 4294901760
        %v1870 = vsub.f32 %v1709, %v1869
        %v1871 = vand.u32 %v1870, 4294901760
        %1872 = vmatpush.msra.mxu0 %v1871
        %v1873 = vand.u32 %v603, 4294901760
        %1874 = vmatmul.f32.gmra.mxu0 %v1873
        %v1875 = vpop.f32.mrf.mxu0
        %v1876 = vadd.f32 %v1843, %v1875
        %1877 = vdwg.mxu0
        %1878 = vmatpush.msra.mxu0 0.0
        %1879 = vmatpush.msra.mxu0 0.0
        %1880 = vmatpush.msra.mxu0 0.0
        %1881 = vmatpush.msra.mxu0 0.0
        %1882 = vmatpush.msra.mxu0 0.0
        %1883 = vmatpush.msra.mxu0 0.0
        %1884 = vmatpush.msra.mxu0 0.0
        %1885 = vmatpush.msra.mxu0 0.0
        %1886 = vmatpush.msra.mxu0 0.0
        %1887 = vmatpush.msra.mxu0 0.0
        %1888 = vmatpush.msra.mxu0 0.0
        %1889 = vmatpush.msra.mxu0 0.0
        %v1890 = vand.u32 %v1712, 4294901760
        %1891 = vmatpush.msra.mxu0 %v1890
        %v1892 = vand.u32 %v1711, 4294901760
        %1893 = vmatpush.msra.mxu0 %v1892
        %v1894 = vand.u32 %v1710, 4294901760
        %1895 = vmatpush.msra.mxu0 %v1894
        %v1896 = vand.u32 %v1709, 4294901760
        %1897 = vmatpush.msra.mxu0 %v1896
        %v1898 = vand.u32 %v603, 4294901760
        %1899 = vmatmul.f32.gmra.mxu0 %v1898
        %v1900 = vpop.f32.mrf.mxu0
        %v1901 = vadd.f32 %v1876, %v1900
        %1902 = vdwg.mxu0
        %s1903 = scalar_lea.vmem %s5, 32
        %v1904 = vld [vmem:[%s1903] sm:$0xff]
        %v1905 = vld [vmem:[%s1903 + $0x8] sm:$0xff]
        %v1906 = vld [vmem:[%s1903 + $0x10] sm:$0xff]
        %v1907 = vld [vmem:[%s1903 + $0x18] sm:$0xff]
        %s1908 = scalar_lea.vmem %s6, 1
        %v1909 = vld [vmem:[%s1908] sm:$0x1]
        %v1911 = vperm.slane %v1909, 0
        %1913 = vmatpush.msra.mxu0 0.0
        %1914 = vmatpush.msra.mxu0 0.0
        %1915 = vmatpush.msra.mxu0 0.0
        %1916 = vmatpush.msra.mxu0 0.0
        %1917 = vmatpush.msra.mxu0 0.0
        %1918 = vmatpush.msra.mxu0 0.0
        %1919 = vmatpush.msra.mxu0 0.0
        %1920 = vmatpush.msra.mxu0 0.0
        %1921 = vmatpush.msra.mxu0 0.0
        %1922 = vmatpush.msra.mxu0 0.0
        %1923 = vmatpush.msra.mxu0 0.0
        %1924 = vmatpush.msra.mxu0 0.0
        %v1925 = vand.u32 %v1907, 4294901760
        %1926 = vmatpush.msra.mxu0 %v1925
        %v1927 = vand.u32 %v1906, 4294901760
        %1928 = vmatpush.msra.mxu0 %v1927
        %v1929 = vand.u32 %v1905, 4294901760
        %1930 = vmatpush.msra.mxu0 %v1929
        %v1931 = vand.u32 %v1904, 4294901760
        %1932 = vmatpush.msra.mxu0 %v1931
        %v1933 = vand.u32 %v603, 4294901760
        %v1934 = vsub.f32 %v603, %v1933
        %v1935 = vand.u32 %v1934, 4294901760
        %v1936 = vsub.f32 %v1934, %v1935
        %v1937 = vand.u32 %v1936, 4294901760
        %1938 = vmatmul.f32.gmra.mxu0 %v1937
        %v1939 = vpop.f32.mrf.mxu0
        %v1940 = vadd.f32 %v1911, %v1939
        %1941 = vdwg.mxu0
        %1942 = vmatpush.msra.mxu0 0.0
        %1943 = vmatpush.msra.mxu0 0.0
        %1944 = vmatpush.msra.mxu0 0.0
        %1945 = vmatpush.msra.mxu0 0.0
        %1946 = vmatpush.msra.mxu0 0.0
        %1947 = vmatpush.msra.mxu0 0.0
        %1948 = vmatpush.msra.mxu0 0.0
        %1949 = vmatpush.msra.mxu0 0.0
        %1950 = vmatpush.msra.mxu0 0.0
        %1951 = vmatpush.msra.mxu0 0.0
        %1952 = vmatpush.msra.mxu0 0.0
        %1953 = vmatpush.msra.mxu0 0.0
        %v1954 = vand.u32 %v1907, 4294901760
        %v1955 = vsub.f32 %v1907, %v1954
        %v1956 = vand.u32 %v1955, 4294901760
        %v1957 = vsub.f32 %v1955, %v1956
        %v1958 = vand.u32 %v1957, 4294901760
        %1959 = vmatpush.msra.mxu0 %v1958
        %v1960 = vand.u32 %v1906, 4294901760
        %v1961 = vsub.f32 %v1906, %v1960
        %v1962 = vand.u32 %v1961, 4294901760
        %v1963 = vsub.f32 %v1961, %v1962
        %v1964 = vand.u32 %v1963, 4294901760
        %1965 = vmatpush.msra.mxu0 %v1964
        %v1966 = vand.u32 %v1905, 4294901760
        %v1967 = vsub.f32 %v1905, %v1966
        %v1968 = vand.u32 %v1967, 4294901760
        %v1969 = vsub.f32 %v1967, %v1968
        %v1970 = vand.u32 %v1969, 4294901760
        %1971 = vmatpush.msra.mxu0 %v1970
        %v1972 = vand.u32 %v1904, 4294901760
        %v1973 = vsub.f32 %v1904, %v1972
        %v1974 = vand.u32 %v1973, 4294901760
        %v1975 = vsub.f32 %v1973, %v1974
        %v1976 = vand.u32 %v1975, 4294901760
        %1977 = vmatpush.msra.mxu0 %v1976
        %v1978 = vand.u32 %v603, 4294901760
        %1979 = vmatmul.f32.gmra.mxu0 %v1978
        %v1980 = vpop.f32.mrf.mxu0
        %v1981 = vadd.f32 %v1940, %v1980
        %1982 = vdwg.mxu0
        %1983 = vmatpush.msra.mxu0 0.0
        %1984 = vmatpush.msra.mxu0 0.0
        %1985 = vmatpush.msra.mxu0 0.0
        %1986 = vmatpush.msra.mxu0 0.0
        %1987 = vmatpush.msra.mxu0 0.0
        %1988 = vmatpush.msra.mxu0 0.0
        %1989 = vmatpush.msra.mxu0 0.0
        %1990 = vmatpush.msra.mxu0 0.0
        %1991 = vmatpush.msra.mxu0 0.0
        %1992 = vmatpush.msra.mxu0 0.0
        %1993 = vmatpush.msra.mxu0 0.0
        %1994 = vmatpush.msra.mxu0 0.0
        %v1995 = vand.u32 %v1907, 4294901760
        %v1996 = vsub.f32 %v1907, %v1995
        %1997 = vmatpush.msra.mxu0 %v1996
        %v1998 = vand.u32 %v1906, 4294901760
        %v1999 = vsub.f32 %v1906, %v1998
        %2000 = vmatpush.msra.mxu0 %v1999
        %v2001 = vand.u32 %v1905, 4294901760
        %v2002 = vsub.f32 %v1905, %v2001
        %2003 = vmatpush.msra.mxu0 %v2002
        %v2004 = vand.u32 %v1904, 4294901760
        %v2005 = vsub.f32 %v1904, %v2004
        %2006 = vmatpush.msra.mxu0 %v2005
        %v2007 = vand.u32 %v603, 4294901760
        %v2008 = vsub.f32 %v603, %v2007
        %2009 = vmatmul.f32.gmra.mxu0 %v2008
        %v2010 = vpop.f32.mrf.mxu0
        %v2011 = vadd.f32 %v1981, %v2010
        %2012 = vdwg.mxu0
        %2013 = vmatpush.msra.mxu0 0.0
        %2014 = vmatpush.msra.mxu0 0.0
        %2015 = vmatpush.msra.mxu0 0.0
        %2016 = vmatpush.msra.mxu0 0.0
        %2017 = vmatpush.msra.mxu0 0.0
        %2018 = vmatpush.msra.mxu0 0.0
        %2019 = vmatpush.msra.mxu0 0.0
        %2020 = vmatpush.msra.mxu0 0.0
        %2021 = vmatpush.msra.mxu0 0.0
        %2022 = vmatpush.msra.mxu0 0.0
        %2023 = vmatpush.msra.mxu0 0.0
        %2024 = vmatpush.msra.mxu0 0.0
        %v2025 = vand.u32 %v1907, 4294901760
        %2026 = vmatpush.msra.mxu0 %v2025
        %v2027 = vand.u32 %v1906, 4294901760
        %2028 = vmatpush.msra.mxu0 %v2027
        %v2029 = vand.u32 %v1905, 4294901760
        %2030 = vmatpush.msra.mxu0 %v2029
        %v2031 = vand.u32 %v1904, 4294901760
        %2032 = vmatpush.msra.mxu0 %v2031
        %v2033 = vand.u32 %v603, 4294901760
        %v2034 = vsub.f32 %v603, %v2033
        %v2035 = vand.u32 %v2034, 4294901760
        %2036 = vmatmul.f32.gmra.mxu0 %v2035
        %v2037 = vpop.f32.mrf.mxu0
        %v2038 = vadd.f32 %v2011, %v2037
        %2039 = vdwg.mxu0
        %2040 = vmatpush.msra.mxu0 0.0
        %2041 = vmatpush.msra.mxu0 0.0
        %2042 = vmatpush.msra.mxu0 0.0
        %2043 = vmatpush.msra.mxu0 0.0
        %2044 = vmatpush.msra.mxu0 0.0
        %2045 = vmatpush.msra.mxu0 0.0
        %2046 = vmatpush.msra.mxu0 0.0
        %2047 = vmatpush.msra.mxu0 0.0
        %2048 = vmatpush.msra.mxu0 0.0
        %2049 = vmatpush.msra.mxu0 0.0
        %2050 = vmatpush.msra.mxu0 0.0
        %2051 = vmatpush.msra.mxu0 0.0
        %v2052 = vand.u32 %v1907, 4294901760
        %v2053 = vsub.f32 %v1907, %v2052
        %v2054 = vand.u32 %v2053, 4294901760
        %2055 = vmatpush.msra.mxu0 %v2054
        %v2056 = vand.u32 %v1906, 4294901760
        %v2057 = vsub.f32 %v1906, %v2056
        %v2058 = vand.u32 %v2057, 4294901760
        %2059 = vmatpush.msra.mxu0 %v2058
        %v2060 = vand.u32 %v1905, 4294901760
        %v2061 = vsub.f32 %v1905, %v2060
        %v2062 = vand.u32 %v2061, 4294901760
        %2063 = vmatpush.msra.mxu0 %v2062
        %v2064 = vand.u32 %v1904, 4294901760
        %v2065 = vsub.f32 %v1904, %v2064
        %v2066 = vand.u32 %v2065, 4294901760
        %2067 = vmatpush.msra.mxu0 %v2066
        %v2068 = vand.u32 %v603, 4294901760
        %2069 = vmatmul.f32.gmra.mxu0 %v2068
        %v2070 = vpop.f32.mrf.mxu0
        %v2071 = vadd.f32 %v2038, %v2070
        %2072 = vdwg.mxu0
        %2073 = vmatpush.msra.mxu0 0.0
        %2074 = vmatpush.msra.mxu0 0.0
        %2075 = vmatpush.msra.mxu0 0.0
        %2076 = vmatpush.msra.mxu0 0.0
        %2077 = vmatpush.msra.mxu0 0.0
        %2078 = vmatpush.msra.mxu0 0.0
        %2079 = vmatpush.msra.mxu0 0.0
        %2080 = vmatpush.msra.mxu0 0.0
        %2081 = vmatpush.msra.mxu0 0.0
        %2082 = vmatpush.msra.mxu0 0.0
        %2083 = vmatpush.msra.mxu0 0.0
        %2084 = vmatpush.msra.mxu0 0.0
        %v2085 = vand.u32 %v1907, 4294901760
        %2086 = vmatpush.msra.mxu0 %v2085
        %v2087 = vand.u32 %v1906, 4294901760
        %2088 = vmatpush.msra.mxu0 %v2087
        %v2089 = vand.u32 %v1905, 4294901760
        %2090 = vmatpush.msra.mxu0 %v2089
        %v2091 = vand.u32 %v1904, 4294901760
        %2092 = vmatpush.msra.mxu0 %v2091
        %v2093 = vand.u32 %v603, 4294901760
        %2094 = vmatmul.f32.gmra.mxu0 %v2093
        %v2095 = vpop.f32.mrf.mxu0
        %v2096 = vadd.f32 %v2071, %v2095
        %2097 = vdwg.mxu0
        %vm2098 = vcmp.eq.s32.totalorder %v593, 1
        %v2099 = vsel %vm2098, %v590, 0.0
        %v2100 = vsel %vm1178, %v2099, 0.0
        %2101 = vadd.xlane.f32.xlu0 %v2100
        %v2102 = vpop.xlane.xlu0 %2101
        %v2103 = vadd.f32 %v2102, 1.0
        %v2104 = vperm.slane %v2103, 0
        %v2105 = vmul.f32 %v1706, %v2104
        %v2107 = vsel %vm1185, %v2105, 0
        %v2110 = vsel %vm1185, %v1901, 0
        %2112 = vmatpush.xpose.msra.mxu0 0.0
        %2113 = vmatpush.xpose.msra.mxu0 0.0
        %2114 = vmatpush.xpose.msra.mxu0 0.0
        %2115 = vmatpush.xpose.msra.mxu0 0.0
        %2116 = vmatpush.xpose.msra.mxu0 0.0
        %2117 = vmatpush.xpose.msra.mxu0 0.0
        %2118 = vmatpush.xpose.msra.mxu0 0.0
        %2119 = vmatpush.xpose.msra.mxu0 0.0
        %2120 = vmatpush.xpose.msra.mxu0 0.0
        %2121 = vmatpush.xpose.msra.mxu0 0.0
        %2122 = vmatpush.xpose.msra.mxu0 0.0
        %2123 = vmatpush.xpose.msra.mxu0 0.0
        %2124 = vmatpush.xpose.msra.mxu0 0.0
        %2125 = vmatpush.xpose.msra.mxu0 0.0
        %2126 = vmatpush.xpose.msra.mxu0 0.0
        %v2127 = vand.u32 %v2110, 4294901760
        %2128 = vmatpush.xpose.msra.mxu0 %v2127
        %v2129 = vand.u32 %v2107, 4294901760
        %v2130 = vsub.f32 %v2107, %v2129
        %v2131 = vand.u32 %v2130, 4294901760
        %v2132 = vsub.f32 %v2130, %v2131
        %v2133 = vand.u32 %v2132, 4294901760
        %2134 = vmatmul.f32.gmra.mxu0 %v2133
        %v2135 = vpop.f32.mrf.mxu0
        %v2136 = vadd.f32 0.0, %v2135
        %2137 = vdwg.mxu0
        %2138 = vmatpush.xpose.msra.mxu0 0.0
        %2139 = vmatpush.xpose.msra.mxu0 0.0
        %2140 = vmatpush.xpose.msra.mxu0 0.0
        %2141 = vmatpush.xpose.msra.mxu0 0.0
        %2142 = vmatpush.xpose.msra.mxu0 0.0
        %2143 = vmatpush.xpose.msra.mxu0 0.0
        %2144 = vmatpush.xpose.msra.mxu0 0.0
        %2145 = vmatpush.xpose.msra.mxu0 0.0
        %2146 = vmatpush.xpose.msra.mxu0 0.0
        %2147 = vmatpush.xpose.msra.mxu0 0.0
        %2148 = vmatpush.xpose.msra.mxu0 0.0
        %2149 = vmatpush.xpose.msra.mxu0 0.0
        %2150 = vmatpush.xpose.msra.mxu0 0.0
        %2151 = vmatpush.xpose.msra.mxu0 0.0
        %2152 = vmatpush.xpose.msra.mxu0 0.0
        %v2153 = vand.u32 %v2110, 4294901760
        %v2154 = vsub.f32 %v2110, %v2153
        %v2155 = vand.u32 %v2154, 4294901760
        %v2156 = vsub.f32 %v2154, %v2155
        %v2157 = vand.u32 %v2156, 4294901760
        %2158 = vmatpush.xpose.msra.mxu0 %v2157
        %v2159 = vand.u32 %v2107, 4294901760
        %2160 = vmatmul.f32.gmra.mxu0 %v2159
        %v2161 = vpop.f32.mrf.mxu0
        %v2162 = vadd.f32 %v2136, %v2161
        %2163 = vdwg.mxu0
        %2164 = vmatpush.xpose.msra.mxu0 0.0
        %2165 = vmatpush.xpose.msra.mxu0 0.0
        %2166 = vmatpush.xpose.msra.mxu0 0.0
        %2167 = vmatpush.xpose.msra.mxu0 0.0
        %2168 = vmatpush.xpose.msra.mxu0 0.0
        %2169 = vmatpush.xpose.msra.mxu0 0.0
        %2170 = vmatpush.xpose.msra.mxu0 0.0
        %2171 = vmatpush.xpose.msra.mxu0 0.0
        %2172 = vmatpush.xpose.msra.mxu0 0.0
        %2173 = vmatpush.xpose.msra.mxu0 0.0
        %2174 = vmatpush.xpose.msra.mxu0 0.0
        %2175 = vmatpush.xpose.msra.mxu0 0.0
        %2176 = vmatpush.xpose.msra.mxu0 0.0
        %2177 = vmatpush.xpose.msra.mxu0 0.0
        %2178 = vmatpush.xpose.msra.mxu0 0.0
        %v2179 = vand.u32 %v2110, 4294901760
        %v2180 = vsub.f32 %v2110, %v2179
        %2181 = vmatpush.xpose.msra.mxu0 %v2180
        %v2182 = vand.u32 %v2107, 4294901760
        %v2183 = vsub.f32 %v2107, %v2182
        %2184 = vmatmul.f32.gmra.mxu0 %v2183
        %v2185 = vpop.f32.mrf.mxu0
        %v2186 = vadd.f32 %v2162, %v2185
        %2187 = vdwg.mxu0
        %2188 = vmatpush.xpose.msra.mxu0 0.0
        %2189 = vmatpush.xpose.msra.mxu0 0.0
        %2190 = vmatpush.xpose.msra.mxu0 0.0
        %2191 = vmatpush.xpose.msra.mxu0 0.0
        %2192 = vmatpush.xpose.msra.mxu0 0.0
        %2193 = vmatpush.xpose.msra.mxu0 0.0
        %2194 = vmatpush.xpose.msra.mxu0 0.0
        %2195 = vmatpush.xpose.msra.mxu0 0.0
        %2196 = vmatpush.xpose.msra.mxu0 0.0
        %2197 = vmatpush.xpose.msra.mxu0 0.0
        %2198 = vmatpush.xpose.msra.mxu0 0.0
        %2199 = vmatpush.xpose.msra.mxu0 0.0
        %2200 = vmatpush.xpose.msra.mxu0 0.0
        %2201 = vmatpush.xpose.msra.mxu0 0.0
        %2202 = vmatpush.xpose.msra.mxu0 0.0
        %v2203 = vand.u32 %v2110, 4294901760
        %2204 = vmatpush.xpose.msra.mxu0 %v2203
        %v2205 = vand.u32 %v2107, 4294901760
        %v2206 = vsub.f32 %v2107, %v2205
        %v2207 = vand.u32 %v2206, 4294901760
        %2208 = vmatmul.f32.gmra.mxu0 %v2207
        %v2209 = vpop.f32.mrf.mxu0
        %v2210 = vadd.f32 %v2186, %v2209
        %2211 = vdwg.mxu0
        %2212 = vmatpush.xpose.msra.mxu0 0.0
        %2213 = vmatpush.xpose.msra.mxu0 0.0
        %2214 = vmatpush.xpose.msra.mxu0 0.0
        %2215 = vmatpush.xpose.msra.mxu0 0.0
        %2216 = vmatpush.xpose.msra.mxu0 0.0
        %2217 = vmatpush.xpose.msra.mxu0 0.0
        %2218 = vmatpush.xpose.msra.mxu0 0.0
        %2219 = vmatpush.xpose.msra.mxu0 0.0
        %2220 = vmatpush.xpose.msra.mxu0 0.0
        %2221 = vmatpush.xpose.msra.mxu0 0.0
        %2222 = vmatpush.xpose.msra.mxu0 0.0
        %2223 = vmatpush.xpose.msra.mxu0 0.0
        %2224 = vmatpush.xpose.msra.mxu0 0.0
        %2225 = vmatpush.xpose.msra.mxu0 0.0
        %2226 = vmatpush.xpose.msra.mxu0 0.0
        %v2227 = vand.u32 %v2110, 4294901760
        %v2228 = vsub.f32 %v2110, %v2227
        %v2229 = vand.u32 %v2228, 4294901760
        %2230 = vmatpush.xpose.msra.mxu0 %v2229
        %v2231 = vand.u32 %v2107, 4294901760
        %2232 = vmatmul.f32.gmra.mxu0 %v2231
        %v2233 = vpop.f32.mrf.mxu0
        %v2234 = vadd.f32 %v2210, %v2233
        %2235 = vdwg.mxu0
        %2236 = vmatpush.xpose.msra.mxu0 0.0
        %2237 = vmatpush.xpose.msra.mxu0 0.0
        %2238 = vmatpush.xpose.msra.mxu0 0.0
        %2239 = vmatpush.xpose.msra.mxu0 0.0
        %2240 = vmatpush.xpose.msra.mxu0 0.0
        %2241 = vmatpush.xpose.msra.mxu0 0.0
        %2242 = vmatpush.xpose.msra.mxu0 0.0
        %2243 = vmatpush.xpose.msra.mxu0 0.0
        %2244 = vmatpush.xpose.msra.mxu0 0.0
        %2245 = vmatpush.xpose.msra.mxu0 0.0
        %2246 = vmatpush.xpose.msra.mxu0 0.0
        %2247 = vmatpush.xpose.msra.mxu0 0.0
        %2248 = vmatpush.xpose.msra.mxu0 0.0
        %2249 = vmatpush.xpose.msra.mxu0 0.0
        %2250 = vmatpush.xpose.msra.mxu0 0.0
        %v2251 = vand.u32 %v2110, 4294901760
        %2252 = vmatpush.xpose.msra.mxu0 %v2251
        %v2253 = vand.u32 %v2107, 4294901760
        %2254 = vmatmul.f32.gmra.mxu0 %v2253
        %v2255 = vpop.f32.mrf.mxu0
        %v2256 = vadd.f32 %v2234, %v2255
        %2257 = vdwg.mxu0
        %v2258 = vmul.f32 %v2256, 0.35355338
        %v2259 = vsel %vm1185, %v2258, -inf
        %2260 = vmax.xlane.f32.xlu0 %v2259
        %v2261 = vpop.xlane.xlu0 %2260
        %v2262 = vsub.f32 %v2258, %v2261
        %v2263 = vmul.f32 %v2262, 1.442695
        %v2264 = vpow.pop %v2263
        %v2265 = vsel %vm1185, %v2264, 0.0
        %2266 = vadd.xlane.f32.xlu0 %v2265
        %v2267 = vpop.xlane.xlu0 %2266
        %v2268 = vrcp.pop %v2267
        %v2269 = vmul.f32 %v2267, %v2268
        %v2270 = vsub.f32 1.0, %v2269
        %v2271 = vmul.f32 %v2268, %v2270
        %v2272 = vadd.f32 %v2268, %v2271
        %vm2273 = vweird.f32 %v2267
        %vm2274 = vweird.f32 %v2268
        %vm2275 = vmor %vm2273, %vm2274
        %v2276 = vsel %vm2275, %v2268, %v2272
        %v2277 = vand.u32 2147483647, %v2267
        %vm2278 = vcmp.eq.f32.partialorder %v2277, 8.507059e+37
        %v2279 = vand.u32 %v2267, 2147483648
        %v2280 = vor.u32 1.1754944e-38, %v2279
        %v2281 = vsel %vm2278, %v2280, %v2276
        %v2282 = vmul.f32 %v2264, %v2281
        %v2284 = vsel %vm1185, %v2282, 0
        %2286 = vmatpush.msra.mxu0 0.0
        %2287 = vmatpush.msra.mxu0 0.0
        %2288 = vmatpush.msra.mxu0 0.0
        %2289 = vmatpush.msra.mxu0 0.0
        %2290 = vmatpush.msra.mxu0 0.0
        %2291 = vmatpush.msra.mxu0 0.0
        %2292 = vmatpush.msra.mxu0 0.0
        %2293 = vmatpush.msra.mxu0 0.0
        %2294 = vmatpush.msra.mxu0 0.0
        %2295 = vmatpush.msra.mxu0 0.0
        %2296 = vmatpush.msra.mxu0 0.0
        %2297 = vmatpush.msra.mxu0 0.0
        %2298 = vmatpush.msra.mxu0 0.0
        %2299 = vmatpush.msra.mxu0 0.0
        %2300 = vmatpush.msra.mxu0 0.0
        %v2301 = vand.u32 %v2096, 4294901760
        %2302 = vmatpush.msra.mxu0 %v2301
        %v2303 = vand.u32 %v2284, 4294901760
        %v2304 = vsub.f32 %v2284, %v2303
        %v2305 = vand.u32 %v2304, 4294901760
        %v2306 = vsub.f32 %v2304, %v2305
        %v2307 = vand.u32 %v2306, 4294901760
        %2308 = vmatmul.f32.gmra.mxu0 %v2307
        %v2309 = vpop.f32.mrf.mxu0
        %v2310 = vadd.f32 0.0, %v2309
        %2311 = vdwg.mxu0
        %2312 = vmatpush.msra.mxu0 0.0
        %2313 = vmatpush.msra.mxu0 0.0
        %2314 = vmatpush.msra.mxu0 0.0
        %2315 = vmatpush.msra.mxu0 0.0
        %2316 = vmatpush.msra.mxu0 0.0
        %2317 = vmatpush.msra.mxu0 0.0
        %2318 = vmatpush.msra.mxu0 0.0
        %2319 = vmatpush.msra.mxu0 0.0
        %2320 = vmatpush.msra.mxu0 0.0
        %2321 = vmatpush.msra.mxu0 0.0
        %2322 = vmatpush.msra.mxu0 0.0
        %2323 = vmatpush.msra.mxu0 0.0
        %2324 = vmatpush.msra.mxu0 0.0
        %2325 = vmatpush.msra.mxu0 0.0
        %2326 = vmatpush.msra.mxu0 0.0
        %v2327 = vand.u32 %v2096, 4294901760
        %v2328 = vsub.f32 %v2096, %v2327
        %v2329 = vand.u32 %v2328, 4294901760
        %v2330 = vsub.f32 %v2328, %v2329
        %v2331 = vand.u32 %v2330, 4294901760
        %2332 = vmatpush.msra.mxu0 %v2331
        %v2333 = vand.u32 %v2284, 4294901760
        %2334 = vmatmul.f32.gmra.mxu0 %v2333
        %v2335 = vpop.f32.mrf.mxu0
        %v2336 = vadd.f32 %v2310, %v2335
        %2337 = vdwg.mxu0
        %2338 = vmatpush.msra.mxu0 0.0
        %2339 = vmatpush.msra.mxu0 0.0
        %2340 = vmatpush.msra.mxu0 0.0
        %2341 = vmatpush.msra.mxu0 0.0
        %2342 = vmatpush.msra.mxu0 0.0
        %2343 = vmatpush.msra.mxu0 0.0
        %2344 = vmatpush.msra.mxu0 0.0
        %2345 = vmatpush.msra.mxu0 0.0
        %2346 = vmatpush.msra.mxu0 0.0
        %2347 = vmatpush.msra.mxu0 0.0
        %2348 = vmatpush.msra.mxu0 0.0
        %2349 = vmatpush.msra.mxu0 0.0
        %2350 = vmatpush.msra.mxu0 0.0
        %2351 = vmatpush.msra.mxu0 0.0
        %2352 = vmatpush.msra.mxu0 0.0
        %v2353 = vand.u32 %v2096, 4294901760
        %v2354 = vsub.f32 %v2096, %v2353
        %2355 = vmatpush.msra.mxu0 %v2354
        %v2356 = vand.u32 %v2284, 4294901760
        %v2357 = vsub.f32 %v2284, %v2356
        %2358 = vmatmul.f32.gmra.mxu0 %v2357
        %v2359 = vpop.f32.mrf.mxu0
        %v2360 = vadd.f32 %v2336, %v2359
        %2361 = vdwg.mxu0
        %2362 = vmatpush.msra.mxu0 0.0
        %2363 = vmatpush.msra.mxu0 0.0
        %2364 = vmatpush.msra.mxu0 0.0
        %2365 = vmatpush.msra.mxu0 0.0
        %2366 = vmatpush.msra.mxu0 0.0
        %2367 = vmatpush.msra.mxu0 0.0
        %2368 = vmatpush.msra.mxu0 0.0
        %2369 = vmatpush.msra.mxu0 0.0
        %2370 = vmatpush.msra.mxu0 0.0
        %2371 = vmatpush.msra.mxu0 0.0
        %2372 = vmatpush.msra.mxu0 0.0
        %2373 = vmatpush.msra.mxu0 0.0
        %2374 = vmatpush.msra.mxu0 0.0
        %2375 = vmatpush.msra.mxu0 0.0
        %2376 = vmatpush.msra.mxu0 0.0
        %v2377 = vand.u32 %v2096, 4294901760
        %2378 = vmatpush.msra.mxu0 %v2377
        %v2379 = vand.u32 %v2284, 4294901760
        %v2380 = vsub.f32 %v2284, %v2379
        %v2381 = vand.u32 %v2380, 4294901760
        %2382 = vmatmul.f32.gmra.mxu0 %v2381
        %v2383 = vpop.f32.mrf.mxu0
        %v2384 = vadd.f32 %v2360, %v2383
        %2385 = vdwg.mxu0
        %2386 = vmatpush.msra.mxu0 0.0
        %2387 = vmatpush.msra.mxu0 0.0
        %2388 = vmatpush.msra.mxu0 0.0
        %2389 = vmatpush.msra.mxu0 0.0
        %2390 = vmatpush.msra.mxu0 0.0
        %2391 = vmatpush.msra.mxu0 0.0
        %2392 = vmatpush.msra.mxu0 0.0
        %2393 = vmatpush.msra.mxu0 0.0
        %2394 = vmatpush.msra.mxu0 0.0
        %2395 = vmatpush.msra.mxu0 0.0
        %2396 = vmatpush.msra.mxu0 0.0
        %2397 = vmatpush.msra.mxu0 0.0
        %2398 = vmatpush.msra.mxu0 0.0
        %2399 = vmatpush.msra.mxu0 0.0
        %2400 = vmatpush.msra.mxu0 0.0
        %v2401 = vand.u32 %v2096, 4294901760
        %v2402 = vsub.f32 %v2096, %v2401
        %v2403 = vand.u32 %v2402, 4294901760
        %2404 = vmatpush.msra.mxu0 %v2403
        %v2405 = vand.u32 %v2284, 4294901760
        %2406 = vmatmul.f32.gmra.mxu0 %v2405
        %v2407 = vpop.f32.mrf.mxu0
        %v2408 = vadd.f32 %v2384, %v2407
        %2409 = vdwg.mxu0
        %2410 = vmatpush.msra.mxu0 0.0
        %2411 = vmatpush.msra.mxu0 0.0
        %2412 = vmatpush.msra.mxu0 0.0
        %2413 = vmatpush.msra.mxu0 0.0
        %2414 = vmatpush.msra.mxu0 0.0
        %2415 = vmatpush.msra.mxu0 0.0
        %2416 = vmatpush.msra.mxu0 0.0
        %2417 = vmatpush.msra.mxu0 0.0
        %2418 = vmatpush.msra.mxu0 0.0
        %2419 = vmatpush.msra.mxu0 0.0
        %2420 = vmatpush.msra.mxu0 0.0
        %2421 = vmatpush.msra.mxu0 0.0
        %2422 = vmatpush.msra.mxu0 0.0
        %2423 = vmatpush.msra.mxu0 0.0
        %2424 = vmatpush.msra.mxu0 0.0
        %v2425 = vand.u32 %v2096, 4294901760
        %2426 = vmatpush.msra.mxu0 %v2425
        %v2427 = vand.u32 %v2284, 4294901760
        %2428 = vmatmul.f32.gmra.mxu0 %v2427
        %v2429 = vpop.f32.mrf.mxu0
        %v2430 = vadd.f32 %v2408, %v2429
        %2431 = vdwg.mxu0
        %s2432 = scalar_lea.vmem %s9, 8
        %v2433 = vld [vmem:[%s2432] sm:$0xff]
        %v2435 = vsel %vm1185, %v2430, 0
        %2437 = vmatpush.msra.mxu0 0.0
        %2438 = vmatpush.msra.mxu0 0.0
        %2439 = vmatpush.msra.mxu0 0.0
        %2440 = vmatpush.msra.mxu0 0.0
        %2441 = vmatpush.msra.mxu0 0.0
        %2442 = vmatpush.msra.mxu0 0.0
        %2443 = vmatpush.msra.mxu0 0.0
        %2444 = vmatpush.msra.mxu0 0.0
        %2445 = vmatpush.msra.mxu0 0.0
        %2446 = vmatpush.msra.mxu0 0.0
        %2447 = vmatpush.msra.mxu0 0.0
        %2448 = vmatpush.msra.mxu0 0.0
        %2449 = vmatpush.msra.mxu0 0.0
        %2450 = vmatpush.msra.mxu0 0.0
        %2451 = vmatpush.msra.mxu0 0.0
        %v2452 = vand.u32 %v2433, 4294901760
        %2453 = vmatpush.msra.mxu0 %v2452
        %v2454 = vand.u32 %v2435, 4294901760
        %v2455 = vsub.f32 %v2435, %v2454
        %v2456 = vand.u32 %v2455, 4294901760
        %v2457 = vsub.f32 %v2455, %v2456
        %v2458 = vand.u32 %v2457, 4294901760
        %2459 = vmatmul.f32.gmra.mxu0 %v2458
        %v2460 = vpop.f32.mrf.mxu0
        %v2461 = vadd.f32 0.0, %v2460
        %2462 = vdwg.mxu0
        %2463 = vmatpush.msra.mxu0 0.0
        %2464 = vmatpush.msra.mxu0 0.0
        %2465 = vmatpush.msra.mxu0 0.0
        %2466 = vmatpush.msra.mxu0 0.0
        %2467 = vmatpush.msra.mxu0 0.0
        %2468 = vmatpush.msra.mxu0 0.0
        %2469 = vmatpush.msra.mxu0 0.0
        %2470 = vmatpush.msra.mxu0 0.0
        %2471 = vmatpush.msra.mxu0 0.0
        %2472 = vmatpush.msra.mxu0 0.0
        %2473 = vmatpush.msra.mxu0 0.0
        %2474 = vmatpush.msra.mxu0 0.0
        %2475 = vmatpush.msra.mxu0 0.0
        %2476 = vmatpush.msra.mxu0 0.0
        %2477 = vmatpush.msra.mxu0 0.0
        %v2478 = vand.u32 %v2433, 4294901760
        %v2479 = vsub.f32 %v2433, %v2478
        %v2480 = vand.u32 %v2479, 4294901760
        %v2481 = vsub.f32 %v2479, %v2480
        %v2482 = vand.u32 %v2481, 4294901760
        %2483 = vmatpush.msra.mxu0 %v2482
        %v2484 = vand.u32 %v2435, 4294901760
        %2485 = vmatmul.f32.gmra.mxu0 %v2484
        %v2486 = vpop.f32.mrf.mxu0
        %v2487 = vadd.f32 %v2461, %v2486
        %2488 = vdwg.mxu0
        %2489 = vmatpush.msra.mxu0 0.0
        %2490 = vmatpush.msra.mxu0 0.0
        %2491 = vmatpush.msra.mxu0 0.0
        %2492 = vmatpush.msra.mxu0 0.0
        %2493 = vmatpush.msra.mxu0 0.0
        %2494 = vmatpush.msra.mxu0 0.0
        %2495 = vmatpush.msra.mxu0 0.0
        %2496 = vmatpush.msra.mxu0 0.0
        %2497 = vmatpush.msra.mxu0 0.0
        %2498 = vmatpush.msra.mxu0 0.0
        %2499 = vmatpush.msra.mxu0 0.0
        %2500 = vmatpush.msra.mxu0 0.0
        %2501 = vmatpush.msra.mxu0 0.0
        %2502 = vmatpush.msra.mxu0 0.0
        %2503 = vmatpush.msra.mxu0 0.0
        %v2504 = vand.u32 %v2433, 4294901760
        %v2505 = vsub.f32 %v2433, %v2504
        %2506 = vmatpush.msra.mxu0 %v2505
        %v2507 = vand.u32 %v2435, 4294901760
        %v2508 = vsub.f32 %v2435, %v2507
        %2509 = vmatmul.f32.gmra.mxu0 %v2508
        %v2510 = vpop.f32.mrf.mxu0
        %v2511 = vadd.f32 %v2487, %v2510
        %2512 = vdwg.mxu0
        %2513 = vmatpush.msra.mxu0 0.0
        %2514 = vmatpush.msra.mxu0 0.0
        %2515 = vmatpush.msra.mxu0 0.0
        %2516 = vmatpush.msra.mxu0 0.0
        %2517 = vmatpush.msra.mxu0 0.0
        %2518 = vmatpush.msra.mxu0 0.0
        %2519 = vmatpush.msra.mxu0 0.0
        %2520 = vmatpush.msra.mxu0 0.0
        %2521 = vmatpush.msra.mxu0 0.0
        %2522 = vmatpush.msra.mxu0 0.0
        %2523 = vmatpush.msra.mxu0 0.0
        %2524 = vmatpush.msra.mxu0 0.0
        %2525 = vmatpush.msra.mxu0 0.0
        %2526 = vmatpush.msra.mxu0 0.0
        %2527 = vmatpush.msra.mxu0 0.0
        %v2528 = vand.u32 %v2433, 4294901760
        %2529 = vmatpush.msra.mxu0 %v2528
        %v2530 = vand.u32 %v2435, 4294901760
        %v2531 = vsub.f32 %v2435, %v2530
        %v2532 = vand.u32 %v2531, 4294901760
        %2533 = vmatmul.f32.gmra.mxu0 %v2532
        %v2534 = vpop.f32.mrf.mxu0
        %v2535 = vadd.f32 %v2511, %v2534
        %2536 = vdwg.mxu0
        %2537 = vmatpush.msra.mxu0 0.0
        %2538 = vmatpush.msra.mxu0 0.0
        %2539 = vmatpush.msra.mxu0 0.0
        %2540 = vmatpush.msra.mxu0 0.0
        %2541 = vmatpush.msra.mxu0 0.0
        %2542 = vmatpush.msra.mxu0 0.0
        %2543 = vmatpush.msra.mxu0 0.0
        %2544 = vmatpush.msra.mxu0 0.0
        %2545 = vmatpush.msra.mxu0 0.0
        %2546 = vmatpush.msra.mxu0 0.0
        %2547 = vmatpush.msra.mxu0 0.0
        %2548 = vmatpush.msra.mxu0 0.0
        %2549 = vmatpush.msra.mxu0 0.0
        %2550 = vmatpush.msra.mxu0 0.0
        %2551 = vmatpush.msra.mxu0 0.0
        %v2552 = vand.u32 %v2433, 4294901760
        %v2553 = vsub.f32 %v2433, %v2552
        %v2554 = vand.u32 %v2553, 4294901760
        %2555 = vmatpush.msra.mxu0 %v2554
        %v2556 = vand.u32 %v2435, 4294901760
        %2557 = vmatmul.f32.gmra.mxu0 %v2556
        %v2558 = vpop.f32.mrf.mxu0
        %v2559 = vadd.f32 %v2535, %v2558
        %2560 = vdwg.mxu0
        %2561 = vmatpush.msra.mxu0 0.0
        %2562 = vmatpush.msra.mxu0 0.0
        %2563 = vmatpush.msra.mxu0 0.0
        %2564 = vmatpush.msra.mxu0 0.0
        %2565 = vmatpush.msra.mxu0 0.0
        %2566 = vmatpush.msra.mxu0 0.0
        %2567 = vmatpush.msra.mxu0 0.0
        %2568 = vmatpush.msra.mxu0 0.0
        %2569 = vmatpush.msra.mxu0 0.0
        %2570 = vmatpush.msra.mxu0 0.0
        %2571 = vmatpush.msra.mxu0 0.0
        %2572 = vmatpush.msra.mxu0 0.0
        %2573 = vmatpush.msra.mxu0 0.0
        %2574 = vmatpush.msra.mxu0 0.0
        %2575 = vmatpush.msra.mxu0 0.0
        %v2576 = vand.u32 %v2433, 4294901760
        %2577 = vmatpush.msra.mxu0 %v2576
        %v2578 = vand.u32 %v2435, 4294901760
        %2579 = vmatmul.f32.gmra.mxu0 %v2578
        %v2580 = vpop.f32.mrf.mxu0
        %v2581 = vadd.f32 %v2559, %v2580
        %2582 = vdwg.mxu0
        %v2584 = vsel %vm1185, %v1510, 0
        %2586 = vmatpush.msra.mxu0 0.0
        %2587 = vmatpush.msra.mxu0 0.0
        %2588 = vmatpush.msra.mxu0 0.0
        %2589 = vmatpush.msra.mxu0 0.0
        %2590 = vmatpush.msra.mxu0 0.0
        %2591 = vmatpush.msra.mxu0 0.0
        %2592 = vmatpush.msra.mxu0 0.0
        %2593 = vmatpush.msra.mxu0 0.0
        %2594 = vmatpush.msra.mxu0 0.0
        %2595 = vmatpush.msra.mxu0 0.0
        %2596 = vmatpush.msra.mxu0 0.0
        %2597 = vmatpush.msra.mxu0 0.0
        %2598 = vmatpush.msra.mxu0 0.0
        %2599 = vmatpush.msra.mxu0 0.0
        %2600 = vmatpush.msra.mxu0 0.0
        %v2601 = vand.u32 %v1512, 4294901760
        %2602 = vmatpush.msra.mxu0 %v2601
        %v2603 = vand.u32 %v2584, 4294901760
        %v2604 = vsub.f32 %v2584, %v2603
        %v2605 = vand.u32 %v2604, 4294901760
        %v2606 = vsub.f32 %v2604, %v2605
        %v2607 = vand.u32 %v2606, 4294901760
        %2608 = vmatmul.f32.gmra.mxu0 %v2607
        %v2609 = vpop.f32.mrf.mxu0
        %v2610 = vadd.f32 %v2581, %v2609
        %2611 = vdwg.mxu0
        %2612 = vmatpush.msra.mxu0 0.0
        %2613 = vmatpush.msra.mxu0 0.0
        %2614 = vmatpush.msra.mxu0 0.0
        %2615 = vmatpush.msra.mxu0 0.0
        %2616 = vmatpush.msra.mxu0 0.0
        %2617 = vmatpush.msra.mxu0 0.0
        %2618 = vmatpush.msra.mxu0 0.0
        %2619 = vmatpush.msra.mxu0 0.0
        %2620 = vmatpush.msra.mxu0 0.0
        %2621 = vmatpush.msra.mxu0 0.0
        %2622 = vmatpush.msra.mxu0 0.0
        %2623 = vmatpush.msra.mxu0 0.0
        %2624 = vmatpush.msra.mxu0 0.0
        %2625 = vmatpush.msra.mxu0 0.0
        %2626 = vmatpush.msra.mxu0 0.0
        %v2627 = vand.u32 %v1512, 4294901760
        %v2628 = vsub.f32 %v1512, %v2627
        %v2629 = vand.u32 %v2628, 4294901760
        %v2630 = vsub.f32 %v2628, %v2629
        %v2631 = vand.u32 %v2630, 4294901760
        %2632 = vmatpush.msra.mxu0 %v2631
        %v2633 = vand.u32 %v2584, 4294901760
        %2634 = vmatmul.f32.gmra.mxu0 %v2633
        %v2635 = vpop.f32.mrf.mxu0
        %v2636 = vadd.f32 %v2610, %v2635
        %2637 = vdwg.mxu0
        %2638 = vmatpush.msra.mxu0 0.0
        %2639 = vmatpush.msra.mxu0 0.0
        %2640 = vmatpush.msra.mxu0 0.0
        %2641 = vmatpush.msra.mxu0 0.0
        %2642 = vmatpush.msra.mxu0 0.0
        %2643 = vmatpush.msra.mxu0 0.0
        %2644 = vmatpush.msra.mxu0 0.0
        %2645 = vmatpush.msra.mxu0 0.0
        %2646 = vmatpush.msra.mxu0 0.0
        %2647 = vmatpush.msra.mxu0 0.0
        %2648 = vmatpush.msra.mxu0 0.0
        %2649 = vmatpush.msra.mxu0 0.0
        %2650 = vmatpush.msra.mxu0 0.0
        %2651 = vmatpush.msra.mxu0 0.0
        %2652 = vmatpush.msra.mxu0 0.0
        %v2653 = vand.u32 %v1512, 4294901760
        %v2654 = vsub.f32 %v1512, %v2653
        %2655 = vmatpush.msra.mxu0 %v2654
        %v2656 = vand.u32 %v2584, 4294901760
        %v2657 = vsub.f32 %v2584, %v2656
        %2658 = vmatmul.f32.gmra.mxu0 %v2657
        %v2659 = vpop.f32.mrf.mxu0
        %v2660 = vadd.f32 %v2636, %v2659
        %2661 = vdwg.mxu0
        %2662 = vmatpush.msra.mxu0 0.0
        %2663 = vmatpush.msra.mxu0 0.0
        %2664 = vmatpush.msra.mxu0 0.0
        %2665 = vmatpush.msra.mxu0 0.0
        %2666 = vmatpush.msra.mxu0 0.0
        %2667 = vmatpush.msra.mxu0 0.0
        %2668 = vmatpush.msra.mxu0 0.0
        %2669 = vmatpush.msra.mxu0 0.0
        %2670 = vmatpush.msra.mxu0 0.0
        %2671 = vmatpush.msra.mxu0 0.0
        %2672 = vmatpush.msra.mxu0 0.0
        %2673 = vmatpush.msra.mxu0 0.0
        %2674 = vmatpush.msra.mxu0 0.0
        %2675 = vmatpush.msra.mxu0 0.0
        %2676 = vmatpush.msra.mxu0 0.0
        %v2677 = vand.u32 %v1512, 4294901760
        %2678 = vmatpush.msra.mxu0 %v2677
        %v2679 = vand.u32 %v2584, 4294901760
        %v2680 = vsub.f32 %v2584, %v2679
        %v2681 = vand.u32 %v2680, 4294901760
        %2682 = vmatmul.f32.gmra.mxu0 %v2681
        %v2683 = vpop.f32.mrf.mxu0
        %v2684 = vadd.f32 %v2660, %v2683
        %2685 = vdwg.mxu0
        %2686 = vmatpush.msra.mxu0 0.0
        %2687 = vmatpush.msra.mxu0 0.0
        %2688 = vmatpush.msra.mxu0 0.0
        %2689 = vmatpush.msra.mxu0 0.0
        %2690 = vmatpush.msra.mxu0 0.0
        %2691 = vmatpush.msra.mxu0 0.0
        %2692 = vmatpush.msra.mxu0 0.0
        %2693 = vmatpush.msra.mxu0 0.0
        %2694 = vmatpush.msra.mxu0 0.0
        %2695 = vmatpush.msra.mxu0 0.0
        %2696 = vmatpush.msra.mxu0 0.0
        %2697 = vmatpush.msra.mxu0 0.0
        %2698 = vmatpush.msra.mxu0 0.0
        %2699 = vmatpush.msra.mxu0 0.0
        %2700 = vmatpush.msra.mxu0 0.0
        %v2701 = vand.u32 %v1512, 4294901760
        %v2702 = vsub.f32 %v1512, %v2701
        %v2703 = vand.u32 %v2702, 4294901760
        %2704 = vmatpush.msra.mxu0 %v2703
        %v2705 = vand.u32 %v2584, 4294901760
        %2706 = vmatmul.f32.gmra.mxu0 %v2705
        %v2707 = vpop.f32.mrf.mxu0
        %v2708 = vadd.f32 %v2684, %v2707
        %2709 = vdwg.mxu0
        %2710 = vmatpush.msra.mxu0 0.0
        %2711 = vmatpush.msra.mxu0 0.0
        %2712 = vmatpush.msra.mxu0 0.0
        %2713 = vmatpush.msra.mxu0 0.0
        %2714 = vmatpush.msra.mxu0 0.0
        %2715 = vmatpush.msra.mxu0 0.0
        %2716 = vmatpush.msra.mxu0 0.0
        %2717 = vmatpush.msra.mxu0 0.0
        %2718 = vmatpush.msra.mxu0 0.0
        %2719 = vmatpush.msra.mxu0 0.0
        %2720 = vmatpush.msra.mxu0 0.0
        %2721 = vmatpush.msra.mxu0 0.0
        %2722 = vmatpush.msra.mxu0 0.0
        %2723 = vmatpush.msra.mxu0 0.0
        %2724 = vmatpush.msra.mxu0 0.0
        %v2725 = vand.u32 %v1512, 4294901760
        %2726 = vmatpush.msra.mxu0 %v2725
        %v2727 = vand.u32 %v2584, 4294901760
        %2728 = vmatmul.f32.gmra.mxu0 %v2727
        %v2729 = vpop.f32.mrf.mxu0
        %v2730 = vadd.f32 %v2708, %v2729
        %2731 = vdwg.mxu0
        %s2732 = scalar_lea.vmem %s1, 64
        %v2733 = vld [vmem:[%s2732] sm:$0xff]
        %v2734 = vld [vmem:[%s2732 + $0x8] sm:$0xff]
        %v2735 = vld [vmem:[%s2732 + $0x10] sm:$0xff]
        %v2736 = vld [vmem:[%s2732 + $0x18] sm:$0xff]
        %s2737 = scalar_lea.vmem %s2, 2
        %v2738 = vld [vmem:[%s2737] sm:$0x1]
        %v2740 = vperm.slane %v2738, 0
        %2742 = vmatpush.msra.mxu0 0.0
        %2743 = vmatpush.msra.mxu0 0.0
        %2744 = vmatpush.msra.mxu0 0.0
        %2745 = vmatpush.msra.mxu0 0.0
        %2746 = vmatpush.msra.mxu0 0.0
        %2747 = vmatpush.msra.mxu0 0.0
        %2748 = vmatpush.msra.mxu0 0.0
        %2749 = vmatpush.msra.mxu0 0.0
        %2750 = vmatpush.msra.mxu0 0.0
        %2751 = vmatpush.msra.mxu0 0.0
        %2752 = vmatpush.msra.mxu0 0.0
        %2753 = vmatpush.msra.mxu0 0.0
        %v2754 = vand.u32 %v2736, 4294901760
        %2755 = vmatpush.msra.mxu0 %v2754
        %v2756 = vand.u32 %v2735, 4294901760
        %2757 = vmatpush.msra.mxu0 %v2756
        %v2758 = vand.u32 %v2734, 4294901760
        %2759 = vmatpush.msra.mxu0 %v2758
        %v2760 = vand.u32 %v2733, 4294901760
        %2761 = vmatpush.msra.mxu0 %v2760
        %v2762 = vand.u32 %v603, 4294901760
        %v2763 = vsub.f32 %v603, %v2762
        %v2764 = vand.u32 %v2763, 4294901760
        %v2765 = vsub.f32 %v2763, %v2764
        %v2766 = vand.u32 %v2765, 4294901760
        %2767 = vmatmul.f32.gmra.mxu0 %v2766
        %v2768 = vpop.f32.mrf.mxu0
        %v2769 = vadd.f32 %v2740, %v2768
        %2770 = vdwg.mxu0
        %2771 = vmatpush.msra.mxu0 0.0
        %2772 = vmatpush.msra.mxu0 0.0
        %2773 = vmatpush.msra.mxu0 0.0
        %2774 = vmatpush.msra.mxu0 0.0
        %2775 = vmatpush.msra.mxu0 0.0
        %2776 = vmatpush.msra.mxu0 0.0
        %2777 = vmatpush.msra.mxu0 0.0
        %2778 = vmatpush.msra.mxu0 0.0
        %2779 = vmatpush.msra.mxu0 0.0
        %2780 = vmatpush.msra.mxu0 0.0
        %2781 = vmatpush.msra.mxu0 0.0
        %2782 = vmatpush.msra.mxu0 0.0
        %v2783 = vand.u32 %v2736, 4294901760
        %v2784 = vsub.f32 %v2736, %v2783
        %v2785 = vand.u32 %v2784, 4294901760
        %v2786 = vsub.f32 %v2784, %v2785
        %v2787 = vand.u32 %v2786, 4294901760
        %2788 = vmatpush.msra.mxu0 %v2787
        %v2789 = vand.u32 %v2735, 4294901760
        %v2790 = vsub.f32 %v2735, %v2789
        %v2791 = vand.u32 %v2790, 4294901760
        %v2792 = vsub.f32 %v2790, %v2791
        %v2793 = vand.u32 %v2792, 4294901760
        %2794 = vmatpush.msra.mxu0 %v2793
        %v2795 = vand.u32 %v2734, 4294901760
        %v2796 = vsub.f32 %v2734, %v2795
        %v2797 = vand.u32 %v2796, 4294901760
        %v2798 = vsub.f32 %v2796, %v2797
        %v2799 = vand.u32 %v2798, 4294901760
        %2800 = vmatpush.msra.mxu0 %v2799
        %v2801 = vand.u32 %v2733, 4294901760
        %v2802 = vsub.f32 %v2733, %v2801
        %v2803 = vand.u32 %v2802, 4294901760
        %v2804 = vsub.f32 %v2802, %v2803
        %v2805 = vand.u32 %v2804, 4294901760
        %2806 = vmatpush.msra.mxu0 %v2805
        %v2807 = vand.u32 %v603, 4294901760
        %2808 = vmatmul.f32.gmra.mxu0 %v2807
        %v2809 = vpop.f32.mrf.mxu0
        %v2810 = vadd.f32 %v2769, %v2809
        %2811 = vdwg.mxu0
        %2812 = vmatpush.msra.mxu0 0.0
        %2813 = vmatpush.msra.mxu0 0.0
        %2814 = vmatpush.msra.mxu0 0.0
        %2815 = vmatpush.msra.mxu0 0.0
        %2816 = vmatpush.msra.mxu0 0.0
        %2817 = vmatpush.msra.mxu0 0.0
        %2818 = vmatpush.msra.mxu0 0.0
        %2819 = vmatpush.msra.mxu0 0.0
        %2820 = vmatpush.msra.mxu0 0.0
        %2821 = vmatpush.msra.mxu0 0.0
        %2822 = vmatpush.msra.mxu0 0.0
        %2823 = vmatpush.msra.mxu0 0.0
        %v2824 = vand.u32 %v2736, 4294901760
        %v2825 = vsub.f32 %v2736, %v2824
        %2826 = vmatpush.msra.mxu0 %v2825
        %v2827 = vand.u32 %v2735, 4294901760
        %v2828 = vsub.f32 %v2735, %v2827
        %2829 = vmatpush.msra.mxu0 %v2828
        %v2830 = vand.u32 %v2734, 4294901760
        %v2831 = vsub.f32 %v2734, %v2830
        %2832 = vmatpush.msra.mxu0 %v2831
        %v2833 = vand.u32 %v2733, 4294901760
        %v2834 = vsub.f32 %v2733, %v2833
        %2835 = vmatpush.msra.mxu0 %v2834
        %v2836 = vand.u32 %v603, 4294901760
        %v2837 = vsub.f32 %v603, %v2836
        %2838 = vmatmul.f32.gmra.mxu0 %v2837
        %v2839 = vpop.f32.mrf.mxu0
        %v2840 = vadd.f32 %v2810, %v2839
        %2841 = vdwg.mxu0
        %2842 = vmatpush.msra.mxu0 0.0
        %2843 = vmatpush.msra.mxu0 0.0
        %2844 = vmatpush.msra.mxu0 0.0
        %2845 = vmatpush.msra.mxu0 0.0
        %2846 = vmatpush.msra.mxu0 0.0
        %2847 = vmatpush.msra.mxu0 0.0
        %2848 = vmatpush.msra.mxu0 0.0
        %2849 = vmatpush.msra.mxu0 0.0
        %2850 = vmatpush.msra.mxu0 0.0
        %2851 = vmatpush.msra.mxu0 0.0
        %2852 = vmatpush.msra.mxu0 0.0
        %2853 = vmatpush.msra.mxu0 0.0
        %v2854 = vand.u32 %v2736, 4294901760
        %2855 = vmatpush.msra.mxu0 %v2854
        %v2856 = vand.u32 %v2735, 4294901760
        %2857 = vmatpush.msra.mxu0 %v2856
        %v2858 = vand.u32 %v2734, 4294901760
        %2859 = vmatpush.msra.mxu0 %v2858
        %v2860 = vand.u32 %v2733, 4294901760
        %2861 = vmatpush.msra.mxu0 %v2860
        %v2862 = vand.u32 %v603, 4294901760
        %v2863 = vsub.f32 %v603, %v2862
        %v2864 = vand.u32 %v2863, 4294901760
        %2865 = vmatmul.f32.gmra.mxu0 %v2864
        %v2866 = vpop.f32.mrf.mxu0
        %v2867 = vadd.f32 %v2840, %v2866
        %2868 = vdwg.mxu0
        %2869 = vmatpush.msra.mxu0 0.0
        %2870 = vmatpush.msra.mxu0 0.0
        %2871 = vmatpush.msra.mxu0 0.0
        %2872 = vmatpush.msra.mxu0 0.0
        %2873 = vmatpush.msra.mxu0 0.0
        %2874 = vmatpush.msra.mxu0 0.0
        %2875 = vmatpush.msra.mxu0 0.0
        %2876 = vmatpush.msra.mxu0 0.0
        %2877 = vmatpush.msra.mxu0 0.0
        %2878 = vmatpush.msra.mxu0 0.0
        %2879 = vmatpush.msra.mxu0 0.0
        %2880 = vmatpush.msra.mxu0 0.0
        %v2881 = vand.u32 %v2736, 4294901760
        %v2882 = vsub.f32 %v2736, %v2881
        %v2883 = vand.u32 %v2882, 4294901760
        %2884 = vmatpush.msra.mxu0 %v2883
        %v2885 = vand.u32 %v2735, 4294901760
        %v2886 = vsub.f32 %v2735, %v2885
        %v2887 = vand.u32 %v2886, 4294901760
        %2888 = vmatpush.msra.mxu0 %v2887
        %v2889 = vand.u32 %v2734, 4294901760
        %v2890 = vsub.f32 %v2734, %v2889
        %v2891 = vand.u32 %v2890, 4294901760
        %2892 = vmatpush.msra.mxu0 %v2891
        %v2893 = vand.u32 %v2733, 4294901760
        %v2894 = vsub.f32 %v2733, %v2893
        %v2895 = vand.u32 %v2894, 4294901760
        %2896 = vmatpush.msra.mxu0 %v2895
        %v2897 = vand.u32 %v603, 4294901760
        %2898 = vmatmul.f32.gmra.mxu0 %v2897
        %v2899 = vpop.f32.mrf.mxu0
        %v2900 = vadd.f32 %v2867, %v2899
        %2901 = vdwg.mxu0
        %2902 = vmatpush.msra.mxu0 0.0
        %2903 = vmatpush.msra.mxu0 0.0
        %2904 = vmatpush.msra.mxu0 0.0
        %2905 = vmatpush.msra.mxu0 0.0
        %2906 = vmatpush.msra.mxu0 0.0
        %2907 = vmatpush.msra.mxu0 0.0
        %2908 = vmatpush.msra.mxu0 0.0
        %2909 = vmatpush.msra.mxu0 0.0
        %2910 = vmatpush.msra.mxu0 0.0
        %2911 = vmatpush.msra.mxu0 0.0
        %2912 = vmatpush.msra.mxu0 0.0
        %2913 = vmatpush.msra.mxu0 0.0
        %v2914 = vand.u32 %v2736, 4294901760
        %2915 = vmatpush.msra.mxu0 %v2914
        %v2916 = vand.u32 %v2735, 4294901760
        %2917 = vmatpush.msra.mxu0 %v2916
        %v2918 = vand.u32 %v2734, 4294901760
        %2919 = vmatpush.msra.mxu0 %v2918
        %v2920 = vand.u32 %v2733, 4294901760
        %2921 = vmatpush.msra.mxu0 %v2920
        %v2922 = vand.u32 %v603, 4294901760
        %2923 = vmatmul.f32.gmra.mxu0 %v2922
        %v2924 = vpop.f32.mrf.mxu0
        %v2925 = vadd.f32 %v2900, %v2924
        %2926 = vdwg.mxu0
        %s2927 = scalar_lea.vmem %s3, 64
        %v2928 = vld [vmem:[%s2927] sm:$0xff]
        %v2929 = vld [vmem:[%s2927 + $0x8] sm:$0xff]
        %v2930 = vld [vmem:[%s2927 + $0x10] sm:$0xff]
        %v2931 = vld [vmem:[%s2927 + $0x18] sm:$0xff]
        %s2932 = scalar_lea.vmem %s4, 2
        %v2933 = vld [vmem:[%s2932] sm:$0x1]
        %v2935 = vperm.slane %v2933, 0
        %2937 = vmatpush.msra.mxu0 0.0
        %2938 = vmatpush.msra.mxu0 0.0
        %2939 = vmatpush.msra.mxu0 0.0
        %2940 = vmatpush.msra.mxu0 0.0
        %2941 = vmatpush.msra.mxu0 0.0
        %2942 = vmatpush.msra.mxu0 0.0
        %2943 = vmatpush.msra.mxu0 0.0
        %2944 = vmatpush.msra.mxu0 0.0
        %2945 = vmatpush.msra.mxu0 0.0
        %2946 = vmatpush.msra.mxu0 0.0
        %2947 = vmatpush.msra.mxu0 0.0
        %2948 = vmatpush.msra.mxu0 0.0
        %v2949 = vand.u32 %v2931, 4294901760
        %2950 = vmatpush.msra.mxu0 %v2949
        %v2951 = vand.u32 %v2930, 4294901760
        %2952 = vmatpush.msra.mxu0 %v2951
        %v2953 = vand.u32 %v2929, 4294901760
        %2954 = vmatpush.msra.mxu0 %v2953
        %v2955 = vand.u32 %v2928, 4294901760
        %2956 = vmatpush.msra.mxu0 %v2955
        %v2957 = vand.u32 %v603, 4294901760
        %v2958 = vsub.f32 %v603, %v2957
        %v2959 = vand.u32 %v2958, 4294901760
        %v2960 = vsub.f32 %v2958, %v2959
        %v2961 = vand.u32 %v2960, 4294901760
        %2962 = vmatmul.f32.gmra.mxu0 %v2961
        %v2963 = vpop.f32.mrf.mxu0
        %v2964 = vadd.f32 %v2935, %v2963
        %2965 = vdwg.mxu0
        %2966 = vmatpush.msra.mxu0 0.0
        %2967 = vmatpush.msra.mxu0 0.0
        %2968 = vmatpush.msra.mxu0 0.0
        %2969 = vmatpush.msra.mxu0 0.0
        %2970 = vmatpush.msra.mxu0 0.0
        %2971 = vmatpush.msra.mxu0 0.0
        %2972 = vmatpush.msra.mxu0 0.0
        %2973 = vmatpush.msra.mxu0 0.0
        %2974 = vmatpush.msra.mxu0 0.0
        %2975 = vmatpush.msra.mxu0 0.0
        %2976 = vmatpush.msra.mxu0 0.0
        %2977 = vmatpush.msra.mxu0 0.0
        %v2978 = vand.u32 %v2931, 4294901760
        %v2979 = vsub.f32 %v2931, %v2978
        %v2980 = vand.u32 %v2979, 4294901760
        %v2981 = vsub.f32 %v2979, %v2980
        %v2982 = vand.u32 %v2981, 4294901760
        %2983 = vmatpush.msra.mxu0 %v2982
        %v2984 = vand.u32 %v2930, 4294901760
        %v2985 = vsub.f32 %v2930, %v2984
        %v2986 = vand.u32 %v2985, 4294901760
        %v2987 = vsub.f32 %v2985, %v2986
        %v2988 = vand.u32 %v2987, 4294901760
        %2989 = vmatpush.msra.mxu0 %v2988
        %v2990 = vand.u32 %v2929, 4294901760
        %v2991 = vsub.f32 %v2929, %v2990
        %v2992 = vand.u32 %v2991, 4294901760
        %v2993 = vsub.f32 %v2991, %v2992
        %v2994 = vand.u32 %v2993, 4294901760
        %2995 = vmatpush.msra.mxu0 %v2994
        %v2996 = vand.u32 %v2928, 4294901760
        %v2997 = vsub.f32 %v2928, %v2996
        %v2998 = vand.u32 %v2997, 4294901760
        %v2999 = vsub.f32 %v2997, %v2998
        %v3000 = vand.u32 %v2999, 4294901760
        %3001 = vmatpush.msra.mxu0 %v3000
        %v3002 = vand.u32 %v603, 4294901760
        %3003 = vmatmul.f32.gmra.mxu0 %v3002
        %v3004 = vpop.f32.mrf.mxu0
        %v3005 = vadd.f32 %v2964, %v3004
        %3006 = vdwg.mxu0
        %3007 = vmatpush.msra.mxu0 0.0
        %3008 = vmatpush.msra.mxu0 0.0
        %3009 = vmatpush.msra.mxu0 0.0
        %3010 = vmatpush.msra.mxu0 0.0
        %3011 = vmatpush.msra.mxu0 0.0
        %3012 = vmatpush.msra.mxu0 0.0
        %3013 = vmatpush.msra.mxu0 0.0
        %3014 = vmatpush.msra.mxu0 0.0
        %3015 = vmatpush.msra.mxu0 0.0
        %3016 = vmatpush.msra.mxu0 0.0
        %3017 = vmatpush.msra.mxu0 0.0
        %3018 = vmatpush.msra.mxu0 0.0
        %v3019 = vand.u32 %v2931, 4294901760
        %v3020 = vsub.f32 %v2931, %v3019
        %3021 = vmatpush.msra.mxu0 %v3020
        %v3022 = vand.u32 %v2930, 4294901760
        %v3023 = vsub.f32 %v2930, %v3022
        %3024 = vmatpush.msra.mxu0 %v3023
        %v3025 = vand.u32 %v2929, 4294901760
        %v3026 = vsub.f32 %v2929, %v3025
        %3027 = vmatpush.msra.mxu0 %v3026
        %v3028 = vand.u32 %v2928, 4294901760
        %v3029 = vsub.f32 %v2928, %v3028
        %3030 = vmatpush.msra.mxu0 %v3029
        %v3031 = vand.u32 %v603, 4294901760
        %v3032 = vsub.f32 %v603, %v3031
        %3033 = vmatmul.f32.gmra.mxu0 %v3032
        %v3034 = vpop.f32.mrf.mxu0
        %v3035 = vadd.f32 %v3005, %v3034
        %3036 = vdwg.mxu0
        %3037 = vmatpush.msra.mxu0 0.0
        %3038 = vmatpush.msra.mxu0 0.0
        %3039 = vmatpush.msra.mxu0 0.0
        %3040 = vmatpush.msra.mxu0 0.0
        %3041 = vmatpush.msra.mxu0 0.0
        %3042 = vmatpush.msra.mxu0 0.0
        %3043 = vmatpush.msra.mxu0 0.0
        %3044 = vmatpush.msra.mxu0 0.0
        %3045 = vmatpush.msra.mxu0 0.0
        %3046 = vmatpush.msra.mxu0 0.0
        %3047 = vmatpush.msra.mxu0 0.0
        %3048 = vmatpush.msra.mxu0 0.0
        %v3049 = vand.u32 %v2931, 4294901760
        %3050 = vmatpush.msra.mxu0 %v3049
        %v3051 = vand.u32 %v2930, 4294901760
        %3052 = vmatpush.msra.mxu0 %v3051
        %v3053 = vand.u32 %v2929, 4294901760
        %3054 = vmatpush.msra.mxu0 %v3053
        %v3055 = vand.u32 %v2928, 4294901760
        %3056 = vmatpush.msra.mxu0 %v3055
        %v3057 = vand.u32 %v603, 4294901760
        %v3058 = vsub.f32 %v603, %v3057
        %v3059 = vand.u32 %v3058, 4294901760
        %3060 = vmatmul.f32.gmra.mxu0 %v3059
        %v3061 = vpop.f32.mrf.mxu0
        %v3062 = vadd.f32 %v3035, %v3061
        %3063 = vdwg.mxu0
        %3064 = vmatpush.msra.mxu0 0.0
        %3065 = vmatpush.msra.mxu0 0.0
        %3066 = vmatpush.msra.mxu0 0.0
        %3067 = vmatpush.msra.mxu0 0.0
        %3068 = vmatpush.msra.mxu0 0.0
        %3069 = vmatpush.msra.mxu0 0.0
        %3070 = vmatpush.msra.mxu0 0.0
        %3071 = vmatpush.msra.mxu0 0.0
        %3072 = vmatpush.msra.mxu0 0.0
        %3073 = vmatpush.msra.mxu0 0.0
        %3074 = vmatpush.msra.mxu0 0.0
        %3075 = vmatpush.msra.mxu0 0.0
        %v3076 = vand.u32 %v2931, 4294901760
        %v3077 = vsub.f32 %v2931, %v3076
        %v3078 = vand.u32 %v3077, 4294901760
        %3079 = vmatpush.msra.mxu0 %v3078
        %v3080 = vand.u32 %v2930, 4294901760
        %v3081 = vsub.f32 %v2930, %v3080
        %v3082 = vand.u32 %v3081, 4294901760
        %3083 = vmatpush.msra.mxu0 %v3082
        %v3084 = vand.u32 %v2929, 4294901760
        %v3085 = vsub.f32 %v2929, %v3084
        %v3086 = vand.u32 %v3085, 4294901760
        %3087 = vmatpush.msra.mxu0 %v3086
        %v3088 = vand.u32 %v2928, 4294901760
        %v3089 = vsub.f32 %v2928, %v3088
        %v3090 = vand.u32 %v3089, 4294901760
        %3091 = vmatpush.msra.mxu0 %v3090
        %v3092 = vand.u32 %v603, 4294901760
        %3093 = vmatmul.f32.gmra.mxu0 %v3092
        %v3094 = vpop.f32.mrf.mxu0
        %v3095 = vadd.f32 %v3062, %v3094
        %3096 = vdwg.mxu0
        %3097 = vmatpush.msra.mxu0 0.0
        %3098 = vmatpush.msra.mxu0 0.0
        %3099 = vmatpush.msra.mxu0 0.0
        %3100 = vmatpush.msra.mxu0 0.0
        %3101 = vmatpush.msra.mxu0 0.0
        %3102 = vmatpush.msra.mxu0 0.0
        %3103 = vmatpush.msra.mxu0 0.0
        %3104 = vmatpush.msra.mxu0 0.0
        %3105 = vmatpush.msra.mxu0 0.0
        %3106 = vmatpush.msra.mxu0 0.0
        %3107 = vmatpush.msra.mxu0 0.0
        %3108 = vmatpush.msra.mxu0 0.0
        %v3109 = vand.u32 %v2931, 4294901760
        %3110 = vmatpush.msra.mxu0 %v3109
        %v3111 = vand.u32 %v2930, 4294901760
        %3112 = vmatpush.msra.mxu0 %v3111
        %v3113 = vand.u32 %v2929, 4294901760
        %3114 = vmatpush.msra.mxu0 %v3113
        %v3115 = vand.u32 %v2928, 4294901760
        %3116 = vmatpush.msra.mxu0 %v3115
        %v3117 = vand.u32 %v603, 4294901760
        %3118 = vmatmul.f32.gmra.mxu0 %v3117
        %v3119 = vpop.f32.mrf.mxu0
        %v3120 = vadd.f32 %v3095, %v3119
        %3121 = vdwg.mxu0
        %s3122 = scalar_lea.vmem %s5, 64
        %v3123 = vld [vmem:[%s3122] sm:$0xff]
        %v3124 = vld [vmem:[%s3122 + $0x8] sm:$0xff]
        %v3125 = vld [vmem:[%s3122 + $0x10] sm:$0xff]
        %v3126 = vld [vmem:[%s3122 + $0x18] sm:$0xff]
        %s3127 = scalar_lea.vmem %s6, 2
        %v3128 = vld [vmem:[%s3127] sm:$0x1]
        %v3130 = vperm.slane %v3128, 0
        %3132 = vmatpush.msra.mxu0 0.0
        %3133 = vmatpush.msra.mxu0 0.0
        %3134 = vmatpush.msra.mxu0 0.0
        %3135 = vmatpush.msra.mxu0 0.0
        %3136 = vmatpush.msra.mxu0 0.0
        %3137 = vmatpush.msra.mxu0 0.0
        %3138 = vmatpush.msra.mxu0 0.0
        %3139 = vmatpush.msra.mxu0 0.0
        %3140 = vmatpush.msra.mxu0 0.0
        %3141 = vmatpush.msra.mxu0 0.0
        %3142 = vmatpush.msra.mxu0 0.0
        %3143 = vmatpush.msra.mxu0 0.0
        %v3144 = vand.u32 %v3126, 4294901760
        %3145 = vmatpush.msra.mxu0 %v3144
        %v3146 = vand.u32 %v3125, 4294901760
        %3147 = vmatpush.msra.mxu0 %v3146
        %v3148 = vand.u32 %v3124, 4294901760
        %3149 = vmatpush.msra.mxu0 %v3148
        %v3150 = vand.u32 %v3123, 4294901760
        %3151 = vmatpush.msra.mxu0 %v3150
        %v3152 = vand.u32 %v603, 4294901760
        %v3153 = vsub.f32 %v603, %v3152
        %v3154 = vand.u32 %v3153, 4294901760
        %v3155 = vsub.f32 %v3153, %v3154
        %v3156 = vand.u32 %v3155, 4294901760
        %3157 = vmatmul.f32.gmra.mxu0 %v3156
        %v3158 = vpop.f32.mrf.mxu0
        %v3159 = vadd.f32 %v3130, %v3158
        %3160 = vdwg.mxu0
        %3161 = vmatpush.msra.mxu0 0.0
        %3162 = vmatpush.msra.mxu0 0.0
        %3163 = vmatpush.msra.mxu0 0.0
        %3164 = vmatpush.msra.mxu0 0.0
        %3165 = vmatpush.msra.mxu0 0.0
        %3166 = vmatpush.msra.mxu0 0.0
        %3167 = vmatpush.msra.mxu0 0.0
        %3168 = vmatpush.msra.mxu0 0.0
        %3169 = vmatpush.msra.mxu0 0.0
        %3170 = vmatpush.msra.mxu0 0.0
        %3171 = vmatpush.msra.mxu0 0.0
        %3172 = vmatpush.msra.mxu0 0.0
        %v3173 = vand.u32 %v3126, 4294901760
        %v3174 = vsub.f32 %v3126, %v3173
        %v3175 = vand.u32 %v3174, 4294901760
        %v3176 = vsub.f32 %v3174, %v3175
        %v3177 = vand.u32 %v3176, 4294901760
        %3178 = vmatpush.msra.mxu0 %v3177
        %v3179 = vand.u32 %v3125, 4294901760
        %v3180 = vsub.f32 %v3125, %v3179
        %v3181 = vand.u32 %v3180, 4294901760
        %v3182 = vsub.f32 %v3180, %v3181
        %v3183 = vand.u32 %v3182, 4294901760
        %3184 = vmatpush.msra.mxu0 %v3183
        %v3185 = vand.u32 %v3124, 4294901760
        %v3186 = vsub.f32 %v3124, %v3185
        %v3187 = vand.u32 %v3186, 4294901760
        %v3188 = vsub.f32 %v3186, %v3187
        %v3189 = vand.u32 %v3188, 4294901760
        %3190 = vmatpush.msra.mxu0 %v3189
        %v3191 = vand.u32 %v3123, 4294901760
        %v3192 = vsub.f32 %v3123, %v3191
        %v3193 = vand.u32 %v3192, 4294901760
        %v3194 = vsub.f32 %v3192, %v3193
        %v3195 = vand.u32 %v3194, 4294901760
        %3196 = vmatpush.msra.mxu0 %v3195
        %v3197 = vand.u32 %v603, 4294901760
        %3198 = vmatmul.f32.gmra.mxu0 %v3197
        %v3199 = vpop.f32.mrf.mxu0
        %v3200 = vadd.f32 %v3159, %v3199
        %3201 = vdwg.mxu0
        %3202 = vmatpush.msra.mxu0 0.0
        %3203 = vmatpush.msra.mxu0 0.0
        %3204 = vmatpush.msra.mxu0 0.0
        %3205 = vmatpush.msra.mxu0 0.0
        %3206 = vmatpush.msra.mxu0 0.0
        %3207 = vmatpush.msra.mxu0 0.0
        %3208 = vmatpush.msra.mxu0 0.0
        %3209 = vmatpush.msra.mxu0 0.0
        %3210 = vmatpush.msra.mxu0 0.0
        %3211 = vmatpush.msra.mxu0 0.0
        %3212 = vmatpush.msra.mxu0 0.0
        %3213 = vmatpush.msra.mxu0 0.0
        %v3214 = vand.u32 %v3126, 4294901760
        %v3215 = vsub.f32 %v3126, %v3214
        %3216 = vmatpush.msra.mxu0 %v3215
        %v3217 = vand.u32 %v3125, 4294901760
        %v3218 = vsub.f32 %v3125, %v3217
        %3219 = vmatpush.msra.mxu0 %v3218
        %v3220 = vand.u32 %v3124, 4294901760
        %v3221 = vsub.f32 %v3124, %v3220
        %3222 = vmatpush.msra.mxu0 %v3221
        %v3223 = vand.u32 %v3123, 4294901760
        %v3224 = vsub.f32 %v3123, %v3223
        %3225 = vmatpush.msra.mxu0 %v3224
        %v3226 = vand.u32 %v603, 4294901760
        %v3227 = vsub.f32 %v603, %v3226
        %3228 = vmatmul.f32.gmra.mxu0 %v3227
        %v3229 = vpop.f32.mrf.mxu0
        %v3230 = vadd.f32 %v3200, %v3229
        %3231 = vdwg.mxu0
        %3232 = vmatpush.msra.mxu0 0.0
        %3233 = vmatpush.msra.mxu0 0.0
        %3234 = vmatpush.msra.mxu0 0.0
        %3235 = vmatpush.msra.mxu0 0.0
        %3236 = vmatpush.msra.mxu0 0.0
        %3237 = vmatpush.msra.mxu0 0.0
        %3238 = vmatpush.msra.mxu0 0.0
        %3239 = vmatpush.msra.mxu0 0.0
        %3240 = vmatpush.msra.mxu0 0.0
        %3241 = vmatpush.msra.mxu0 0.0
        %3242 = vmatpush.msra.mxu0 0.0
        %3243 = vmatpush.msra.mxu0 0.0
        %v3244 = vand.u32 %v3126, 4294901760
        %3245 = vmatpush.msra.mxu0 %v3244
        %v3246 = vand.u32 %v3125, 4294901760
        %3247 = vmatpush.msra.mxu0 %v3246
        %v3248 = vand.u32 %v3124, 4294901760
        %3249 = vmatpush.msra.mxu0 %v3248
        %v3250 = vand.u32 %v3123, 4294901760
        %3251 = vmatpush.msra.mxu0 %v3250
        %v3252 = vand.u32 %v603, 4294901760
        %v3253 = vsub.f32 %v603, %v3252
        %v3254 = vand.u32 %v3253, 4294901760
        %3255 = vmatmul.f32.gmra.mxu0 %v3254
        %v3256 = vpop.f32.mrf.mxu0
        %v3257 = vadd.f32 %v3230, %v3256
        %3258 = vdwg.mxu0
        %3259 = vmatpush.msra.mxu0 0.0
        %3260 = vmatpush.msra.mxu0 0.0
        %3261 = vmatpush.msra.mxu0 0.0
        %3262 = vmatpush.msra.mxu0 0.0
        %3263 = vmatpush.msra.mxu0 0.0
        %3264 = vmatpush.msra.mxu0 0.0
        %3265 = vmatpush.msra.mxu0 0.0
        %3266 = vmatpush.msra.mxu0 0.0
        %3267 = vmatpush.msra.mxu0 0.0
        %3268 = vmatpush.msra.mxu0 0.0
        %3269 = vmatpush.msra.mxu0 0.0
        %3270 = vmatpush.msra.mxu0 0.0
        %v3271 = vand.u32 %v3126, 4294901760
        %v3272 = vsub.f32 %v3126, %v3271
        %v3273 = vand.u32 %v3272, 4294901760
        %3274 = vmatpush.msra.mxu0 %v3273
        %v3275 = vand.u32 %v3125, 4294901760
        %v3276 = vsub.f32 %v3125, %v3275
        %v3277 = vand.u32 %v3276, 4294901760
        %3278 = vmatpush.msra.mxu0 %v3277
        %v3279 = vand.u32 %v3124, 4294901760
        %v3280 = vsub.f32 %v3124, %v3279
        %v3281 = vand.u32 %v3280, 4294901760
        %3282 = vmatpush.msra.mxu0 %v3281
        %v3283 = vand.u32 %v3123, 4294901760
        %v3284 = vsub.f32 %v3123, %v3283
        %v3285 = vand.u32 %v3284, 4294901760
        %3286 = vmatpush.msra.mxu0 %v3285
        %v3287 = vand.u32 %v603, 4294901760
        %3288 = vmatmul.f32.gmra.mxu0 %v3287
        %v3289 = vpop.f32.mrf.mxu0
        %v3290 = vadd.f32 %v3257, %v3289
        %3291 = vdwg.mxu0
        %3292 = vmatpush.msra.mxu0 0.0
        %3293 = vmatpush.msra.mxu0 0.0
        %3294 = vmatpush.msra.mxu0 0.0
        %3295 = vmatpush.msra.mxu0 0.0
        %3296 = vmatpush.msra.mxu0 0.0
        %3297 = vmatpush.msra.mxu0 0.0
        %3298 = vmatpush.msra.mxu0 0.0
        %3299 = vmatpush.msra.mxu0 0.0
        %3300 = vmatpush.msra.mxu0 0.0
        %3301 = vmatpush.msra.mxu0 0.0
        %3302 = vmatpush.msra.mxu0 0.0
        %3303 = vmatpush.msra.mxu0 0.0
        %v3304 = vand.u32 %v3126, 4294901760
        %3305 = vmatpush.msra.mxu0 %v3304
        %v3306 = vand.u32 %v3125, 4294901760
        %3307 = vmatpush.msra.mxu0 %v3306
        %v3308 = vand.u32 %v3124, 4294901760
        %3309 = vmatpush.msra.mxu0 %v3308
        %v3310 = vand.u32 %v3123, 4294901760
        %3311 = vmatpush.msra.mxu0 %v3310
        %v3312 = vand.u32 %v603, 4294901760
        %3313 = vmatmul.f32.gmra.mxu0 %v3312
        %v3314 = vpop.f32.mrf.mxu0
        %v3315 = vadd.f32 %v3290, %v3314
        %3316 = vdwg.mxu0
        %vm3317 = vcmp.eq.s32.totalorder %v593, 2
        %v3318 = vsel %vm3317, %v590, 0.0
        %v3319 = vsel %vm1178, %v3318, 0.0
        %3320 = vadd.xlane.f32.xlu0 %v3319
        %v3321 = vpop.xlane.xlu0 %3320
        %v3322 = vadd.f32 %v3321, 1.0
        %v3323 = vperm.slane %v3322, 0
        %v3324 = vmul.f32 %v2925, %v3323
        %v3326 = vsel %vm1185, %v3324, 0
        %v3329 = vsel %vm1185, %v3120, 0
        %3331 = vmatpush.xpose.msra.mxu0 0.0
        %3332 = vmatpush.xpose.msra.mxu0 0.0
        %3333 = vmatpush.xpose.msra.mxu0 0.0
        %3334 = vmatpush.xpose.msra.mxu0 0.0
        %3335 = vmatpush.xpose.msra.mxu0 0.0
        %3336 = vmatpush.xpose.msra.mxu0 0.0
        %3337 = vmatpush.xpose.msra.mxu0 0.0
        %3338 = vmatpush.xpose.msra.mxu0 0.0
        %3339 = vmatpush.xpose.msra.mxu0 0.0
        %3340 = vmatpush.xpose.msra.mxu0 0.0
        %3341 = vmatpush.xpose.msra.mxu0 0.0
        %3342 = vmatpush.xpose.msra.mxu0 0.0
        %3343 = vmatpush.xpose.msra.mxu0 0.0
        %3344 = vmatpush.xpose.msra.mxu0 0.0
        %3345 = vmatpush.xpose.msra.mxu0 0.0
        %v3346 = vand.u32 %v3329, 4294901760
        %3347 = vmatpush.xpose.msra.mxu0 %v3346
        %v3348 = vand.u32 %v3326, 4294901760
        %v3349 = vsub.f32 %v3326, %v3348
        %v3350 = vand.u32 %v3349, 4294901760
        %v3351 = vsub.f32 %v3349, %v3350
        %v3352 = vand.u32 %v3351, 4294901760
        %3353 = vmatmul.f32.gmra.mxu0 %v3352
        %v3354 = vpop.f32.mrf.mxu0
        %v3355 = vadd.f32 0.0, %v3354
        %3356 = vdwg.mxu0
        %3357 = vmatpush.xpose.msra.mxu0 0.0
        %3358 = vmatpush.xpose.msra.mxu0 0.0
        %3359 = vmatpush.xpose.msra.mxu0 0.0
        %3360 = vmatpush.xpose.msra.mxu0 0.0
        %3361 = vmatpush.xpose.msra.mxu0 0.0
        %3362 = vmatpush.xpose.msra.mxu0 0.0
        %3363 = vmatpush.xpose.msra.mxu0 0.0
        %3364 = vmatpush.xpose.msra.mxu0 0.0
        %3365 = vmatpush.xpose.msra.mxu0 0.0
        %3366 = vmatpush.xpose.msra.mxu0 0.0
        %3367 = vmatpush.xpose.msra.mxu0 0.0
        %3368 = vmatpush.xpose.msra.mxu0 0.0
        %3369 = vmatpush.xpose.msra.mxu0 0.0
        %3370 = vmatpush.xpose.msra.mxu0 0.0
        %3371 = vmatpush.xpose.msra.mxu0 0.0
        %v3372 = vand.u32 %v3329, 4294901760
        %v3373 = vsub.f32 %v3329, %v3372
        %v3374 = vand.u32 %v3373, 4294901760
        %v3375 = vsub.f32 %v3373, %v3374
        %v3376 = vand.u32 %v3375, 4294901760
        %3377 = vmatpush.xpose.msra.mxu0 %v3376
        %v3378 = vand.u32 %v3326, 4294901760
        %3379 = vmatmul.f32.gmra.mxu0 %v3378
        %v3380 = vpop.f32.mrf.mxu0
        %v3381 = vadd.f32 %v3355, %v3380
        %3382 = vdwg.mxu0
        %3383 = vmatpush.xpose.msra.mxu0 0.0
        %3384 = vmatpush.xpose.msra.mxu0 0.0
        %3385 = vmatpush.xpose.msra.mxu0 0.0
        %3386 = vmatpush.xpose.msra.mxu0 0.0
        %3387 = vmatpush.xpose.msra.mxu0 0.0
        %3388 = vmatpush.xpose.msra.mxu0 0.0
        %3389 = vmatpush.xpose.msra.mxu0 0.0
        %3390 = vmatpush.xpose.msra.mxu0 0.0
        %3391 = vmatpush.xpose.msra.mxu0 0.0
        %3392 = vmatpush.xpose.msra.mxu0 0.0
        %3393 = vmatpush.xpose.msra.mxu0 0.0
        %3394 = vmatpush.xpose.msra.mxu0 0.0
        %3395 = vmatpush.xpose.msra.mxu0 0.0
        %3396 = vmatpush.xpose.msra.mxu0 0.0
        %3397 = vmatpush.xpose.msra.mxu0 0.0
        %v3398 = vand.u32 %v3329, 4294901760
        %v3399 = vsub.f32 %v3329, %v3398
        %3400 = vmatpush.xpose.msra.mxu0 %v3399
        %v3401 = vand.u32 %v3326, 4294901760
        %v3402 = vsub.f32 %v3326, %v3401
        %3403 = vmatmul.f32.gmra.mxu0 %v3402
        %v3404 = vpop.f32.mrf.mxu0
        %v3405 = vadd.f32 %v3381, %v3404
        %3406 = vdwg.mxu0
        %3407 = vmatpush.xpose.msra.mxu0 0.0
        %3408 = vmatpush.xpose.msra.mxu0 0.0
        %3409 = vmatpush.xpose.msra.mxu0 0.0
        %3410 = vmatpush.xpose.msra.mxu0 0.0
        %3411 = vmatpush.xpose.msra.mxu0 0.0
        %3412 = vmatpush.xpose.msra.mxu0 0.0
        %3413 = vmatpush.xpose.msra.mxu0 0.0
        %3414 = vmatpush.xpose.msra.mxu0 0.0
        %3415 = vmatpush.xpose.msra.mxu0 0.0
        %3416 = vmatpush.xpose.msra.mxu0 0.0
        %3417 = vmatpush.xpose.msra.mxu0 0.0
        %3418 = vmatpush.xpose.msra.mxu0 0.0
        %3419 = vmatpush.xpose.msra.mxu0 0.0
        %3420 = vmatpush.xpose.msra.mxu0 0.0
        %3421 = vmatpush.xpose.msra.mxu0 0.0
        %v3422 = vand.u32 %v3329, 4294901760
        %3423 = vmatpush.xpose.msra.mxu0 %v3422
        %v3424 = vand.u32 %v3326, 4294901760
        %v3425 = vsub.f32 %v3326, %v3424
        %v3426 = vand.u32 %v3425, 4294901760
        %3427 = vmatmul.f32.gmra.mxu0 %v3426
        %v3428 = vpop.f32.mrf.mxu0
        %v3429 = vadd.f32 %v3405, %v3428
        %3430 = vdwg.mxu0
        %3431 = vmatpush.xpose.msra.mxu0 0.0
        %3432 = vmatpush.xpose.msra.mxu0 0.0
        %3433 = vmatpush.xpose.msra.mxu0 0.0
        %3434 = vmatpush.xpose.msra.mxu0 0.0
        %3435 = vmatpush.xpose.msra.mxu0 0.0
        %3436 = vmatpush.xpose.msra.mxu0 0.0
        %3437 = vmatpush.xpose.msra.mxu0 0.0
        %3438 = vmatpush.xpose.msra.mxu0 0.0
        %3439 = vmatpush.xpose.msra.mxu0 0.0
        %3440 = vmatpush.xpose.msra.mxu0 0.0
        %3441 = vmatpush.xpose.msra.mxu0 0.0
        %3442 = vmatpush.xpose.msra.mxu0 0.0
        %3443 = vmatpush.xpose.msra.mxu0 0.0
        %3444 = vmatpush.xpose.msra.mxu0 0.0
        %3445 = vmatpush.xpose.msra.mxu0 0.0
        %v3446 = vand.u32 %v3329, 4294901760
        %v3447 = vsub.f32 %v3329, %v3446
        %v3448 = vand.u32 %v3447, 4294901760
        %3449 = vmatpush.xpose.msra.mxu0 %v3448
        %v3450 = vand.u32 %v3326, 4294901760
        %3451 = vmatmul.f32.gmra.mxu0 %v3450
        %v3452 = vpop.f32.mrf.mxu0
        %v3453 = vadd.f32 %v3429, %v3452
        %3454 = vdwg.mxu0
        %3455 = vmatpush.xpose.msra.mxu0 0.0
        %3456 = vmatpush.xpose.msra.mxu0 0.0
        %3457 = vmatpush.xpose.msra.mxu0 0.0
        %3458 = vmatpush.xpose.msra.mxu0 0.0
        %3459 = vmatpush.xpose.msra.mxu0 0.0
        %3460 = vmatpush.xpose.msra.mxu0 0.0
        %3461 = vmatpush.xpose.msra.mxu0 0.0
        %3462 = vmatpush.xpose.msra.mxu0 0.0
        %3463 = vmatpush.xpose.msra.mxu0 0.0
        %3464 = vmatpush.xpose.msra.mxu0 0.0
        %3465 = vmatpush.xpose.msra.mxu0 0.0
        %3466 = vmatpush.xpose.msra.mxu0 0.0
        %3467 = vmatpush.xpose.msra.mxu0 0.0
        %3468 = vmatpush.xpose.msra.mxu0 0.0
        %3469 = vmatpush.xpose.msra.mxu0 0.0
        %v3470 = vand.u32 %v3329, 4294901760
        %3471 = vmatpush.xpose.msra.mxu0 %v3470
        %v3472 = vand.u32 %v3326, 4294901760
        %3473 = vmatmul.f32.gmra.mxu0 %v3472
        %v3474 = vpop.f32.mrf.mxu0
        %v3475 = vadd.f32 %v3453, %v3474
        %3476 = vdwg.mxu0
        %v3477 = vmul.f32 %v3475, 0.35355338
        %v3478 = vsel %vm1185, %v3477, -inf
        %3479 = vmax.xlane.f32.xlu0 %v3478
        %v3480 = vpop.xlane.xlu0 %3479
        %v3481 = vsub.f32 %v3477, %v3480
        %v3482 = vmul.f32 %v3481, 1.442695
        %v3483 = vpow.pop %v3482
        %v3484 = vsel %vm1185, %v3483, 0.0
        %3485 = vadd.xlane.f32.xlu0 %v3484
        %v3486 = vpop.xlane.xlu0 %3485
        %v3487 = vrcp.pop %v3486
        %v3488 = vmul.f32 %v3486, %v3487
        %v3489 = vsub.f32 1.0, %v3488
        %v3490 = vmul.f32 %v3487, %v3489
        %v3491 = vadd.f32 %v3487, %v3490
        %vm3492 = vweird.f32 %v3486
        %vm3493 = vweird.f32 %v3487
        %vm3494 = vmor %vm3492, %vm3493
        %v3495 = vsel %vm3494, %v3487, %v3491
        %v3496 = vand.u32 2147483647, %v3486
        %vm3497 = vcmp.eq.f32.partialorder %v3496, 8.507059e+37
        %v3498 = vand.u32 %v3486, 2147483648
        %v3499 = vor.u32 1.1754944e-38, %v3498
        %v3500 = vsel %vm3497, %v3499, %v3495
        %v3501 = vmul.f32 %v3483, %v3500
        %v3503 = vsel %vm1185, %v3501, 0
        %3505 = vmatpush.msra.mxu0 0.0
        %3506 = vmatpush.msra.mxu0 0.0
        %3507 = vmatpush.msra.mxu0 0.0
        %3508 = vmatpush.msra.mxu0 0.0
        %3509 = vmatpush.msra.mxu0 0.0
        %3510 = vmatpush.msra.mxu0 0.0
        %3511 = vmatpush.msra.mxu0 0.0
        %3512 = vmatpush.msra.mxu0 0.0
        %3513 = vmatpush.msra.mxu0 0.0
        %3514 = vmatpush.msra.mxu0 0.0
        %3515 = vmatpush.msra.mxu0 0.0
        %3516 = vmatpush.msra.mxu0 0.0
        %3517 = vmatpush.msra.mxu0 0.0
        %3518 = vmatpush.msra.mxu0 0.0
        %3519 = vmatpush.msra.mxu0 0.0
        %v3520 = vand.u32 %v3315, 4294901760
        %3521 = vmatpush.msra.mxu0 %v3520
        %v3522 = vand.u32 %v3503, 4294901760
        %v3523 = vsub.f32 %v3503, %v3522
        %v3524 = vand.u32 %v3523, 4294901760
        %v3525 = vsub.f32 %v3523, %v3524
        %v3526 = vand.u32 %v3525, 4294901760
        %3527 = vmatmul.f32.gmra.mxu0 %v3526
        %v3528 = vpop.f32.mrf.mxu0
        %v3529 = vadd.f32 0.0, %v3528
        %3530 = vdwg.mxu0
        %3531 = vmatpush.msra.mxu0 0.0
        %3532 = vmatpush.msra.mxu0 0.0
        %3533 = vmatpush.msra.mxu0 0.0
        %3534 = vmatpush.msra.mxu0 0.0
        %3535 = vmatpush.msra.mxu0 0.0
        %3536 = vmatpush.msra.mxu0 0.0
        %3537 = vmatpush.msra.mxu0 0.0
        %3538 = vmatpush.msra.mxu0 0.0
        %3539 = vmatpush.msra.mxu0 0.0
        %3540 = vmatpush.msra.mxu0 0.0
        %3541 = vmatpush.msra.mxu0 0.0
        %3542 = vmatpush.msra.mxu0 0.0
        %3543 = vmatpush.msra.mxu0 0.0
        %3544 = vmatpush.msra.mxu0 0.0
        %3545 = vmatpush.msra.mxu0 0.0
        %v3546 = vand.u32 %v3315, 4294901760
        %v3547 = vsub.f32 %v3315, %v3546
        %v3548 = vand.u32 %v3547, 4294901760
        %v3549 = vsub.f32 %v3547, %v3548
        %v3550 = vand.u32 %v3549, 4294901760
        %3551 = vmatpush.msra.mxu0 %v3550
        %v3552 = vand.u32 %v3503, 4294901760
        %3553 = vmatmul.f32.gmra.mxu0 %v3552
        %v3554 = vpop.f32.mrf.mxu0
        %v3555 = vadd.f32 %v3529, %v3554
        %3556 = vdwg.mxu0
        %3557 = vmatpush.msra.mxu0 0.0
        %3558 = vmatpush.msra.mxu0 0.0
        %3559 = vmatpush.msra.mxu0 0.0
        %3560 = vmatpush.msra.mxu0 0.0
        %3561 = vmatpush.msra.mxu0 0.0
        %3562 = vmatpush.msra.mxu0 0.0
        %3563 = vmatpush.msra.mxu0 0.0
        %3564 = vmatpush.msra.mxu0 0.0
        %3565 = vmatpush.msra.mxu0 0.0
        %3566 = vmatpush.msra.mxu0 0.0
        %3567 = vmatpush.msra.mxu0 0.0
        %3568 = vmatpush.msra.mxu0 0.0
        %3569 = vmatpush.msra.mxu0 0.0
        %3570 = vmatpush.msra.mxu0 0.0
        %3571 = vmatpush.msra.mxu0 0.0
        %v3572 = vand.u32 %v3315, 4294901760
        %v3573 = vsub.f32 %v3315, %v3572
        %3574 = vmatpush.msra.mxu0 %v3573
        %v3575 = vand.u32 %v3503, 4294901760
        %v3576 = vsub.f32 %v3503, %v3575
        %3577 = vmatmul.f32.gmra.mxu0 %v3576
        %v3578 = vpop.f32.mrf.mxu0
        %v3579 = vadd.f32 %v3555, %v3578
        %3580 = vdwg.mxu0
        %3581 = vmatpush.msra.mxu0 0.0
        %3582 = vmatpush.msra.mxu0 0.0
        %3583 = vmatpush.msra.mxu0 0.0
        %3584 = vmatpush.msra.mxu0 0.0
        %3585 = vmatpush.msra.mxu0 0.0
        %3586 = vmatpush.msra.mxu0 0.0
        %3587 = vmatpush.msra.mxu0 0.0
        %3588 = vmatpush.msra.mxu0 0.0
        %3589 = vmatpush.msra.mxu0 0.0
        %3590 = vmatpush.msra.mxu0 0.0
        %3591 = vmatpush.msra.mxu0 0.0
        %3592 = vmatpush.msra.mxu0 0.0
        %3593 = vmatpush.msra.mxu0 0.0
        %3594 = vmatpush.msra.mxu0 0.0
        %3595 = vmatpush.msra.mxu0 0.0
        %v3596 = vand.u32 %v3315, 4294901760
        %3597 = vmatpush.msra.mxu0 %v3596
        %v3598 = vand.u32 %v3503, 4294901760
        %v3599 = vsub.f32 %v3503, %v3598
        %v3600 = vand.u32 %v3599, 4294901760
        %3601 = vmatmul.f32.gmra.mxu0 %v3600
        %v3602 = vpop.f32.mrf.mxu0
        %v3603 = vadd.f32 %v3579, %v3602
        %3604 = vdwg.mxu0
        %3605 = vmatpush.msra.mxu0 0.0
        %3606 = vmatpush.msra.mxu0 0.0
        %3607 = vmatpush.msra.mxu0 0.0
        %3608 = vmatpush.msra.mxu0 0.0
        %3609 = vmatpush.msra.mxu0 0.0
        %3610 = vmatpush.msra.mxu0 0.0
        %3611 = vmatpush.msra.mxu0 0.0
        %3612 = vmatpush.msra.mxu0 0.0
        %3613 = vmatpush.msra.mxu0 0.0
        %3614 = vmatpush.msra.mxu0 0.0
        %3615 = vmatpush.msra.mxu0 0.0
        %3616 = vmatpush.msra.mxu0 0.0
        %3617 = vmatpush.msra.mxu0 0.0
        %3618 = vmatpush.msra.mxu0 0.0
        %3619 = vmatpush.msra.mxu0 0.0
        %v3620 = vand.u32 %v3315, 4294901760
        %v3621 = vsub.f32 %v3315, %v3620
        %v3622 = vand.u32 %v3621, 4294901760
        %3623 = vmatpush.msra.mxu0 %v3622
        %v3624 = vand.u32 %v3503, 4294901760
        %3625 = vmatmul.f32.gmra.mxu0 %v3624
        %v3626 = vpop.f32.mrf.mxu0
        %v3627 = vadd.f32 %v3603, %v3626
        %3628 = vdwg.mxu0
        %3629 = vmatpush.msra.mxu0 0.0
        %3630 = vmatpush.msra.mxu0 0.0
        %3631 = vmatpush.msra.mxu0 0.0
        %3632 = vmatpush.msra.mxu0 0.0
        %3633 = vmatpush.msra.mxu0 0.0
        %3634 = vmatpush.msra.mxu0 0.0
        %3635 = vmatpush.msra.mxu0 0.0
        %3636 = vmatpush.msra.mxu0 0.0
        %3637 = vmatpush.msra.mxu0 0.0
        %3638 = vmatpush.msra.mxu0 0.0
        %3639 = vmatpush.msra.mxu0 0.0
        %3640 = vmatpush.msra.mxu0 0.0
        %3641 = vmatpush.msra.mxu0 0.0
        %3642 = vmatpush.msra.mxu0 0.0
        %3643 = vmatpush.msra.mxu0 0.0
        %v3644 = vand.u32 %v3315, 4294901760
        %3645 = vmatpush.msra.mxu0 %v3644
        %v3646 = vand.u32 %v3503, 4294901760
        %3647 = vmatmul.f32.gmra.mxu0 %v3646
        %v3648 = vpop.f32.mrf.mxu0
        %v3649 = vadd.f32 %v3627, %v3648
        %3650 = vdwg.mxu0
        %s3651 = scalar_lea.vmem %s9, 16
        %v3652 = vld [vmem:[%s3651] sm:$0xff]
        %v3654 = vsel %vm1185, %v3649, 0
        %3656 = vmatpush.msra.mxu0 0.0
        %3657 = vmatpush.msra.mxu0 0.0
        %3658 = vmatpush.msra.mxu0 0.0
        %3659 = vmatpush.msra.mxu0 0.0
        %3660 = vmatpush.msra.mxu0 0.0
        %3661 = vmatpush.msra.mxu0 0.0
        %3662 = vmatpush.msra.mxu0 0.0
        %3663 = vmatpush.msra.mxu0 0.0
        %3664 = vmatpush.msra.mxu0 0.0
        %3665 = vmatpush.msra.mxu0 0.0
        %3666 = vmatpush.msra.mxu0 0.0
        %3667 = vmatpush.msra.mxu0 0.0
        %3668 = vmatpush.msra.mxu0 0.0
        %3669 = vmatpush.msra.mxu0 0.0
        %3670 = vmatpush.msra.mxu0 0.0
        %v3671 = vand.u32 %v3652, 4294901760
        %3672 = vmatpush.msra.mxu0 %v3671
        %v3673 = vand.u32 %v3654, 4294901760
        %v3674 = vsub.f32 %v3654, %v3673
        %v3675 = vand.u32 %v3674, 4294901760
        %v3676 = vsub.f32 %v3674, %v3675
        %v3677 = vand.u32 %v3676, 4294901760
        %3678 = vmatmul.f32.gmra.mxu0 %v3677
        %v3679 = vpop.f32.mrf.mxu0
        %v3680 = vadd.f32 0.0, %v3679
        %3681 = vdwg.mxu0
        %3682 = vmatpush.msra.mxu0 0.0
        %3683 = vmatpush.msra.mxu0 0.0
        %3684 = vmatpush.msra.mxu0 0.0
        %3685 = vmatpush.msra.mxu0 0.0
        %3686 = vmatpush.msra.mxu0 0.0
        %3687 = vmatpush.msra.mxu0 0.0
        %3688 = vmatpush.msra.mxu0 0.0
        %3689 = vmatpush.msra.mxu0 0.0
        %3690 = vmatpush.msra.mxu0 0.0
        %3691 = vmatpush.msra.mxu0 0.0
        %3692 = vmatpush.msra.mxu0 0.0
        %3693 = vmatpush.msra.mxu0 0.0
        %3694 = vmatpush.msra.mxu0 0.0
        %3695 = vmatpush.msra.mxu0 0.0
        %3696 = vmatpush.msra.mxu0 0.0
        %v3697 = vand.u32 %v3652, 4294901760
        %v3698 = vsub.f32 %v3652, %v3697
        %v3699 = vand.u32 %v3698, 4294901760
        %v3700 = vsub.f32 %v3698, %v3699
        %v3701 = vand.u32 %v3700, 4294901760
        %3702 = vmatpush.msra.mxu0 %v3701
        %v3703 = vand.u32 %v3654, 4294901760
        %3704 = vmatmul.f32.gmra.mxu0 %v3703
        %v3705 = vpop.f32.mrf.mxu0
        %v3706 = vadd.f32 %v3680, %v3705
        %3707 = vdwg.mxu0
        %3708 = vmatpush.msra.mxu0 0.0
        %3709 = vmatpush.msra.mxu0 0.0
        %3710 = vmatpush.msra.mxu0 0.0
        %3711 = vmatpush.msra.mxu0 0.0
        %3712 = vmatpush.msra.mxu0 0.0
        %3713 = vmatpush.msra.mxu0 0.0
        %3714 = vmatpush.msra.mxu0 0.0
        %3715 = vmatpush.msra.mxu0 0.0
        %3716 = vmatpush.msra.mxu0 0.0
        %3717 = vmatpush.msra.mxu0 0.0
        %3718 = vmatpush.msra.mxu0 0.0
        %3719 = vmatpush.msra.mxu0 0.0
        %3720 = vmatpush.msra.mxu0 0.0
        %3721 = vmatpush.msra.mxu0 0.0
        %3722 = vmatpush.msra.mxu0 0.0
        %v3723 = vand.u32 %v3652, 4294901760
        %v3724 = vsub.f32 %v3652, %v3723
        %3725 = vmatpush.msra.mxu0 %v3724
        %v3726 = vand.u32 %v3654, 4294901760
        %v3727 = vsub.f32 %v3654, %v3726
        %3728 = vmatmul.f32.gmra.mxu0 %v3727
        %v3729 = vpop.f32.mrf.mxu0
        %v3730 = vadd.f32 %v3706, %v3729
        %3731 = vdwg.mxu0
        %3732 = vmatpush.msra.mxu0 0.0
        %3733 = vmatpush.msra.mxu0 0.0
        %3734 = vmatpush.msra.mxu0 0.0
        %3735 = vmatpush.msra.mxu0 0.0
        %3736 = vmatpush.msra.mxu0 0.0
        %3737 = vmatpush.msra.mxu0 0.0
        %3738 = vmatpush.msra.mxu0 0.0
        %3739 = vmatpush.msra.mxu0 0.0
        %3740 = vmatpush.msra.mxu0 0.0
        %3741 = vmatpush.msra.mxu0 0.0
        %3742 = vmatpush.msra.mxu0 0.0
        %3743 = vmatpush.msra.mxu0 0.0
        %3744 = vmatpush.msra.mxu0 0.0
        %3745 = vmatpush.msra.mxu0 0.0
        %3746 = vmatpush.msra.mxu0 0.0
        %v3747 = vand.u32 %v3652, 4294901760
        %3748 = vmatpush.msra.mxu0 %v3747
        %v3749 = vand.u32 %v3654, 4294901760
        %v3750 = vsub.f32 %v3654, %v3749
        %v3751 = vand.u32 %v3750, 4294901760
        %3752 = vmatmul.f32.gmra.mxu0 %v3751
        %v3753 = vpop.f32.mrf.mxu0
        %v3754 = vadd.f32 %v3730, %v3753
        %3755 = vdwg.mxu0
        %3756 = vmatpush.msra.mxu0 0.0
        %3757 = vmatpush.msra.mxu0 0.0
        %3758 = vmatpush.msra.mxu0 0.0
        %3759 = vmatpush.msra.mxu0 0.0
        %3760 = vmatpush.msra.mxu0 0.0
        %3761 = vmatpush.msra.mxu0 0.0
        %3762 = vmatpush.msra.mxu0 0.0
        %3763 = vmatpush.msra.mxu0 0.0
        %3764 = vmatpush.msra.mxu0 0.0
        %3765 = vmatpush.msra.mxu0 0.0
        %3766 = vmatpush.msra.mxu0 0.0
        %3767 = vmatpush.msra.mxu0 0.0
        %3768 = vmatpush.msra.mxu0 0.0
        %3769 = vmatpush.msra.mxu0 0.0
        %3770 = vmatpush.msra.mxu0 0.0
        %v3771 = vand.u32 %v3652, 4294901760
        %v3772 = vsub.f32 %v3652, %v3771
        %v3773 = vand.u32 %v3772, 4294901760
        %3774 = vmatpush.msra.mxu0 %v3773
        %v3775 = vand.u32 %v3654, 4294901760
        %3776 = vmatmul.f32.gmra.mxu0 %v3775
        %v3777 = vpop.f32.mrf.mxu0
        %v3778 = vadd.f32 %v3754, %v3777
        %3779 = vdwg.mxu0
        %3780 = vmatpush.msra.mxu0 0.0
        %3781 = vmatpush.msra.mxu0 0.0
        %3782 = vmatpush.msra.mxu0 0.0
        %3783 = vmatpush.msra.mxu0 0.0
        %3784 = vmatpush.msra.mxu0 0.0
        %3785 = vmatpush.msra.mxu0 0.0
        %3786 = vmatpush.msra.mxu0 0.0
        %3787 = vmatpush.msra.mxu0 0.0
        %3788 = vmatpush.msra.mxu0 0.0
        %3789 = vmatpush.msra.mxu0 0.0
        %3790 = vmatpush.msra.mxu0 0.0
        %3791 = vmatpush.msra.mxu0 0.0
        %3792 = vmatpush.msra.mxu0 0.0
        %3793 = vmatpush.msra.mxu0 0.0
        %3794 = vmatpush.msra.mxu0 0.0
        %v3795 = vand.u32 %v3652, 4294901760
        %3796 = vmatpush.msra.mxu0 %v3795
        %v3797 = vand.u32 %v3654, 4294901760
        %3798 = vmatmul.f32.gmra.mxu0 %v3797
        %v3799 = vpop.f32.mrf.mxu0
        %v3800 = vadd.f32 %v3778, %v3799
        %3801 = vdwg.mxu0
        %v3802 = vadd.f32 %v2730, %v3800
        %s3803 = scalar_lea.vmem %s1, 96
        %v3804 = vld [vmem:[%s3803] sm:$0xff]
        %v3805 = vld [vmem:[%s3803 + $0x8] sm:$0xff]
        %v3806 = vld [vmem:[%s3803 + $0x10] sm:$0xff]
        %v3807 = vld [vmem:[%s3803 + $0x18] sm:$0xff]
        %s3808 = scalar_lea.vmem %s2, 3
        %v3809 = vld [vmem:[%s3808] sm:$0x1]
        %v3811 = vperm.slane %v3809, 0
        %3813 = vmatpush.msra.mxu0 0.0
        %3814 = vmatpush.msra.mxu0 0.0
        %3815 = vmatpush.msra.mxu0 0.0
        %3816 = vmatpush.msra.mxu0 0.0
        %3817 = vmatpush.msra.mxu0 0.0
        %3818 = vmatpush.msra.mxu0 0.0
        %3819 = vmatpush.msra.mxu0 0.0
        %3820 = vmatpush.msra.mxu0 0.0
        %3821 = vmatpush.msra.mxu0 0.0
        %3822 = vmatpush.msra.mxu0 0.0
        %3823 = vmatpush.msra.mxu0 0.0
        %3824 = vmatpush.msra.mxu0 0.0
        %v3825 = vand.u32 %v3807, 4294901760
        %3826 = vmatpush.msra.mxu0 %v3825
        %v3827 = vand.u32 %v3806, 4294901760
        %3828 = vmatpush.msra.mxu0 %v3827
        %v3829 = vand.u32 %v3805, 4294901760
        %3830 = vmatpush.msra.mxu0 %v3829
        %v3831 = vand.u32 %v3804, 4294901760
        %3832 = vmatpush.msra.mxu0 %v3831
        %v3833 = vand.u32 %v603, 4294901760
        %v3834 = vsub.f32 %v603, %v3833
        %v3835 = vand.u32 %v3834, 4294901760
        %v3836 = vsub.f32 %v3834, %v3835
        %v3837 = vand.u32 %v3836, 4294901760
        %3838 = vmatmul.f32.gmra.mxu0 %v3837
        %v3839 = vpop.f32.mrf.mxu0
        %v3840 = vadd.f32 %v3811, %v3839
        %3841 = vdwg.mxu0
        %3842 = vmatpush.msra.mxu0 0.0
        %3843 = vmatpush.msra.mxu0 0.0
        %3844 = vmatpush.msra.mxu0 0.0
        %3845 = vmatpush.msra.mxu0 0.0
        %3846 = vmatpush.msra.mxu0 0.0
        %3847 = vmatpush.msra.mxu0 0.0
        %3848 = vmatpush.msra.mxu0 0.0
        %3849 = vmatpush.msra.mxu0 0.0
        %3850 = vmatpush.msra.mxu0 0.0
        %3851 = vmatpush.msra.mxu0 0.0
        %3852 = vmatpush.msra.mxu0 0.0
        %3853 = vmatpush.msra.mxu0 0.0
        %v3854 = vand.u32 %v3807, 4294901760
        %v3855 = vsub.f32 %v3807, %v3854
        %v3856 = vand.u32 %v3855, 4294901760
        %v3857 = vsub.f32 %v3855, %v3856
        %v3858 = vand.u32 %v3857, 4294901760
        %3859 = vmatpush.msra.mxu0 %v3858
        %v3860 = vand.u32 %v3806, 4294901760
        %v3861 = vsub.f32 %v3806, %v3860
        %v3862 = vand.u32 %v3861, 4294901760
        %v3863 = vsub.f32 %v3861, %v3862
        %v3864 = vand.u32 %v3863, 4294901760
        %3865 = vmatpush.msra.mxu0 %v3864
        %v3866 = vand.u32 %v3805, 4294901760
        %v3867 = vsub.f32 %v3805, %v3866
        %v3868 = vand.u32 %v3867, 4294901760
        %v3869 = vsub.f32 %v3867, %v3868
        %v3870 = vand.u32 %v3869, 4294901760
        %3871 = vmatpush.msra.mxu0 %v3870
        %v3872 = vand.u32 %v3804, 4294901760
        %v3873 = vsub.f32 %v3804, %v3872
        %v3874 = vand.u32 %v3873, 4294901760
        %v3875 = vsub.f32 %v3873, %v3874
        %v3876 = vand.u32 %v3875, 4294901760
        %3877 = vmatpush.msra.mxu0 %v3876
        %v3878 = vand.u32 %v603, 4294901760
        %3879 = vmatmul.f32.gmra.mxu0 %v3878
        %v3880 = vpop.f32.mrf.mxu0
        %v3881 = vadd.f32 %v3840, %v3880
        %3882 = vdwg.mxu0
        %3883 = vmatpush.msra.mxu0 0.0
        %3884 = vmatpush.msra.mxu0 0.0
        %3885 = vmatpush.msra.mxu0 0.0
        %3886 = vmatpush.msra.mxu0 0.0
        %3887 = vmatpush.msra.mxu0 0.0
        %3888 = vmatpush.msra.mxu0 0.0
        %3889 = vmatpush.msra.mxu0 0.0
        %3890 = vmatpush.msra.mxu0 0.0
        %3891 = vmatpush.msra.mxu0 0.0
        %3892 = vmatpush.msra.mxu0 0.0
        %3893 = vmatpush.msra.mxu0 0.0
        %3894 = vmatpush.msra.mxu0 0.0
        %v3895 = vand.u32 %v3807, 4294901760
        %v3896 = vsub.f32 %v3807, %v3895
        %3897 = vmatpush.msra.mxu0 %v3896
        %v3898 = vand.u32 %v3806, 4294901760
        %v3899 = vsub.f32 %v3806, %v3898
        %3900 = vmatpush.msra.mxu0 %v3899
        %v3901 = vand.u32 %v3805, 4294901760
        %v3902 = vsub.f32 %v3805, %v3901
        %3903 = vmatpush.msra.mxu0 %v3902
        %v3904 = vand.u32 %v3804, 4294901760
        %v3905 = vsub.f32 %v3804, %v3904
        %3906 = vmatpush.msra.mxu0 %v3905
        %v3907 = vand.u32 %v603, 4294901760
        %v3908 = vsub.f32 %v603, %v3907
        %3909 = vmatmul.f32.gmra.mxu0 %v3908
        %v3910 = vpop.f32.mrf.mxu0
        %v3911 = vadd.f32 %v3881, %v3910
        %3912 = vdwg.mxu0
        %3913 = vmatpush.msra.mxu0 0.0
        %3914 = vmatpush.msra.mxu0 0.0
        %3915 = vmatpush.msra.mxu0 0.0
        %3916 = vmatpush.msra.mxu0 0.0
        %3917 = vmatpush.msra.mxu0 0.0
        %3918 = vmatpush.msra.mxu0 0.0
        %3919 = vmatpush.msra.mxu0 0.0
        %3920 = vmatpush.msra.mxu0 0.0
        %3921 = vmatpush.msra.mxu0 0.0
        %3922 = vmatpush.msra.mxu0 0.0
        %3923 = vmatpush.msra.mxu0 0.0
        %3924 = vmatpush.msra.mxu0 0.0
        %v3925 = vand.u32 %v3807, 4294901760
        %3926 = vmatpush.msra.mxu0 %v3925
        %v3927 = vand.u32 %v3806, 4294901760
        %3928 = vmatpush.msra.mxu0 %v3927
        %v3929 = vand.u32 %v3805, 4294901760
        %3930 = vmatpush.msra.mxu0 %v3929
        %v3931 = vand.u32 %v3804, 4294901760
        %3932 = vmatpush.msra.mxu0 %v3931
        %v3933 = vand.u32 %v603, 4294901760
        %v3934 = vsub.f32 %v603, %v3933
        %v3935 = vand.u32 %v3934, 4294901760
        %3936 = vmatmul.f32.gmra.mxu0 %v3935
        %v3937 = vpop.f32.mrf.mxu0
        %v3938 = vadd.f32 %v3911, %v3937
        %3939 = vdwg.mxu0
        %3940 = vmatpush.msra.mxu0 0.0
        %3941 = vmatpush.msra.mxu0 0.0
        %3942 = vmatpush.msra.mxu0 0.0
        %3943 = vmatpush.msra.mxu0 0.0
        %3944 = vmatpush.msra.mxu0 0.0
        %3945 = vmatpush.msra.mxu0 0.0
        %3946 = vmatpush.msra.mxu0 0.0
        %3947 = vmatpush.msra.mxu0 0.0
        %3948 = vmatpush.msra.mxu0 0.0
        %3949 = vmatpush.msra.mxu0 0.0
        %3950 = vmatpush.msra.mxu0 0.0
        %3951 = vmatpush.msra.mxu0 0.0
        %v3952 = vand.u32 %v3807, 4294901760
        %v3953 = vsub.f32 %v3807, %v3952
        %v3954 = vand.u32 %v3953, 4294901760
        %3955 = vmatpush.msra.mxu0 %v3954
        %v3956 = vand.u32 %v3806, 4294901760
        %v3957 = vsub.f32 %v3806, %v3956
        %v3958 = vand.u32 %v3957, 4294901760
        %3959 = vmatpush.msra.mxu0 %v3958
        %v3960 = vand.u32 %v3805, 4294901760
        %v3961 = vsub.f32 %v3805, %v3960
        %v3962 = vand.u32 %v3961, 4294901760
        %3963 = vmatpush.msra.mxu0 %v3962
        %v3964 = vand.u32 %v3804, 4294901760
        %v3965 = vsub.f32 %v3804, %v3964
        %v3966 = vand.u32 %v3965, 4294901760
        %3967 = vmatpush.msra.mxu0 %v3966
        %v3968 = vand.u32 %v603, 4294901760
        %3969 = vmatmul.f32.gmra.mxu0 %v3968
        %v3970 = vpop.f32.mrf.mxu0
        %v3971 = vadd.f32 %v3938, %v3970
        %3972 = vdwg.mxu0
        %3973 = vmatpush.msra.mxu0 0.0
        %3974 = vmatpush.msra.mxu0 0.0
        %3975 = vmatpush.msra.mxu0 0.0
        %3976 = vmatpush.msra.mxu0 0.0
        %3977 = vmatpush.msra.mxu0 0.0
        %3978 = vmatpush.msra.mxu0 0.0
        %3979 = vmatpush.msra.mxu0 0.0
        %3980 = vmatpush.msra.mxu0 0.0
        %3981 = vmatpush.msra.mxu0 0.0
        %3982 = vmatpush.msra.mxu0 0.0
        %3983 = vmatpush.msra.mxu0 0.0
        %3984 = vmatpush.msra.mxu0 0.0
        %v3985 = vand.u32 %v3807, 4294901760
        %3986 = vmatpush.msra.mxu0 %v3985
        %v3987 = vand.u32 %v3806, 4294901760
        %3988 = vmatpush.msra.mxu0 %v3987
        %v3989 = vand.u32 %v3805, 4294901760
        %3990 = vmatpush.msra.mxu0 %v3989
        %v3991 = vand.u32 %v3804, 4294901760
        %3992 = vmatpush.msra.mxu0 %v3991
        %v3993 = vand.u32 %v603, 4294901760
        %3994 = vmatmul.f32.gmra.mxu0 %v3993
        %v3995 = vpop.f32.mrf.mxu0
        %v3996 = vadd.f32 %v3971, %v3995
        %3997 = vdwg.mxu0
        %s3998 = scalar_lea.vmem %s3, 96
        %v3999 = vld [vmem:[%s3998] sm:$0xff]
        %v4000 = vld [vmem:[%s3998 + $0x8] sm:$0xff]
        %v4001 = vld [vmem:[%s3998 + $0x10] sm:$0xff]
        %v4002 = vld [vmem:[%s3998 + $0x18] sm:$0xff]
        %s4003 = scalar_lea.vmem %s4, 3
        %v4004 = vld [vmem:[%s4003] sm:$0x1]
        %v4006 = vperm.slane %v4004, 0
        %4008 = vmatpush.msra.mxu0 0.0
        %4009 = vmatpush.msra.mxu0 0.0
        %4010 = vmatpush.msra.mxu0 0.0
        %4011 = vmatpush.msra.mxu0 0.0
        %4012 = vmatpush.msra.mxu0 0.0
        %4013 = vmatpush.msra.mxu0 0.0
        %4014 = vmatpush.msra.mxu0 0.0
        %4015 = vmatpush.msra.mxu0 0.0
        %4016 = vmatpush.msra.mxu0 0.0
        %4017 = vmatpush.msra.mxu0 0.0
        %4018 = vmatpush.msra.mxu0 0.0
        %4019 = vmatpush.msra.mxu0 0.0
        %v4020 = vand.u32 %v4002, 4294901760
        %4021 = vmatpush.msra.mxu0 %v4020
        %v4022 = vand.u32 %v4001, 4294901760
        %4023 = vmatpush.msra.mxu0 %v4022
        %v4024 = vand.u32 %v4000, 4294901760
        %4025 = vmatpush.msra.mxu0 %v4024
        %v4026 = vand.u32 %v3999, 4294901760
        %4027 = vmatpush.msra.mxu0 %v4026
        %v4028 = vand.u32 %v603, 4294901760
        %v4029 = vsub.f32 %v603, %v4028
        %v4030 = vand.u32 %v4029, 4294901760
        %v4031 = vsub.f32 %v4029, %v4030
        %v4032 = vand.u32 %v4031, 4294901760
        %4033 = vmatmul.f32.gmra.mxu0 %v4032
        %v4034 = vpop.f32.mrf.mxu0
        %v4035 = vadd.f32 %v4006, %v4034
        %4036 = vdwg.mxu0
        %4037 = vmatpush.msra.mxu0 0.0
        %4038 = vmatpush.msra.mxu0 0.0
        %4039 = vmatpush.msra.mxu0 0.0
        %4040 = vmatpush.msra.mxu0 0.0
        %4041 = vmatpush.msra.mxu0 0.0
        %4042 = vmatpush.msra.mxu0 0.0
        %4043 = vmatpush.msra.mxu0 0.0
        %4044 = vmatpush.msra.mxu0 0.0
        %4045 = vmatpush.msra.mxu0 0.0
        %4046 = vmatpush.msra.mxu0 0.0
        %4047 = vmatpush.msra.mxu0 0.0
        %4048 = vmatpush.msra.mxu0 0.0
        %v4049 = vand.u32 %v4002, 4294901760
        %v4050 = vsub.f32 %v4002, %v4049
        %v4051 = vand.u32 %v4050, 4294901760
        %v4052 = vsub.f32 %v4050, %v4051
        %v4053 = vand.u32 %v4052, 4294901760
        %4054 = vmatpush.msra.mxu0 %v4053
        %v4055 = vand.u32 %v4001, 4294901760
        %v4056 = vsub.f32 %v4001, %v4055
        %v4057 = vand.u32 %v4056, 4294901760
        %v4058 = vsub.f32 %v4056, %v4057
        %v4059 = vand.u32 %v4058, 4294901760
        %4060 = vmatpush.msra.mxu0 %v4059
        %v4061 = vand.u32 %v4000, 4294901760
        %v4062 = vsub.f32 %v4000, %v4061
        %v4063 = vand.u32 %v4062, 4294901760
        %v4064 = vsub.f32 %v4062, %v4063
        %v4065 = vand.u32 %v4064, 4294901760
        %4066 = vmatpush.msra.mxu0 %v4065
        %v4067 = vand.u32 %v3999, 4294901760
        %v4068 = vsub.f32 %v3999, %v4067
        %v4069 = vand.u32 %v4068, 4294901760
        %v4070 = vsub.f32 %v4068, %v4069
        %v4071 = vand.u32 %v4070, 4294901760
        %4072 = vmatpush.msra.mxu0 %v4071
        %v4073 = vand.u32 %v603, 4294901760
        %4074 = vmatmul.f32.gmra.mxu0 %v4073
        %v4075 = vpop.f32.mrf.mxu0
        %v4076 = vadd.f32 %v4035, %v4075
        %4077 = vdwg.mxu0
        %4078 = vmatpush.msra.mxu0 0.0
        %4079 = vmatpush.msra.mxu0 0.0
        %4080 = vmatpush.msra.mxu0 0.0
        %4081 = vmatpush.msra.mxu0 0.0
        %4082 = vmatpush.msra.mxu0 0.0
        %4083 = vmatpush.msra.mxu0 0.0
        %4084 = vmatpush.msra.mxu0 0.0
        %4085 = vmatpush.msra.mxu0 0.0
        %4086 = vmatpush.msra.mxu0 0.0
        %4087 = vmatpush.msra.mxu0 0.0
        %4088 = vmatpush.msra.mxu0 0.0
        %4089 = vmatpush.msra.mxu0 0.0
        %v4090 = vand.u32 %v4002, 4294901760
        %v4091 = vsub.f32 %v4002, %v4090
        %4092 = vmatpush.msra.mxu0 %v4091
        %v4093 = vand.u32 %v4001, 4294901760
        %v4094 = vsub.f32 %v4001, %v4093
        %4095 = vmatpush.msra.mxu0 %v4094
        %v4096 = vand.u32 %v4000, 4294901760
        %v4097 = vsub.f32 %v4000, %v4096
        %4098 = vmatpush.msra.mxu0 %v4097
        %v4099 = vand.u32 %v3999, 4294901760
        %v4100 = vsub.f32 %v3999, %v4099
        %4101 = vmatpush.msra.mxu0 %v4100
        %v4102 = vand.u32 %v603, 4294901760
        %v4103 = vsub.f32 %v603, %v4102
        %4104 = vmatmul.f32.gmra.mxu0 %v4103
        %v4105 = vpop.f32.mrf.mxu0
        %v4106 = vadd.f32 %v4076, %v4105
        %4107 = vdwg.mxu0
        %4108 = vmatpush.msra.mxu0 0.0
        %4109 = vmatpush.msra.mxu0 0.0
        %4110 = vmatpush.msra.mxu0 0.0
        %4111 = vmatpush.msra.mxu0 0.0
        %4112 = vmatpush.msra.mxu0 0.0
        %4113 = vmatpush.msra.mxu0 0.0
        %4114 = vmatpush.msra.mxu0 0.0
        %4115 = vmatpush.msra.mxu0 0.0
        %4116 = vmatpush.msra.mxu0 0.0
        %4117 = vmatpush.msra.mxu0 0.0
        %4118 = vmatpush.msra.mxu0 0.0
        %4119 = vmatpush.msra.mxu0 0.0
        %v4120 = vand.u32 %v4002, 4294901760
        %4121 = vmatpush.msra.mxu0 %v4120
        %v4122 = vand.u32 %v4001, 4294901760
        %4123 = vmatpush.msra.mxu0 %v4122
        %v4124 = vand.u32 %v4000, 4294901760
        %4125 = vmatpush.msra.mxu0 %v4124
        %v4126 = vand.u32 %v3999, 4294901760
        %4127 = vmatpush.msra.mxu0 %v4126
        %v4128 = vand.u32 %v603, 4294901760
        %v4129 = vsub.f32 %v603, %v4128
        %v4130 = vand.u32 %v4129, 4294901760
        %4131 = vmatmul.f32.gmra.mxu0 %v4130
        %v4132 = vpop.f32.mrf.mxu0
        %v4133 = vadd.f32 %v4106, %v4132
        %4134 = vdwg.mxu0
        %4135 = vmatpush.msra.mxu0 0.0
        %4136 = vmatpush.msra.mxu0 0.0
        %4137 = vmatpush.msra.mxu0 0.0
        %4138 = vmatpush.msra.mxu0 0.0
        %4139 = vmatpush.msra.mxu0 0.0
        %4140 = vmatpush.msra.mxu0 0.0
        %4141 = vmatpush.msra.mxu0 0.0
        %4142 = vmatpush.msra.mxu0 0.0
        %4143 = vmatpush.msra.mxu0 0.0
        %4144 = vmatpush.msra.mxu0 0.0
        %4145 = vmatpush.msra.mxu0 0.0
        %4146 = vmatpush.msra.mxu0 0.0
        %v4147 = vand.u32 %v4002, 4294901760
        %v4148 = vsub.f32 %v4002, %v4147
        %v4149 = vand.u32 %v4148, 4294901760
        %4150 = vmatpush.msra.mxu0 %v4149
        %v4151 = vand.u32 %v4001, 4294901760
        %v4152 = vsub.f32 %v4001, %v4151
        %v4153 = vand.u32 %v4152, 4294901760
        %4154 = vmatpush.msra.mxu0 %v4153
        %v4155 = vand.u32 %v4000, 4294901760
        %v4156 = vsub.f32 %v4000, %v4155
        %v4157 = vand.u32 %v4156, 4294901760
        %4158 = vmatpush.msra.mxu0 %v4157
        %v4159 = vand.u32 %v3999, 4294901760
        %v4160 = vsub.f32 %v3999, %v4159
        %v4161 = vand.u32 %v4160, 4294901760
        %4162 = vmatpush.msra.mxu0 %v4161
        %v4163 = vand.u32 %v603, 4294901760
        %4164 = vmatmul.f32.gmra.mxu0 %v4163
        %v4165 = vpop.f32.mrf.mxu0
        %v4166 = vadd.f32 %v4133, %v4165
        %4167 = vdwg.mxu0
        %4168 = vmatpush.msra.mxu0 0.0
        %4169 = vmatpush.msra.mxu0 0.0
        %4170 = vmatpush.msra.mxu0 0.0
        %4171 = vmatpush.msra.mxu0 0.0
        %4172 = vmatpush.msra.mxu0 0.0
        %4173 = vmatpush.msra.mxu0 0.0
        %4174 = vmatpush.msra.mxu0 0.0
        %4175 = vmatpush.msra.mxu0 0.0
        %4176 = vmatpush.msra.mxu0 0.0
        %4177 = vmatpush.msra.mxu0 0.0
        %4178 = vmatpush.msra.mxu0 0.0
        %4179 = vmatpush.msra.mxu0 0.0
        %v4180 = vand.u32 %v4002, 4294901760
        %4181 = vmatpush.msra.mxu0 %v4180
        %v4182 = vand.u32 %v4001, 4294901760
        %4183 = vmatpush.msra.mxu0 %v4182
        %v4184 = vand.u32 %v4000, 4294901760
        %4185 = vmatpush.msra.mxu0 %v4184
        %v4186 = vand.u32 %v3999, 4294901760
        %4187 = vmatpush.msra.mxu0 %v4186
        %v4188 = vand.u32 %v603, 4294901760
        %4189 = vmatmul.f32.gmra.mxu0 %v4188
        %v4190 = vpop.f32.mrf.mxu0
        %v4191 = vadd.f32 %v4166, %v4190
        %4192 = vdwg.mxu0
        %s4193 = scalar_lea.vmem %s5, 96
        %v4194 = vld [vmem:[%s4193] sm:$0xff]
        %v4195 = vld [vmem:[%s4193 + $0x8] sm:$0xff]
        %v4196 = vld [vmem:[%s4193 + $0x10] sm:$0xff]
        %v4197 = vld [vmem:[%s4193 + $0x18] sm:$0xff]
        %s4198 = scalar_lea.vmem %s6, 3
        %v4199 = vld [vmem:[%s4198] sm:$0x1]
        %v4201 = vperm.slane %v4199, 0
        %4203 = vmatpush.msra.mxu0 0.0
        %4204 = vmatpush.msra.mxu0 0.0
        %4205 = vmatpush.msra.mxu0 0.0
        %4206 = vmatpush.msra.mxu0 0.0
        %4207 = vmatpush.msra.mxu0 0.0
        %4208 = vmatpush.msra.mxu0 0.0
        %4209 = vmatpush.msra.mxu0 0.0
        %4210 = vmatpush.msra.mxu0 0.0
        %4211 = vmatpush.msra.mxu0 0.0
        %4212 = vmatpush.msra.mxu0 0.0
        %4213 = vmatpush.msra.mxu0 0.0
        %4214 = vmatpush.msra.mxu0 0.0
        %v4215 = vand.u32 %v4197, 4294901760
        %4216 = vmatpush.msra.mxu0 %v4215
        %v4217 = vand.u32 %v4196, 4294901760
        %4218 = vmatpush.msra.mxu0 %v4217
        %v4219 = vand.u32 %v4195, 4294901760
        %4220 = vmatpush.msra.mxu0 %v4219
        %v4221 = vand.u32 %v4194, 4294901760
        %4222 = vmatpush.msra.mxu0 %v4221
        %v4223 = vand.u32 %v603, 4294901760
        %v4224 = vsub.f32 %v603, %v4223
        %v4225 = vand.u32 %v4224, 4294901760
        %v4226 = vsub.f32 %v4224, %v4225
        %v4227 = vand.u32 %v4226, 4294901760
        %4228 = vmatmul.f32.gmra.mxu0 %v4227
        %v4229 = vpop.f32.mrf.mxu0
        %v4230 = vadd.f32 %v4201, %v4229
        %4231 = vdwg.mxu0
        %4232 = vmatpush.msra.mxu0 0.0
        %4233 = vmatpush.msra.mxu0 0.0
        %4234 = vmatpush.msra.mxu0 0.0
        %4235 = vmatpush.msra.mxu0 0.0
        %4236 = vmatpush.msra.mxu0 0.0
        %4237 = vmatpush.msra.mxu0 0.0
        %4238 = vmatpush.msra.mxu0 0.0
        %4239 = vmatpush.msra.mxu0 0.0
        %4240 = vmatpush.msra.mxu0 0.0
        %4241 = vmatpush.msra.mxu0 0.0
        %4242 = vmatpush.msra.mxu0 0.0
        %4243 = vmatpush.msra.mxu0 0.0
        %v4244 = vand.u32 %v4197, 4294901760
        %v4245 = vsub.f32 %v4197, %v4244
        %v4246 = vand.u32 %v4245, 4294901760
        %v4247 = vsub.f32 %v4245, %v4246
        %v4248 = vand.u32 %v4247, 4294901760
        %4249 = vmatpush.msra.mxu0 %v4248
        %v4250 = vand.u32 %v4196, 4294901760
        %v4251 = vsub.f32 %v4196, %v4250
        %v4252 = vand.u32 %v4251, 4294901760
        %v4253 = vsub.f32 %v4251, %v4252
        %v4254 = vand.u32 %v4253, 4294901760
        %4255 = vmatpush.msra.mxu0 %v4254
        %v4256 = vand.u32 %v4195, 4294901760
        %v4257 = vsub.f32 %v4195, %v4256
        %v4258 = vand.u32 %v4257, 4294901760
        %v4259 = vsub.f32 %v4257, %v4258
        %v4260 = vand.u32 %v4259, 4294901760
        %4261 = vmatpush.msra.mxu0 %v4260
        %v4262 = vand.u32 %v4194, 4294901760
        %v4263 = vsub.f32 %v4194, %v4262
        %v4264 = vand.u32 %v4263, 4294901760
        %v4265 = vsub.f32 %v4263, %v4264
        %v4266 = vand.u32 %v4265, 4294901760
        %4267 = vmatpush.msra.mxu0 %v4266
        %v4268 = vand.u32 %v603, 4294901760
        %4269 = vmatmul.f32.gmra.mxu0 %v4268
        %v4270 = vpop.f32.mrf.mxu0
        %v4271 = vadd.f32 %v4230, %v4270
        %4272 = vdwg.mxu0
        %4273 = vmatpush.msra.mxu0 0.0
        %4274 = vmatpush.msra.mxu0 0.0
        %4275 = vmatpush.msra.mxu0 0.0
        %4276 = vmatpush.msra.mxu0 0.0
        %4277 = vmatpush.msra.mxu0 0.0
        %4278 = vmatpush.msra.mxu0 0.0
        %4279 = vmatpush.msra.mxu0 0.0
        %4280 = vmatpush.msra.mxu0 0.0
        %4281 = vmatpush.msra.mxu0 0.0
        %4282 = vmatpush.msra.mxu0 0.0
        %4283 = vmatpush.msra.mxu0 0.0
        %4284 = vmatpush.msra.mxu0 0.0
        %v4285 = vand.u32 %v4197, 4294901760
        %v4286 = vsub.f32 %v4197, %v4285
        %4287 = vmatpush.msra.mxu0 %v4286
        %v4288 = vand.u32 %v4196, 4294901760
        %v4289 = vsub.f32 %v4196, %v4288
        %4290 = vmatpush.msra.mxu0 %v4289
        %v4291 = vand.u32 %v4195, 4294901760
        %v4292 = vsub.f32 %v4195, %v4291
        %4293 = vmatpush.msra.mxu0 %v4292
        %v4294 = vand.u32 %v4194, 4294901760
        %v4295 = vsub.f32 %v4194, %v4294
        %4296 = vmatpush.msra.mxu0 %v4295
        %v4297 = vand.u32 %v603, 4294901760
        %v4298 = vsub.f32 %v603, %v4297
        %4299 = vmatmul.f32.gmra.mxu0 %v4298
        %v4300 = vpop.f32.mrf.mxu0
        %v4301 = vadd.f32 %v4271, %v4300
        %4302 = vdwg.mxu0
        %4303 = vmatpush.msra.mxu0 0.0
        %4304 = vmatpush.msra.mxu0 0.0
        %4305 = vmatpush.msra.mxu0 0.0
        %4306 = vmatpush.msra.mxu0 0.0
        %4307 = vmatpush.msra.mxu0 0.0
        %4308 = vmatpush.msra.mxu0 0.0
        %4309 = vmatpush.msra.mxu0 0.0
        %4310 = vmatpush.msra.mxu0 0.0
        %4311 = vmatpush.msra.mxu0 0.0
        %4312 = vmatpush.msra.mxu0 0.0
        %4313 = vmatpush.msra.mxu0 0.0
        %4314 = vmatpush.msra.mxu0 0.0
        %v4315 = vand.u32 %v4197, 4294901760
        %4316 = vmatpush.msra.mxu0 %v4315
        %v4317 = vand.u32 %v4196, 4294901760
        %4318 = vmatpush.msra.mxu0 %v4317
        %v4319 = vand.u32 %v4195, 4294901760
        %4320 = vmatpush.msra.mxu0 %v4319
        %v4321 = vand.u32 %v4194, 4294901760
        %4322 = vmatpush.msra.mxu0 %v4321
        %v4323 = vand.u32 %v603, 4294901760
        %v4324 = vsub.f32 %v603, %v4323
        %v4325 = vand.u32 %v4324, 4294901760
        %4326 = vmatmul.f32.gmra.mxu0 %v4325
        %v4327 = vpop.f32.mrf.mxu0
        %v4328 = vadd.f32 %v4301, %v4327
        %4329 = vdwg.mxu0
        %4330 = vmatpush.msra.mxu0 0.0
        %4331 = vmatpush.msra.mxu0 0.0
        %4332 = vmatpush.msra.mxu0 0.0
        %4333 = vmatpush.msra.mxu0 0.0
        %4334 = vmatpush.msra.mxu0 0.0
        %4335 = vmatpush.msra.mxu0 0.0
        %4336 = vmatpush.msra.mxu0 0.0
        %4337 = vmatpush.msra.mxu0 0.0
        %4338 = vmatpush.msra.mxu0 0.0
        %4339 = vmatpush.msra.mxu0 0.0
        %4340 = vmatpush.msra.mxu0 0.0
        %4341 = vmatpush.msra.mxu0 0.0
        %v4342 = vand.u32 %v4197, 4294901760
        %v4343 = vsub.f32 %v4197, %v4342
        %v4344 = vand.u32 %v4343, 4294901760
        %4345 = vmatpush.msra.mxu0 %v4344
        %v4346 = vand.u32 %v4196, 4294901760
        %v4347 = vsub.f32 %v4196, %v4346
        %v4348 = vand.u32 %v4347, 4294901760
        %4349 = vmatpush.msra.mxu0 %v4348
        %v4350 = vand.u32 %v4195, 4294901760
        %v4351 = vsub.f32 %v4195, %v4350
        %v4352 = vand.u32 %v4351, 4294901760
        %4353 = vmatpush.msra.mxu0 %v4352
        %v4354 = vand.u32 %v4194, 4294901760
        %v4355 = vsub.f32 %v4194, %v4354
        %v4356 = vand.u32 %v4355, 4294901760
        %4357 = vmatpush.msra.mxu0 %v4356
        %v4358 = vand.u32 %v603, 4294901760
        %4359 = vmatmul.f32.gmra.mxu0 %v4358
        %v4360 = vpop.f32.mrf.mxu0
        %v4361 = vadd.f32 %v4328, %v4360
        %4362 = vdwg.mxu0
        %4363 = vmatpush.msra.mxu0 0.0
        %4364 = vmatpush.msra.mxu0 0.0
        %4365 = vmatpush.msra.mxu0 0.0
        %4366 = vmatpush.msra.mxu0 0.0
        %4367 = vmatpush.msra.mxu0 0.0
        %4368 = vmatpush.msra.mxu0 0.0
        %4369 = vmatpush.msra.mxu0 0.0
        %4370 = vmatpush.msra.mxu0 0.0
        %4371 = vmatpush.msra.mxu0 0.0
        %4372 = vmatpush.msra.mxu0 0.0
        %4373 = vmatpush.msra.mxu0 0.0
        %4374 = vmatpush.msra.mxu0 0.0
        %v4375 = vand.u32 %v4197, 4294901760
        %4376 = vmatpush.msra.mxu0 %v4375
        %v4377 = vand.u32 %v4196, 4294901760
        %4378 = vmatpush.msra.mxu0 %v4377
        %v4379 = vand.u32 %v4195, 4294901760
        %4380 = vmatpush.msra.mxu0 %v4379
        %v4381 = vand.u32 %v4194, 4294901760
        %4382 = vmatpush.msra.mxu0 %v4381
        %v4383 = vand.u32 %v603, 4294901760
        %4384 = vmatmul.f32.gmra.mxu0 %v4383
        %v4385 = vpop.f32.mrf.mxu0
        %v4386 = vadd.f32 %v4361, %v4385
        %4387 = vdwg.mxu0
        %vm4388 = vcmp.eq.s32.totalorder %v593, 3
        %v4389 = vsel %vm4388, %v590, 0.0
        %v4390 = vsel %vm1178, %v4389, 0.0
        %4391 = vadd.xlane.f32.xlu0 %v4390
        %v4392 = vpop.xlane.xlu0 %4391
        %v4393 = vadd.f32 %v4392, 1.0
        %v4394 = vperm.slane %v4393, 0
        %v4395 = vmul.f32 %v3996, %v4394
        %v4397 = vsel %vm1185, %v4395, 0
        %v4400 = vsel %vm1185, %v4191, 0
        %4402 = vmatpush.xpose.msra.mxu0 0.0
        %4403 = vmatpush.xpose.msra.mxu0 0.0
        %4404 = vmatpush.xpose.msra.mxu0 0.0
        %4405 = vmatpush.xpose.msra.mxu0 0.0
        %4406 = vmatpush.xpose.msra.mxu0 0.0
        %4407 = vmatpush.xpose.msra.mxu0 0.0
        %4408 = vmatpush.xpose.msra.mxu0 0.0
        %4409 = vmatpush.xpose.msra.mxu0 0.0
        %4410 = vmatpush.xpose.msra.mxu0 0.0
        %4411 = vmatpush.xpose.msra.mxu0 0.0
        %4412 = vmatpush.xpose.msra.mxu0 0.0
        %4413 = vmatpush.xpose.msra.mxu0 0.0
        %4414 = vmatpush.xpose.msra.mxu0 0.0
        %4415 = vmatpush.xpose.msra.mxu0 0.0
        %4416 = vmatpush.xpose.msra.mxu0 0.0
        %v4417 = vand.u32 %v4400, 4294901760
        %4418 = vmatpush.xpose.msra.mxu0 %v4417
        %v4419 = vand.u32 %v4397, 4294901760
        %v4420 = vsub.f32 %v4397, %v4419
        %v4421 = vand.u32 %v4420, 4294901760
        %v4422 = vsub.f32 %v4420, %v4421
        %v4423 = vand.u32 %v4422, 4294901760
        %4424 = vmatmul.f32.gmra.mxu0 %v4423
        %v4425 = vpop.f32.mrf.mxu0
        %v4426 = vadd.f32 0.0, %v4425
        %4427 = vdwg.mxu0
        %4428 = vmatpush.xpose.msra.mxu0 0.0
        %4429 = vmatpush.xpose.msra.mxu0 0.0
        %4430 = vmatpush.xpose.msra.mxu0 0.0
        %4431 = vmatpush.xpose.msra.mxu0 0.0
        %4432 = vmatpush.xpose.msra.mxu0 0.0
        %4433 = vmatpush.xpose.msra.mxu0 0.0
        %4434 = vmatpush.xpose.msra.mxu0 0.0
        %4435 = vmatpush.xpose.msra.mxu0 0.0
        %4436 = vmatpush.xpose.msra.mxu0 0.0
        %4437 = vmatpush.xpose.msra.mxu0 0.0
        %4438 = vmatpush.xpose.msra.mxu0 0.0
        %4439 = vmatpush.xpose.msra.mxu0 0.0
        %4440 = vmatpush.xpose.msra.mxu0 0.0
        %4441 = vmatpush.xpose.msra.mxu0 0.0
        %4442 = vmatpush.xpose.msra.mxu0 0.0
        %v4443 = vand.u32 %v4400, 4294901760
        %v4444 = vsub.f32 %v4400, %v4443
        %v4445 = vand.u32 %v4444, 4294901760
        %v4446 = vsub.f32 %v4444, %v4445
        %v4447 = vand.u32 %v4446, 4294901760
        %4448 = vmatpush.xpose.msra.mxu0 %v4447
        %v4449 = vand.u32 %v4397, 4294901760
        %4450 = vmatmul.f32.gmra.mxu0 %v4449
        %v4451 = vpop.f32.mrf.mxu0
        %v4452 = vadd.f32 %v4426, %v4451
        %4453 = vdwg.mxu0
        %4454 = vmatpush.xpose.msra.mxu0 0.0
        %4455 = vmatpush.xpose.msra.mxu0 0.0
        %4456 = vmatpush.xpose.msra.mxu0 0.0
        %4457 = vmatpush.xpose.msra.mxu0 0.0
        %4458 = vmatpush.xpose.msra.mxu0 0.0
        %4459 = vmatpush.xpose.msra.mxu0 0.0
        %4460 = vmatpush.xpose.msra.mxu0 0.0
        %4461 = vmatpush.xpose.msra.mxu0 0.0
        %4462 = vmatpush.xpose.msra.mxu0 0.0
        %4463 = vmatpush.xpose.msra.mxu0 0.0
        %4464 = vmatpush.xpose.msra.mxu0 0.0
        %4465 = vmatpush.xpose.msra.mxu0 0.0
        %4466 = vmatpush.xpose.msra.mxu0 0.0
        %4467 = vmatpush.xpose.msra.mxu0 0.0
        %4468 = vmatpush.xpose.msra.mxu0 0.0
        %v4469 = vand.u32 %v4400, 4294901760
        %v4470 = vsub.f32 %v4400, %v4469
        %4471 = vmatpush.xpose.msra.mxu0 %v4470
        %v4472 = vand.u32 %v4397, 4294901760
        %v4473 = vsub.f32 %v4397, %v4472
        %4474 = vmatmul.f32.gmra.mxu0 %v4473
        %v4475 = vpop.f32.mrf.mxu0
        %v4476 = vadd.f32 %v4452, %v4475
        %4477 = vdwg.mxu0
        %4478 = vmatpush.xpose.msra.mxu0 0.0
        %4479 = vmatpush.xpose.msra.mxu0 0.0
        %4480 = vmatpush.xpose.msra.mxu0 0.0
        %4481 = vmatpush.xpose.msra.mxu0 0.0
        %4482 = vmatpush.xpose.msra.mxu0 0.0
        %4483 = vmatpush.xpose.msra.mxu0 0.0
        %4484 = vmatpush.xpose.msra.mxu0 0.0
        %4485 = vmatpush.xpose.msra.mxu0 0.0
        %4486 = vmatpush.xpose.msra.mxu0 0.0
        %4487 = vmatpush.xpose.msra.mxu0 0.0
        %4488 = vmatpush.xpose.msra.mxu0 0.0
        %4489 = vmatpush.xpose.msra.mxu0 0.0
        %4490 = vmatpush.xpose.msra.mxu0 0.0
        %4491 = vmatpush.xpose.msra.mxu0 0.0
        %4492 = vmatpush.xpose.msra.mxu0 0.0
        %v4493 = vand.u32 %v4400, 4294901760
        %4494 = vmatpush.xpose.msra.mxu0 %v4493
        %v4495 = vand.u32 %v4397, 4294901760
        %v4496 = vsub.f32 %v4397, %v4495
        %v4497 = vand.u32 %v4496, 4294901760
        %4498 = vmatmul.f32.gmra.mxu0 %v4497
        %v4499 = vpop.f32.mrf.mxu0
        %v4500 = vadd.f32 %v4476, %v4499
        %4501 = vdwg.mxu0
        %4502 = vmatpush.xpose.msra.mxu0 0.0
        %4503 = vmatpush.xpose.msra.mxu0 0.0
        %4504 = vmatpush.xpose.msra.mxu0 0.0
        %4505 = vmatpush.xpose.msra.mxu0 0.0
        %4506 = vmatpush.xpose.msra.mxu0 0.0
        %4507 = vmatpush.xpose.msra.mxu0 0.0
        %4508 = vmatpush.xpose.msra.mxu0 0.0
        %4509 = vmatpush.xpose.msra.mxu0 0.0
        %4510 = vmatpush.xpose.msra.mxu0 0.0
        %4511 = vmatpush.xpose.msra.mxu0 0.0
        %4512 = vmatpush.xpose.msra.mxu0 0.0
        %4513 = vmatpush.xpose.msra.mxu0 0.0
        %4514 = vmatpush.xpose.msra.mxu0 0.0
        %4515 = vmatpush.xpose.msra.mxu0 0.0
        %4516 = vmatpush.xpose.msra.mxu0 0.0
        %v4517 = vand.u32 %v4400, 4294901760
        %v4518 = vsub.f32 %v4400, %v4517
        %v4519 = vand.u32 %v4518, 4294901760
        %4520 = vmatpush.xpose.msra.mxu0 %v4519
        %v4521 = vand.u32 %v4397, 4294901760
        %4522 = vmatmul.f32.gmra.mxu0 %v4521
        %v4523 = vpop.f32.mrf.mxu0
        %v4524 = vadd.f32 %v4500, %v4523
        %4525 = vdwg.mxu0
        %4526 = vmatpush.xpose.msra.mxu0 0.0
        %4527 = vmatpush.xpose.msra.mxu0 0.0
        %4528 = vmatpush.xpose.msra.mxu0 0.0
        %4529 = vmatpush.xpose.msra.mxu0 0.0
        %4530 = vmatpush.xpose.msra.mxu0 0.0
        %4531 = vmatpush.xpose.msra.mxu0 0.0
        %4532 = vmatpush.xpose.msra.mxu0 0.0
        %4533 = vmatpush.xpose.msra.mxu0 0.0
        %4534 = vmatpush.xpose.msra.mxu0 0.0
        %4535 = vmatpush.xpose.msra.mxu0 0.0
        %4536 = vmatpush.xpose.msra.mxu0 0.0
        %4537 = vmatpush.xpose.msra.mxu0 0.0
        %4538 = vmatpush.xpose.msra.mxu0 0.0
        %4539 = vmatpush.xpose.msra.mxu0 0.0
        %4540 = vmatpush.xpose.msra.mxu0 0.0
        %v4541 = vand.u32 %v4400, 4294901760
        %4542 = vmatpush.xpose.msra.mxu0 %v4541
        %v4543 = vand.u32 %v4397, 4294901760
        %4544 = vmatmul.f32.gmra.mxu0 %v4543
        %v4545 = vpop.f32.mrf.mxu0
        %v4546 = vadd.f32 %v4524, %v4545
        %4547 = vdwg.mxu0
        %v4548 = vmul.f32 %v4546, 0.35355338
        %v4549 = vsel %vm1185, %v4548, -inf
        %4550 = vmax.xlane.f32.xlu0 %v4549
        %v4551 = vpop.xlane.xlu0 %4550
        %v4552 = vsub.f32 %v4548, %v4551
        %v4553 = vmul.f32 %v4552, 1.442695
        %v4554 = vpow.pop %v4553
        %v4555 = vsel %vm1185, %v4554, 0.0
        %4556 = vadd.xlane.f32.xlu0 %v4555
        %v4557 = vpop.xlane.xlu0 %4556
        %v4558 = vrcp.pop %v4557
        %v4559 = vmul.f32 %v4557, %v4558
        %v4560 = vsub.f32 1.0, %v4559
        %v4561 = vmul.f32 %v4558, %v4560
        %v4562 = vadd.f32 %v4558, %v4561
        %vm4563 = vweird.f32 %v4557
        %vm4564 = vweird.f32 %v4558
        %vm4565 = vmor %vm4563, %vm4564
        %v4566 = vsel %vm4565, %v4558, %v4562
        %v4567 = vand.u32 2147483647, %v4557
        %vm4568 = vcmp.eq.f32.partialorder %v4567, 8.507059e+37
        %v4569 = vand.u32 %v4557, 2147483648
        %v4570 = vor.u32 1.1754944e-38, %v4569
        %v4571 = vsel %vm4568, %v4570, %v4566
        %v4572 = vmul.f32 %v4554, %v4571
        %v4574 = vsel %vm1185, %v4572, 0
        %4576 = vmatpush.msra.mxu0 0.0
        %4577 = vmatpush.msra.mxu0 0.0
        %4578 = vmatpush.msra.mxu0 0.0
        %4579 = vmatpush.msra.mxu0 0.0
        %4580 = vmatpush.msra.mxu0 0.0
        %4581 = vmatpush.msra.mxu0 0.0
        %4582 = vmatpush.msra.mxu0 0.0
        %4583 = vmatpush.msra.mxu0 0.0
        %4584 = vmatpush.msra.mxu0 0.0
        %4585 = vmatpush.msra.mxu0 0.0
        %4586 = vmatpush.msra.mxu0 0.0
        %4587 = vmatpush.msra.mxu0 0.0
        %4588 = vmatpush.msra.mxu0 0.0
        %4589 = vmatpush.msra.mxu0 0.0
        %4590 = vmatpush.msra.mxu0 0.0
        %v4591 = vand.u32 %v4386, 4294901760
        %4592 = vmatpush.msra.mxu0 %v4591
        %v4593 = vand.u32 %v4574, 4294901760
        %v4594 = vsub.f32 %v4574, %v4593
        %v4595 = vand.u32 %v4594, 4294901760
        %v4596 = vsub.f32 %v4594, %v4595
        %v4597 = vand.u32 %v4596, 4294901760
        %4598 = vmatmul.f32.gmra.mxu0 %v4597
        %v4599 = vpop.f32.mrf.mxu0
        %v4600 = vadd.f32 0.0, %v4599
        %4601 = vdwg.mxu0
        %4602 = vmatpush.msra.mxu0 0.0
        %4603 = vmatpush.msra.mxu0 0.0
        %4604 = vmatpush.msra.mxu0 0.0
        %4605 = vmatpush.msra.mxu0 0.0
        %4606 = vmatpush.msra.mxu0 0.0
        %4607 = vmatpush.msra.mxu0 0.0
        %4608 = vmatpush.msra.mxu0 0.0
        %4609 = vmatpush.msra.mxu0 0.0
        %4610 = vmatpush.msra.mxu0 0.0
        %4611 = vmatpush.msra.mxu0 0.0
        %4612 = vmatpush.msra.mxu0 0.0
        %4613 = vmatpush.msra.mxu0 0.0
        %4614 = vmatpush.msra.mxu0 0.0
        %4615 = vmatpush.msra.mxu0 0.0
        %4616 = vmatpush.msra.mxu0 0.0
        %v4617 = vand.u32 %v4386, 4294901760
        %v4618 = vsub.f32 %v4386, %v4617
        %v4619 = vand.u32 %v4618, 4294901760
        %v4620 = vsub.f32 %v4618, %v4619
        %v4621 = vand.u32 %v4620, 4294901760
        %4622 = vmatpush.msra.mxu0 %v4621
        %v4623 = vand.u32 %v4574, 4294901760
        %4624 = vmatmul.f32.gmra.mxu0 %v4623
        %v4625 = vpop.f32.mrf.mxu0
        %v4626 = vadd.f32 %v4600, %v4625
        %4627 = vdwg.mxu0
        %4628 = vmatpush.msra.mxu0 0.0
        %4629 = vmatpush.msra.mxu0 0.0
        %4630 = vmatpush.msra.mxu0 0.0
        %4631 = vmatpush.msra.mxu0 0.0
        %4632 = vmatpush.msra.mxu0 0.0
        %4633 = vmatpush.msra.mxu0 0.0
        %4634 = vmatpush.msra.mxu0 0.0
        %4635 = vmatpush.msra.mxu0 0.0
        %4636 = vmatpush.msra.mxu0 0.0
        %4637 = vmatpush.msra.mxu0 0.0
        %4638 = vmatpush.msra.mxu0 0.0
        %4639 = vmatpush.msra.mxu0 0.0
        %4640 = vmatpush.msra.mxu0 0.0
        %4641 = vmatpush.msra.mxu0 0.0
        %4642 = vmatpush.msra.mxu0 0.0
        %v4643 = vand.u32 %v4386, 4294901760
        %v4644 = vsub.f32 %v4386, %v4643
        %4645 = vmatpush.msra.mxu0 %v4644
        %v4646 = vand.u32 %v4574, 4294901760
        %v4647 = vsub.f32 %v4574, %v4646
        %4648 = vmatmul.f32.gmra.mxu0 %v4647
        %v4649 = vpop.f32.mrf.mxu0
        %v4650 = vadd.f32 %v4626, %v4649
        %4651 = vdwg.mxu0
        %4652 = vmatpush.msra.mxu0 0.0
        %4653 = vmatpush.msra.mxu0 0.0
        %4654 = vmatpush.msra.mxu0 0.0
        %4655 = vmatpush.msra.mxu0 0.0
        %4656 = vmatpush.msra.mxu0 0.0
        %4657 = vmatpush.msra.mxu0 0.0
        %4658 = vmatpush.msra.mxu0 0.0
        %4659 = vmatpush.msra.mxu0 0.0
        %4660 = vmatpush.msra.mxu0 0.0
        %4661 = vmatpush.msra.mxu0 0.0
        %4662 = vmatpush.msra.mxu0 0.0
        %4663 = vmatpush.msra.mxu0 0.0
        %4664 = vmatpush.msra.mxu0 0.0
        %4665 = vmatpush.msra.mxu0 0.0
        %4666 = vmatpush.msra.mxu0 0.0
        %v4667 = vand.u32 %v4386, 4294901760
        %4668 = vmatpush.msra.mxu0 %v4667
        %v4669 = vand.u32 %v4574, 4294901760
        %v4670 = vsub.f32 %v4574, %v4669
        %v4671 = vand.u32 %v4670, 4294901760
        %4672 = vmatmul.f32.gmra.mxu0 %v4671
        %v4673 = vpop.f32.mrf.mxu0
        %v4674 = vadd.f32 %v4650, %v4673
        %4675 = vdwg.mxu0
        %4676 = vmatpush.msra.mxu0 0.0
        %4677 = vmatpush.msra.mxu0 0.0
        %4678 = vmatpush.msra.mxu0 0.0
        %4679 = vmatpush.msra.mxu0 0.0
        %4680 = vmatpush.msra.mxu0 0.0
        %4681 = vmatpush.msra.mxu0 0.0
        %4682 = vmatpush.msra.mxu0 0.0
        %4683 = vmatpush.msra.mxu0 0.0
        %4684 = vmatpush.msra.mxu0 0.0
        %4685 = vmatpush.msra.mxu0 0.0
        %4686 = vmatpush.msra.mxu0 0.0
        %4687 = vmatpush.msra.mxu0 0.0
        %4688 = vmatpush.msra.mxu0 0.0
        %4689 = vmatpush.msra.mxu0 0.0
        %4690 = vmatpush.msra.mxu0 0.0
        %v4691 = vand.u32 %v4386, 4294901760
        %v4692 = vsub.f32 %v4386, %v4691
        %v4693 = vand.u32 %v4692, 4294901760
        %4694 = vmatpush.msra.mxu0 %v4693
        %v4695 = vand.u32 %v4574, 4294901760
        %4696 = vmatmul.f32.gmra.mxu0 %v4695
        %v4697 = vpop.f32.mrf.mxu0
        %v4698 = vadd.f32 %v4674, %v4697
        %4699 = vdwg.mxu0
        %4700 = vmatpush.msra.mxu0 0.0
        %4701 = vmatpush.msra.mxu0 0.0
        %4702 = vmatpush.msra.mxu0 0.0
        %4703 = vmatpush.msra.mxu0 0.0
        %4704 = vmatpush.msra.mxu0 0.0
        %4705 = vmatpush.msra.mxu0 0.0
        %4706 = vmatpush.msra.mxu0 0.0
        %4707 = vmatpush.msra.mxu0 0.0
        %4708 = vmatpush.msra.mxu0 0.0
        %4709 = vmatpush.msra.mxu0 0.0
        %4710 = vmatpush.msra.mxu0 0.0
        %4711 = vmatpush.msra.mxu0 0.0
        %4712 = vmatpush.msra.mxu0 0.0
        %4713 = vmatpush.msra.mxu0 0.0
        %4714 = vmatpush.msra.mxu0 0.0
        %v4715 = vand.u32 %v4386, 4294901760
        %4716 = vmatpush.msra.mxu0 %v4715
        %v4717 = vand.u32 %v4574, 4294901760
        %4718 = vmatmul.f32.gmra.mxu0 %v4717
        %v4719 = vpop.f32.mrf.mxu0
        %v4720 = vadd.f32 %v4698, %v4719
        %4721 = vdwg.mxu0
        %s4722 = scalar_lea.vmem %s9, 24
        %v4723 = vld [vmem:[%s4722] sm:$0xff]
        %v4725 = vsel %vm1185, %v4720, 0
        %4727 = vmatpush.msra.mxu0 0.0
        %4728 = vmatpush.msra.mxu0 0.0
        %4729 = vmatpush.msra.mxu0 0.0
        %4730 = vmatpush.msra.mxu0 0.0
        %4731 = vmatpush.msra.mxu0 0.0
        %4732 = vmatpush.msra.mxu0 0.0
        %4733 = vmatpush.msra.mxu0 0.0
        %4734 = vmatpush.msra.mxu0 0.0
        %4735 = vmatpush.msra.mxu0 0.0
        %4736 = vmatpush.msra.mxu0 0.0
        %4737 = vmatpush.msra.mxu0 0.0
        %4738 = vmatpush.msra.mxu0 0.0
        %4739 = vmatpush.msra.mxu0 0.0
        %4740 = vmatpush.msra.mxu0 0.0
        %4741 = vmatpush.msra.mxu0 0.0
        %v4742 = vand.u32 %v4723, 4294901760
        %4743 = vmatpush.msra.mxu0 %v4742
        %v4744 = vand.u32 %v4725, 4294901760
        %v4745 = vsub.f32 %v4725, %v4744
        %v4746 = vand.u32 %v4745, 4294901760
        %v4747 = vsub.f32 %v4745, %v4746
        %v4748 = vand.u32 %v4747, 4294901760
        %4749 = vmatmul.f32.gmra.mxu0 %v4748
        %v4750 = vpop.f32.mrf.mxu0
        %v4751 = vadd.f32 0.0, %v4750
        %4752 = vdwg.mxu0
        %4753 = vmatpush.msra.mxu0 0.0
        %4754 = vmatpush.msra.mxu0 0.0
        %4755 = vmatpush.msra.mxu0 0.0
        %4756 = vmatpush.msra.mxu0 0.0
        %4757 = vmatpush.msra.mxu0 0.0
        %4758 = vmatpush.msra.mxu0 0.0
        %4759 = vmatpush.msra.mxu0 0.0
        %4760 = vmatpush.msra.mxu0 0.0
        %4761 = vmatpush.msra.mxu0 0.0
        %4762 = vmatpush.msra.mxu0 0.0
        %4763 = vmatpush.msra.mxu0 0.0
        %4764 = vmatpush.msra.mxu0 0.0
        %4765 = vmatpush.msra.mxu0 0.0
        %4766 = vmatpush.msra.mxu0 0.0
        %4767 = vmatpush.msra.mxu0 0.0
        %v4768 = vand.u32 %v4723, 4294901760
        %v4769 = vsub.f32 %v4723, %v4768
        %v4770 = vand.u32 %v4769, 4294901760
        %v4771 = vsub.f32 %v4769, %v4770
        %v4772 = vand.u32 %v4771, 4294901760
        %4773 = vmatpush.msra.mxu0 %v4772
        %v4774 = vand.u32 %v4725, 4294901760
        %4775 = vmatmul.f32.gmra.mxu0 %v4774
        %v4776 = vpop.f32.mrf.mxu0
        %v4777 = vadd.f32 %v4751, %v4776
        %4778 = vdwg.mxu0
        %4779 = vmatpush.msra.mxu0 0.0
        %4780 = vmatpush.msra.mxu0 0.0
        %4781 = vmatpush.msra.mxu0 0.0
        %4782 = vmatpush.msra.mxu0 0.0
        %4783 = vmatpush.msra.mxu0 0.0
        %4784 = vmatpush.msra.mxu0 0.0
        %4785 = vmatpush.msra.mxu0 0.0
        %4786 = vmatpush.msra.mxu0 0.0
        %4787 = vmatpush.msra.mxu0 0.0
        %4788 = vmatpush.msra.mxu0 0.0
        %4789 = vmatpush.msra.mxu0 0.0
        %4790 = vmatpush.msra.mxu0 0.0
        %4791 = vmatpush.msra.mxu0 0.0
        %4792 = vmatpush.msra.mxu0 0.0
        %4793 = vmatpush.msra.mxu0 0.0
        %v4794 = vand.u32 %v4723, 4294901760
        %v4795 = vsub.f32 %v4723, %v4794
        %4796 = vmatpush.msra.mxu0 %v4795
        %v4797 = vand.u32 %v4725, 4294901760
        %v4798 = vsub.f32 %v4725, %v4797
        %4799 = vmatmul.f32.gmra.mxu0 %v4798
        %v4800 = vpop.f32.mrf.mxu0
        %v4801 = vadd.f32 %v4777, %v4800
        %4802 = vdwg.mxu0
        %4803 = vmatpush.msra.mxu0 0.0
        %4804 = vmatpush.msra.mxu0 0.0
        %4805 = vmatpush.msra.mxu0 0.0
        %4806 = vmatpush.msra.mxu0 0.0
        %4807 = vmatpush.msra.mxu0 0.0
        %4808 = vmatpush.msra.mxu0 0.0
        %4809 = vmatpush.msra.mxu0 0.0
        %4810 = vmatpush.msra.mxu0 0.0
        %4811 = vmatpush.msra.mxu0 0.0
        %4812 = vmatpush.msra.mxu0 0.0
        %4813 = vmatpush.msra.mxu0 0.0
        %4814 = vmatpush.msra.mxu0 0.0
        %4815 = vmatpush.msra.mxu0 0.0
        %4816 = vmatpush.msra.mxu0 0.0
        %4817 = vmatpush.msra.mxu0 0.0
        %v4818 = vand.u32 %v4723, 4294901760
        %4819 = vmatpush.msra.mxu0 %v4818
        %v4820 = vand.u32 %v4725, 4294901760
        %v4821 = vsub.f32 %v4725, %v4820
        %v4822 = vand.u32 %v4821, 4294901760
        %4823 = vmatmul.f32.gmra.mxu0 %v4822
        %v4824 = vpop.f32.mrf.mxu0
        %v4825 = vadd.f32 %v4801, %v4824
        %4826 = vdwg.mxu0
        %4827 = vmatpush.msra.mxu0 0.0
        %4828 = vmatpush.msra.mxu0 0.0
        %4829 = vmatpush.msra.mxu0 0.0
        %4830 = vmatpush.msra.mxu0 0.0
        %4831 = vmatpush.msra.mxu0 0.0
        %4832 = vmatpush.msra.mxu0 0.0
        %4833 = vmatpush.msra.mxu0 0.0
        %4834 = vmatpush.msra.mxu0 0.0
        %4835 = vmatpush.msra.mxu0 0.0
        %4836 = vmatpush.msra.mxu0 0.0
        %4837 = vmatpush.msra.mxu0 0.0
        %4838 = vmatpush.msra.mxu0 0.0
        %4839 = vmatpush.msra.mxu0 0.0
        %4840 = vmatpush.msra.mxu0 0.0
        %4841 = vmatpush.msra.mxu0 0.0
        %v4842 = vand.u32 %v4723, 4294901760
        %v4843 = vsub.f32 %v4723, %v4842
        %v4844 = vand.u32 %v4843, 4294901760
        %4845 = vmatpush.msra.mxu0 %v4844
        %v4846 = vand.u32 %v4725, 4294901760
        %4847 = vmatmul.f32.gmra.mxu0 %v4846
        %v4848 = vpop.f32.mrf.mxu0
        %v4849 = vadd.f32 %v4825, %v4848
        %4850 = vdwg.mxu0
        %4851 = vmatpush.msra.mxu0 0.0
        %4852 = vmatpush.msra.mxu0 0.0
        %4853 = vmatpush.msra.mxu0 0.0
        %4854 = vmatpush.msra.mxu0 0.0
        %4855 = vmatpush.msra.mxu0 0.0
        %4856 = vmatpush.msra.mxu0 0.0
        %4857 = vmatpush.msra.mxu0 0.0
        %4858 = vmatpush.msra.mxu0 0.0
        %4859 = vmatpush.msra.mxu0 0.0
        %4860 = vmatpush.msra.mxu0 0.0
        %4861 = vmatpush.msra.mxu0 0.0
        %4862 = vmatpush.msra.mxu0 0.0
        %4863 = vmatpush.msra.mxu0 0.0
        %4864 = vmatpush.msra.mxu0 0.0
        %4865 = vmatpush.msra.mxu0 0.0
        %v4866 = vand.u32 %v4723, 4294901760
        %4867 = vmatpush.msra.mxu0 %v4866
        %v4868 = vand.u32 %v4725, 4294901760
        %4869 = vmatmul.f32.gmra.mxu0 %v4868
        %v4870 = vpop.f32.mrf.mxu0
        %v4871 = vadd.f32 %v4849, %v4870
        %4872 = vdwg.mxu0
        %v4873 = vadd.f32 %v3802, %v4871
        %v4874 = vld [vmem:[%s10] sm:$0x1]
        %v4876 = vperm.slane %v4874, 0
        %v4878 = vadd.f32 %v4873, %v4876
        %4879 = vst.msk [vmem:[%s377] sm:$0xff] %vm383, %v4878
        %s4880 = sand.u32 %s269, 1
        %s4881 = scalar_lea.sflag [#allocation3], %s4880
        %s4882 = sand.u32 %s269, 1
        %s4883 = smul.addr %s4882, 8
        %s4884 = scalar_lea.vmem [#allocation2], %s4883
        // Predicated region
        $region65: #{tpu_custom_call.1} parent=63 // pred_check
          %p4885 = pneg %p279
        $region66: #{tpu_custom_call.1} parent=63 // pred_check_branch
          %4887 = sbr.rel (%p4885) target = $region68
        $region67: #{tpu_custom_call.1} parent=63 // pred_region
          %4889 = vsyncadd %s4881, 0
          %s4890 = smul.addr %s25, 8
          %s4891 = scalar_lea.hbm %s11, %s4890
          %s4893 = sshll.u32 %s4884, 4
          %s4894 = int_to_ptr.vmem [resolvable:$true] %s4893
          %s4895 = sshll.u32 %s4891, 4
          %s4896 = int_to_ptr.hbm [resolvable:$true] %s4895
          %4898 = dma.vmem_to_hbm [thread:$0]  %s4894, 128, %s4896, %s4881
        $region68: #{tpu_custom_call.1} parent=63 // pred_fallthru
          _
      $region64: #{tpu_custom_call.1} parent=5 // pred_fallthru
        _
      %p4899 = scmp.le.s32.totalorder 2, %s20
      // Predicated region
      $region69: #{tpu_custom_call.1} parent=5 // pred_check
        %p4900 = pneg %p4899
      $region70: #{tpu_custom_call.1} parent=5 // pred_check_branch
        %4902 = sbr.rel (%p4900) target = $region72
      $region71: #{tpu_custom_call.1} parent=5 // pred_region
        %s4903 = ssub.s32 %s20, 2
        // Predicated region
        $region73: #{tpu_custom_call.1} parent=71 // pred_check
          %p4904 = pneg %p285
        $region74: #{tpu_custom_call.1} parent=71 // pred_check_branch
          %4906 = sbr.rel (%p4904) target = $region76
        $region75: #{tpu_custom_call.1} parent=71 // pred_region
          %s4907 = sand.u32 %s270, 1
          %s4908 = scalar_lea.sflag [#allocation3], %s4907
          %s4909 = sand.u32 %s270, 1
          %s4910 = smul.addr %s4909, 8
          %s4911 = scalar_lea.vmem [#allocation2], %s4910
          %4913 = dma.done %s4908, 128
        $region76: #{tpu_custom_call.1} parent=71 // pred_fallthru
          _
      $region72: #{tpu_custom_call.1} parent=5 // pred_fallthru
        _
    $region6: #{tpu_custom_call.1} parent=1 // loop_footer
      %s24 = sadd.s32 1, %s20
    $region7: #{tpu_custom_call.1} parent=1 // loop_footer_branch
      %19 = sbr.rel target = $region3
    $region8: #{tpu_custom_call.1} parent=1 // loop_exit
      _
    %4914 = vsyncpa [#allocation3], 1
    %s4915 = scalar_lea.sflag [#allocation3], 1
    %4916 = vsyncpa %s4915, 1

</llo_original>
